<compile_context>
chip_gen: v5e
topology: v5e:2x2
jax: 0.10.0
libtpu: 0.0.40
codegen_flags: <defaults>
</compile_context>

<pallas_src>
import functools

import numpy as np
import jax
import jax.numpy as jnp
from jax import lax
from jax.experimental import pallas as pl
from jax.experimental.pallas import tpu as pltpu


def _round_up(x, m):
    return ((x + m - 1) // m) * m


def _geometry(k, s, p):
    """Window geometry of the sub-pixel decomposition of ConvTranspose2d."""
    d_rel = [(r + p - kk) // s
             for r in range(s) for kk in range(k) if (r + p - kk) % s == 0]
    dmin, dmax = min(d_rel), max(d_rel)
    pt = -dmin            # top/left zero padding of the input
    R = dmax - dmin + 1   # square window size (in input pixels)
    return pt, R, dmax


def _tap_weights(w_pt, s, p):
    """(Cin,Cout,k,k) PyTorch ConvTranspose2d weight ->
    (R, R*Cin, s*s*Cout) per-dy GEMM weights with the dx window folded into
    the contraction axis."""
    Cin, Cout, kH, kW = w_pt.shape
    assert kH == kW, "square kernels only"
    k = kH
    pt, R, _ = _geometry(k, s, p)
    T = R * R
    kidx = np.zeros((T, s * s), dtype=np.int32)
    mask = np.zeros((T, s * s), dtype=np.float32)
    for dy in range(R):
        for dx in range(R):
            for ry in range(s):
                for rx in range(s):
                    ky = ry + p - s * (dy - pt)
                    kx = rx + p - s * (dx - pt)
                    if 0 <= ky < k and 0 <= kx < k:
                        kidx[dy * R + dx, ry * s + rx] = ky * k + kx
                        mask[dy * R + dx, ry * s + rx] = 1.0
    w_flat = w_pt.reshape(Cin, Cout, k * k)
    gath = w_flat[:, :, kidx] * jnp.asarray(mask)[None, None]   # (Cin,Cout,T,s^2)
    w_tap = jnp.transpose(gath, (2, 0, 3, 1)).reshape(T, Cin, s * s * Cout)
    # split T -> (dy, dx) and fold (dx, Cin) into one contraction axis
    return w_tap.reshape(R, R, Cin, s * s * Cout).reshape(R, R * Cin, s * s * Cout)


def _subpixel_conv_kernel(x_ref, w_ref, b_ref, o_ref, *, row_offsets, relu):
    # x_ref: (1, rows, R*Cin)  dx-folded, padded, row-flattened input (one batch)
    # w_ref: (R, R*Cin, Nout)  per-dy GEMM weights, Nout = stride^2 * Cout_eff
    # b_ref: (1, Nout)         bias tiled over the stride^2 phases
    # o_ref: (1, L_pad, Nout)  rows = (qy,qx) anchors, lane-dense columns
    L = o_ref.shape[1]
    R = len(row_offsets)

    def tap(t):
        off = row_offsets[t]
        return jnp.dot(x_ref[0, off:off + L, :], w_ref[t],
                       preferred_element_type=jnp.float32)

    if R == 1:
        acc = b_ref[...] + tap(0)
    else:
        # accumulate in-place in the output VMEM block; bias fused into the
        # first write, ReLU into the last.
        o_ref[0] = b_ref[...] + tap(0)
        for t in range(1, R - 1):
            o_ref[0] = o_ref[0] + tap(t)
        acc = o_ref[0] + tap(R - 1)
    o_ref[0] = jnp.maximum(acc, 0.0) if relu else acc


def conv_transpose2d(x_nhwc, w_pt, bias, *, stride, padding, relu, cout_pad=None):
    """ConvTranspose2d via sub-pixel decomposition.  x_nhwc: (N,H,W,Cin);
    w_pt: (Cin,Cout,kH,kW) PyTorch layout."""
    Cin, Cout, k, _ = w_pt.shape
    N, H, W, _ = x_nhwc.shape
    s = stride
    Hout = (H - 1) * s - 2 * padding + k
    Wout = (W - 1) * s - 2 * padding + k
    Hq = -(-Hout // s)                      # sub-pixel grid rows
    Wq = -(-Wout // s)
    pt, R, dmax = _geometry(k, s, padding)
    pb_h, pb_w = Hq + dmax - H, Wq + dmax - W
    assert pt >= 0 and pb_h >= 0 and pb_w >= 0, "unsupported layer geometry"
    Hp, Wp = H + pt + pb_h, W + pt + pb_w   # padded input extent
    assert Hp == Hq + R - 1 and Wp == Wq + R - 1

    # lane-dense output: pad Cout so stride^2 * Cout_eff hits 128 lanes
    Cout_eff = Cout if cout_pad is None else cout_pad
    if Cout_eff != Cout:
        w_pt = jnp.pad(w_pt, ((0, 0), (0, Cout_eff - Cout), (0, 0), (0, 0)))
        bias = jnp.pad(bias, (0, Cout_eff - Cout))

    # pad spatially and fold the dx window into the channel axis (tiny XLA glue)
    xp = jnp.pad(x_nhwc, ((0, 0), (pt, pb_h), (pt, pb_w), (0, 0)))
    xw = jnp.concatenate([xp[:, :, dx:dx + Wq, :] for dx in range(R)], axis=-1)
    x_flat = xw.reshape(N, Hp * Wq, R * Cin)

    L = Hq * Wq                         # anchors == sub-pixel grid, no junk cols
    L_pad = _round_up(L, 8)             # sublane-aligned output rows
    rows = (R - 1) * Wq + L_pad         # input rows so every dy slice is in-range
    if rows > Hp * Wq:
        x_flat = jnp.pad(x_flat, ((0, 0), (0, rows - Hp * Wq), (0, 0)))

    w_dy = _tap_weights(w_pt, s, padding)            # (R, R*Cin, Nout)
    Nout = s * s * Cout_eff
    b_tile = jnp.tile(bias, s * s).reshape(1, Nout)
    row_offsets = tuple(dy * Wq for dy in range(R))

    kernel = functools.partial(_subpixel_conv_kernel,
                               row_offsets=row_offsets, relu=relu)
    out = pl.pallas_call(
        kernel,
        out_shape=jax.ShapeDtypeStruct((N, L_pad, Nout), jnp.float32),
        grid_spec=pl.GridSpec(
            grid=(N,),                   # batch: 2 parallel steps (v7x dual-TC)
            in_specs=[
                pl.BlockSpec((1, rows, R * Cin), lambda n: (n, 0, 0)),
                pl.BlockSpec((R, R * Cin, Nout), lambda n: (0, 0, 0)),
                pl.BlockSpec((1, Nout), lambda n: (0, 0)),
            ],
            out_specs=pl.BlockSpec((1, L_pad, Nout), lambda n: (n, 0, 0)),
        ),
        compiler_params=pltpu.CompilerParams(
            dimension_semantics=("parallel",)),
    )(x_flat, w_dy, b_tile)

    # pixel-shuffle the stride^2 phase columns back into space (tiny glue)
    out = out[:, :L].reshape(N, Hq, Wq, s, s, Cout_eff)
    out = jnp.transpose(out, (0, 1, 3, 2, 4, 5)).reshape(N, Hq * s, Wq * s, Cout_eff)
    return out[:, :Hout, :Wout, :Cout]


LAYER_CFG = [
    dict(stride=2, padding=1, relu=True),                 # conv1+relu1 (10->32,k4)
    dict(stride=2, padding=1, relu=True),                 # conv2+relu2 (32->32,k3)
    dict(stride=2, padding=1, relu=True),                 # conv3+relu3 (32->32,k4)
    dict(stride=2, padding=1, relu=False, cout_pad=32),   # conv4       (32->1, k4)
]


def init_params(key):
    specs = [(10, 32, 4), (32, 32, 3), (32, 32, 4), (32, 1, 4)]
    params = []
    for i, (cin, cout, k) in enumerate(specs):
        kw, kb = jax.random.split(jax.random.fold_in(key, i))
        fan_in = cout * k * k  # PyTorch ConvTranspose2d fan-in = weight.size(1)*kH*kW
        bound = 1.0 / jnp.sqrt(fan_in)
        w = jax.random.uniform(kw, (cin, cout, k, k), jnp.float32, -bound, bound)
        b = jax.random.uniform(kb, (cout,), jnp.float32, -bound, bound)
        params.append((w, b))
    return params


def decoder_forward(x_nchw, params):
    x = jnp.transpose(x_nchw, (0, 2, 3, 1))  # NCHW -> NHWC (channels on lanes)
    for (w, b), cfg in zip(params, LAYER_CFG):
        x = conv_transpose2d(x, w, b, **cfg)
    return jnp.transpose(x, (0, 3, 1, 2))    # NHWC -> NCHW


def decoder_reference(x_nchw, params):
    # Independent reference path using lax.conv_general_dilated (lhs dilation).
    x = jnp.transpose(x_nchw, (0, 2, 3, 1))
    for (w, b), cfg in zip(params, LAYER_CFG):
        k = w.shape[2]
        p = k - 1 - cfg["padding"]
        w_hwio = jnp.transpose(jnp.flip(w, axis=(2, 3)), (2, 3, 0, 1))
        y = lax.conv_general_dilated(
            x, w_hwio, window_strides=(1, 1),
            padding=[(p, p), (p, p)],
            lhs_dilation=(cfg["stride"],) * 2,
            dimension_numbers=("NHWC", "HWIO", "NHWC")) + b
        x = jnp.maximum(y, 0.0) if cfg["relu"] else y
    return jnp.transpose(x, (0, 3, 1, 2))


if __name__ == "__main__":
    key = jax.random.PRNGKey(0)
    params = init_params(key)
    x = jax.random.normal(jax.random.fold_in(key, 100), (2, 10, 4, 4), jnp.float32)

    out = jax.jit(decoder_forward)(x, params)
    out = jax.block_until_ready(out)
    assert out.shape == (2, 1, 60, 60), out.shape  # 4 -> 8 -> 15 -> 30 -> 60

    ref = decoder_reference(x, params)
    assert jnp.allclose(out, ref, rtol=1e-4, atol=1e-4), \
        float(jnp.max(jnp.abs(out - ref)))
    print("KERNEL_OK")
</pallas_src>

<mosaic_0001>
module attributes {stable_mosaic.version = 11 : i64} {
  func.func @_subpixel_conv_kernel(%arg0: i32, %arg1: memref<1x24x30xf32, #tpu.memory_space<vmem>>, %arg2: memref<3x30x128xf32, #tpu.memory_space<vmem>>, %arg3: memref<1x128xf32, #tpu.memory_space<vmem>>, %arg4: memref<1x16x128xf32, #tpu.memory_space<vmem>>) attributes {dimension_semantics = [#tpu.dimension_semantics<parallel>], iteration_bounds = array<i64: 2>, scalar_prefetch = 0 : i64, scratch_operands = 0 : i64, tpu.core_type = #tpu.core_type<tc>, window_params = [{transform_indices = @transform_0, window_bounds = array<i64: 1, 24, 30>}, {pipeline_mode = #tpu.pipeline_mode<synchronous>, transform_indices = @transform_1, window_bounds = array<i64: 3, 30, 128>}, {pipeline_mode = #tpu.pipeline_mode<synchronous>, transform_indices = @transform_2, window_bounds = array<i64: 1, 128>}, {transform_indices = @transform_3, window_bounds = array<i64: 1, 16, 128>}]} {
    %c0 = arith.constant 0 : index
    %c0_0 = arith.constant 0 : index
    %0 = vector.load %arg3[%c0, %c0_0] : memref<1x128xf32, #tpu.memory_space<vmem>>, vector<1x128xf32>
    %c0_1 = arith.constant 0 : index
    %c0_2 = arith.constant 0 : index
    %c0_3 = arith.constant 0 : index
    %1 = vector.load %arg1[%c0_1, %c0_2, %c0_3] : memref<1x24x30xf32, #tpu.memory_space<vmem>>, vector<1x16x30xf32>
    %2 = vector.shape_cast %1 : vector<1x16x30xf32> to vector<16x30xf32>
    %c0_4 = arith.constant 0 : index
    %c0_5 = arith.constant 0 : index
    %c0_6 = arith.constant 0 : index
    %3 = vector.load %arg2[%c0_4, %c0_5, %c0_6] : memref<3x30x128xf32, #tpu.memory_space<vmem>>, vector<1x30x128xf32>
    %4 = vector.shape_cast %3 : vector<1x30x128xf32> to vector<30x128xf32>
    %cst = arith.constant dense<0.000000e+00> : vector<16x128xf32>
    %5 = tpu.matmul %2, %4, %cst {dimension_numbers = #tpu.dot_dimension_numbers<[1], [0], [0], [1], [0, 0, 1, 1], [], []>} : vector<16x30xf32>, vector<30x128xf32>, vector<16x128xf32> -> vector<16x128xf32>
    %6 = vector.broadcast %0 : vector<1x128xf32> to vector<16x128xf32>
    %7 = arith.addf %6, %5 : vector<16x128xf32>
    %c0_7 = arith.constant 0 : index
    %c0_8 = arith.constant 0 : index
    %c0_9 = arith.constant 0 : index
    %8 = vector.load %arg4[%c0_7, %c0_8, %c0_9] : memref<1x16x128xf32, #tpu.memory_space<vmem>>, vector<1x16x128xf32>
    %9 = vector.shape_cast %8 : vector<1x16x128xf32> to vector<16x128xf32>
    %10 = vector.shape_cast %7 : vector<16x128xf32> to vector<1x16x128xf32>
    tpu.vector_store %arg4[%c0_7, %c0_8, %c0_9], %10 {strides = array<i32>} : memref<1x16x128xf32, #tpu.memory_space<vmem>>, vector<1x16x128xf32>,
    %c0_10 = arith.constant 0 : index
    %c0_11 = arith.constant 0 : index
    %c0_12 = arith.constant 0 : index
    %11 = vector.load %arg4[%c0_10, %c0_11, %c0_12] : memref<1x16x128xf32, #tpu.memory_space<vmem>>, vector<1x16x128xf32>
    %12 = vector.shape_cast %11 : vector<1x16x128xf32> to vector<16x128xf32>
    %c0_13 = arith.constant 0 : index
    %c4 = arith.constant 4 : index
    %c0_14 = arith.constant 0 : index
    %13 = vector.load %arg1[%c0_13, %c4, %c0_14] : memref<1x24x30xf32, #tpu.memory_space<vmem>>, vector<1x16x30xf32>
    %14 = vector.shape_cast %13 : vector<1x16x30xf32> to vector<16x30xf32>
    %c1 = arith.constant 1 : index
    %c0_15 = arith.constant 0 : index
    %c0_16 = arith.constant 0 : index
    %15 = vector.load %arg2[%c1, %c0_15, %c0_16] : memref<3x30x128xf32, #tpu.memory_space<vmem>>, vector<1x30x128xf32>
    %16 = vector.shape_cast %15 : vector<1x30x128xf32> to vector<30x128xf32>
    %cst_17 = arith.constant dense<0.000000e+00> : vector<16x128xf32>
    %17 = tpu.matmul %14, %16, %cst_17 {dimension_numbers = #tpu.dot_dimension_numbers<[1], [0], [0], [1], [0, 0, 1, 1], [], []>} : vector<16x30xf32>, vector<30x128xf32>, vector<16x128xf32> -> vector<16x128xf32>
    %18 = arith.addf %12, %17 : vector<16x128xf32>
    %c0_18 = arith.constant 0 : index
    %c0_19 = arith.constant 0 : index
    %c0_20 = arith.constant 0 : index
    %19 = vector.load %arg4[%c0_18, %c0_19, %c0_20] : memref<1x16x128xf32, #tpu.memory_space<vmem>>, vector<1x16x128xf32>
    %20 = vector.shape_cast %19 : vector<1x16x128xf32> to vector<16x128xf32>
    %21 = vector.shape_cast %18 : vector<16x128xf32> to vector<1x16x128xf32>
    tpu.vector_store %arg4[%c0_18, %c0_19, %c0_20], %21 {strides = array<i32>} : memref<1x16x128xf32, #tpu.memory_space<vmem>>, vector<1x16x128xf32>,
    %c0_21 = arith.constant 0 : index
    %c0_22 = arith.constant 0 : index
    %c0_23 = arith.constant 0 : index
    %22 = vector.load %arg4[%c0_21, %c0_22, %c0_23] : memref<1x16x128xf32, #tpu.memory_space<vmem>>, vector<1x16x128xf32>
    %23 = vector.shape_cast %22 : vector<1x16x128xf32> to vector<16x128xf32>
    %c0_24 = arith.constant 0 : index
    %c8 = arith.constant 8 : index
    %c0_25 = arith.constant 0 : index
    %24 = vector.load %arg1[%c0_24, %c8, %c0_25] : memref<1x24x30xf32, #tpu.memory_space<vmem>>, vector<1x16x30xf32>
    %25 = vector.shape_cast %24 : vector<1x16x30xf32> to vector<16x30xf32>
    %c2 = arith.constant 2 : index
    %c0_26 = arith.constant 0 : index
    %c0_27 = arith.constant 0 : index
    %26 = vector.load %arg2[%c2, %c0_26, %c0_27] : memref<3x30x128xf32, #tpu.memory_space<vmem>>, vector<1x30x128xf32>
    %27 = vector.shape_cast %26 : vector<1x30x128xf32> to vector<30x128xf32>
    %cst_28 = arith.constant dense<0.000000e+00> : vector<16x128xf32>
    %28 = tpu.matmul %25, %27, %cst_28 {dimension_numbers = #tpu.dot_dimension_numbers<[1], [0], [0], [1], [0, 0, 1, 1], [], []>} : vector<16x30xf32>, vector<30x128xf32>, vector<16x128xf32> -> vector<16x128xf32>
    %29 = arith.addf %23, %28 : vector<16x128xf32>
    %cst_29 = arith.constant 0.000000e+00 : f32
    %30 = vector.broadcast %cst_29 : f32 to vector<16x128xf32>
    %31 = arith.maximumf %29, %30 : vector<16x128xf32>
    %c0_30 = arith.constant 0 : index
    %c0_31 = arith.constant 0 : index
    %c0_32 = arith.constant 0 : index
    %32 = vector.load %arg4[%c0_30, %c0_31, %c0_32] : memref<1x16x128xf32, #tpu.memory_space<vmem>>, vector<1x16x128xf32>
    %33 = vector.shape_cast %32 : vector<1x16x128xf32> to vector<16x128xf32>
    %34 = vector.shape_cast %31 : vector<16x128xf32> to vector<1x16x128xf32>
    tpu.vector_store %arg4[%c0_30, %c0_31, %c0_32], %34 {strides = array<i32>} : memref<1x16x128xf32, #tpu.memory_space<vmem>>, vector<1x16x128xf32>,
    return
  }
  func.func @transform_0(%arg0: i32) -> (i32, i32, i32) {
    %c0_i32 = arith.constant 0 : i32
    %c0_i32_0 = arith.constant 0 : i32
    %c0_i32_1 = arith.constant 0 : i32
    return %arg0, %c0_i32, %c0_i32_0 : i32, i32, i32
  }
  func.func @transform_1(%arg0: i32) -> (i32, i32, i32) {
    %c0_i32 = arith.constant 0 : i32
    %c0_i32_0 = arith.constant 0 : i32
    %c0_i32_1 = arith.constant 0 : i32
    %c0_i32_2 = arith.constant 0 : i32
    return %c0_i32, %c0_i32_0, %c0_i32_1 : i32, i32, i32
  }
  func.func @transform_2(%arg0: i32) -> (i32, i32) {
    %c0_i32 = arith.constant 0 : i32
    %c0_i32_0 = arith.constant 0 : i32
    %c0_i32_1 = arith.constant 0 : i32
    return %c0_i32, %c0_i32_0 : i32, i32
  }
  func.func @transform_3(%arg0: i32) -> (i32, i32, i32) {
    %c0_i32 = arith.constant 0 : i32
    %c0_i32_0 = arith.constant 0 : i32
    %c0_i32_1 = arith.constant 0 : i32
    return %arg0, %c0_i32, %c0_i32_0 : i32, i32, i32
  }
}

module attributes {stable_mosaic.version = 11 : i64} {
  func.func @_subpixel_conv_kernel(%arg0: i32, %arg1: memref<1x72x64xf32, #tpu.memory_space<vmem>>, %arg2: memref<2x64x128xf32, #tpu.memory_space<vmem>>, %arg3: memref<1x128xf32, #tpu.memory_space<vmem>>, %arg4: memref<1x64x128xf32, #tpu.memory_space<vmem>>) attributes {dimension_semantics = [#tpu.dimension_semantics<parallel>], iteration_bounds = array<i64: 2>, scalar_prefetch = 0 : i64, scratch_operands = 0 : i64, tpu.core_type = #tpu.core_type<tc>, window_params = [{transform_indices = @transform_0, window_bounds = array<i64: 1, 72, 64>}, {pipeline_mode = #tpu.pipeline_mode<synchronous>, transform_indices = @transform_1, window_bounds = array<i64: 2, 64, 128>}, {pipeline_mode = #tpu.pipeline_mode<synchronous>, transform_indices = @transform_2, window_bounds = array<i64: 1, 128>}, {transform_indices = @transform_3, window_bounds = array<i64: 1, 64, 128>}]} {
    %c0 = arith.constant 0 : index
    %c0_0 = arith.constant 0 : index
    %0 = vector.load %arg3[%c0, %c0_0] : memref<1x128xf32, #tpu.memory_space<vmem>>, vector<1x128xf32>
    %c0_1 = arith.constant 0 : index
    %c0_2 = arith.constant 0 : index
    %c0_3 = arith.constant 0 : index
    %1 = vector.load %arg1[%c0_1, %c0_2, %c0_3] : memref<1x72x64xf32, #tpu.memory_space<vmem>>, vector<1x64x64xf32>
    %2 = vector.shape_cast %1 : vector<1x64x64xf32> to vector<64x64xf32>
    %c0_4 = arith.constant 0 : index
    %c0_5 = arith.constant 0 : index
    %c0_6 = arith.constant 0 : index
    %3 = vector.load %arg2[%c0_4, %c0_5, %c0_6] : memref<2x64x128xf32, #tpu.memory_space<vmem>>, vector<1x64x128xf32>
    %4 = vector.shape_cast %3 : vector<1x64x128xf32> to vector<64x128xf32>
    %cst = arith.constant dense<0.000000e+00> : vector<64x128xf32>
    %5 = tpu.matmul %2, %4, %cst {dimension_numbers = #tpu.dot_dimension_numbers<[1], [0], [0], [1], [0, 0, 1, 1], [], []>} : vector<64x64xf32>, vector<64x128xf32>, vector<64x128xf32> -> vector<64x128xf32>
    %6 = vector.broadcast %0 : vector<1x128xf32> to vector<64x128xf32>
    %7 = arith.addf %6, %5 : vector<64x128xf32>
    %c0_7 = arith.constant 0 : index
    %c0_8 = arith.constant 0 : index
    %c0_9 = arith.constant 0 : index
    %8 = vector.load %arg4[%c0_7, %c0_8, %c0_9] : memref<1x64x128xf32, #tpu.memory_space<vmem>>, vector<1x64x128xf32>
    %9 = vector.shape_cast %8 : vector<1x64x128xf32> to vector<64x128xf32>
    %10 = vector.shape_cast %7 : vector<64x128xf32> to vector<1x64x128xf32>
    tpu.vector_store %arg4[%c0_7, %c0_8, %c0_9], %10 {strides = array<i32>} : memref<1x64x128xf32, #tpu.memory_space<vmem>>, vector<1x64x128xf32>,
    %c0_10 = arith.constant 0 : index
    %c0_11 = arith.constant 0 : index
    %c0_12 = arith.constant 0 : index
    %11 = vector.load %arg4[%c0_10, %c0_11, %c0_12] : memref<1x64x128xf32, #tpu.memory_space<vmem>>, vector<1x64x128xf32>
    %12 = vector.shape_cast %11 : vector<1x64x128xf32> to vector<64x128xf32>
    %c0_13 = arith.constant 0 : index
    %c8 = arith.constant 8 : index
    %c0_14 = arith.constant 0 : index
    %13 = vector.load %arg1[%c0_13, %c8, %c0_14] : memref<1x72x64xf32, #tpu.memory_space<vmem>>, vector<1x64x64xf32>
    %14 = vector.shape_cast %13 : vector<1x64x64xf32> to vector<64x64xf32>
    %c1 = arith.constant 1 : index
    %c0_15 = arith.constant 0 : index
    %c0_16 = arith.constant 0 : index
    %15 = vector.load %arg2[%c1, %c0_15, %c0_16] : memref<2x64x128xf32, #tpu.memory_space<vmem>>, vector<1x64x128xf32>
    %16 = vector.shape_cast %15 : vector<1x64x128xf32> to vector<64x128xf32>
    %cst_17 = arith.constant dense<0.000000e+00> : vector<64x128xf32>
    %17 = tpu.matmul %14, %16, %cst_17 {dimension_numbers = #tpu.dot_dimension_numbers<[1], [0], [0], [1], [0, 0, 1, 1], [], []>} : vector<64x64xf32>, vector<64x128xf32>, vector<64x128xf32> -> vector<64x128xf32>
    %18 = arith.addf %12, %17 : vector<64x128xf32>
    %cst_18 = arith.constant 0.000000e+00 : f32
    %19 = vector.broadcast %cst_18 : f32 to vector<64x128xf32>
    %20 = arith.maximumf %18, %19 : vector<64x128xf32>
    %c0_19 = arith.constant 0 : index
    %c0_20 = arith.constant 0 : index
    %c0_21 = arith.constant 0 : index
    %21 = vector.load %arg4[%c0_19, %c0_20, %c0_21] : memref<1x64x128xf32, #tpu.memory_space<vmem>>, vector<1x64x128xf32>
    %22 = vector.shape_cast %21 : vector<1x64x128xf32> to vector<64x128xf32>
    %23 = vector.shape_cast %20 : vector<64x128xf32> to vector<1x64x128xf32>
    tpu.vector_store %arg4[%c0_19, %c0_20, %c0_21], %23 {strides = array<i32>} : memref<1x64x128xf32, #tpu.memory_space<vmem>>, vector<1x64x128xf32>,
    return
  }
  func.func @transform_0(%arg0: i32) -> (i32, i32, i32) {
    %c0_i32 = arith.constant 0 : i32
    %c0_i32_0 = arith.constant 0 : i32
    %c0_i32_1 = arith.constant 0 : i32
    return %arg0, %c0_i32, %c0_i32_0 : i32, i32, i32
  }
  func.func @transform_1(%arg0: i32) -> (i32, i32, i32) {
    %c0_i32 = arith.constant 0 : i32
    %c0_i32_0 = arith.constant 0 : i32
    %c0_i32_1 = arith.constant 0 : i32
    %c0_i32_2 = arith.constant 0 : i32
    return %c0_i32, %c0_i32_0, %c0_i32_1 : i32, i32, i32
  }
  func.func @transform_2(%arg0: i32) -> (i32, i32) {
    %c0_i32 = arith.constant 0 : i32
    %c0_i32_0 = arith.constant 0 : i32
    %c0_i32_1 = arith.constant 0 : i32
    return %c0_i32, %c0_i32_0 : i32, i32
  }
  func.func @transform_3(%arg0: i32) -> (i32, i32, i32) {
    %c0_i32 = arith.constant 0 : i32
    %c0_i32_0 = arith.constant 0 : i32
    %c0_i32_1 = arith.constant 0 : i32
    return %arg0, %c0_i32, %c0_i32_0 : i32, i32, i32
  }
}

module attributes {stable_mosaic.version = 11 : i64} {
  func.func @_subpixel_conv_kernel(%arg0: i32, %arg1: memref<1x262x96xf32, #tpu.memory_space<vmem>>, %arg2: memref<3x96x128xf32, #tpu.memory_space<vmem>>, %arg3: memref<1x128xf32, #tpu.memory_space<vmem>>, %arg4: memref<1x232x128xf32, #tpu.memory_space<vmem>>) attributes {dimension_semantics = [#tpu.dimension_semantics<parallel>], iteration_bounds = array<i64: 2>, scalar_prefetch = 0 : i64, scratch_operands = 0 : i64, tpu.core_type = #tpu.core_type<tc>, window_params = [{transform_indices = @transform_0, window_bounds = array<i64: 1, 262, 96>}, {pipeline_mode = #tpu.pipeline_mode<synchronous>, transform_indices = @transform_1, window_bounds = array<i64: 3, 96, 128>}, {pipeline_mode = #tpu.pipeline_mode<synchronous>, transform_indices = @transform_2, window_bounds = array<i64: 1, 128>}, {transform_indices = @transform_3, window_bounds = array<i64: 1, 232, 128>}]} {
    %c0 = arith.constant 0 : index
    %c0_0 = arith.constant 0 : index
    %0 = vector.load %arg3[%c0, %c0_0] : memref<1x128xf32, #tpu.memory_space<vmem>>, vector<1x128xf32>
    %c0_1 = arith.constant 0 : index
    %c0_2 = arith.constant 0 : index
    %c0_3 = arith.constant 0 : index
    %1 = vector.load %arg1[%c0_1, %c0_2, %c0_3] : memref<1x262x96xf32, #tpu.memory_space<vmem>>, vector<1x232x96xf32>
    %2 = vector.shape_cast %1 : vector<1x232x96xf32> to vector<232x96xf32>
    %c0_4 = arith.constant 0 : index
    %c0_5 = arith.constant 0 : index
    %c0_6 = arith.constant 0 : index
    %3 = vector.load %arg2[%c0_4, %c0_5, %c0_6] : memref<3x96x128xf32, #tpu.memory_space<vmem>>, vector<1x96x128xf32>
    %4 = vector.shape_cast %3 : vector<1x96x128xf32> to vector<96x128xf32>
    %cst = arith.constant dense<0.000000e+00> : vector<232x128xf32>
    %5 = tpu.matmul %2, %4, %cst {dimension_numbers = #tpu.dot_dimension_numbers<[1], [0], [0], [1], [0, 0, 1, 1], [], []>} : vector<232x96xf32>, vector<96x128xf32>, vector<232x128xf32> -> vector<232x128xf32>
    %6 = vector.broadcast %0 : vector<1x128xf32> to vector<232x128xf32>
    %7 = arith.addf %6, %5 : vector<232x128xf32>
    %c0_7 = arith.constant 0 : index
    %c0_8 = arith.constant 0 : index
    %c0_9 = arith.constant 0 : index
    %8 = vector.load %arg4[%c0_7, %c0_8, %c0_9] : memref<1x232x128xf32, #tpu.memory_space<vmem>>, vector<1x232x128xf32>
    %9 = vector.shape_cast %8 : vector<1x232x128xf32> to vector<232x128xf32>
    %10 = vector.shape_cast %7 : vector<232x128xf32> to vector<1x232x128xf32>
    tpu.vector_store %arg4[%c0_7, %c0_8, %c0_9], %10 {strides = array<i32>} : memref<1x232x128xf32, #tpu.memory_space<vmem>>, vector<1x232x128xf32>,
    %c0_10 = arith.constant 0 : index
    %c0_11 = arith.constant 0 : index
    %c0_12 = arith.constant 0 : index
    %11 = vector.load %arg4[%c0_10, %c0_11, %c0_12] : memref<1x232x128xf32, #tpu.memory_space<vmem>>, vector<1x232x128xf32>
    %12 = vector.shape_cast %11 : vector<1x232x128xf32> to vector<232x128xf32>
    %c0_13 = arith.constant 0 : index
    %c15 = arith.constant 15 : index
    %c0_14 = arith.constant 0 : index
    %13 = vector.load %arg1[%c0_13, %c15, %c0_14] : memref<1x262x96xf32, #tpu.memory_space<vmem>>, vector<1x232x96xf32>
    %14 = vector.shape_cast %13 : vector<1x232x96xf32> to vector<232x96xf32>
    %c1 = arith.constant 1 : index
    %c0_15 = arith.constant 0 : index
    %c0_16 = arith.constant 0 : index
    %15 = vector.load %arg2[%c1, %c0_15, %c0_16] : memref<3x96x128xf32, #tpu.memory_space<vmem>>, vector<1x96x128xf32>
    %16 = vector.shape_cast %15 : vector<1x96x128xf32> to vector<96x128xf32>
    %cst_17 = arith.constant dense<0.000000e+00> : vector<232x128xf32>
    %17 = tpu.matmul %14, %16, %cst_17 {dimension_numbers = #tpu.dot_dimension_numbers<[1], [0], [0], [1], [0, 0, 1, 1], [], []>} : vector<232x96xf32>, vector<96x128xf32>, vector<232x128xf32> -> vector<232x128xf32>
    %18 = arith.addf %12, %17 : vector<232x128xf32>
    %c0_18 = arith.constant 0 : index
    %c0_19 = arith.constant 0 : index
    %c0_20 = arith.constant 0 : index
    %19 = vector.load %arg4[%c0_18, %c0_19, %c0_20] : memref<1x232x128xf32, #tpu.memory_space<vmem>>, vector<1x232x128xf32>
    %20 = vector.shape_cast %19 : vector<1x232x128xf32> to vector<232x128xf32>
    %21 = vector.shape_cast %18 : vector<232x128xf32> to vector<1x232x128xf32>
    tpu.vector_store %arg4[%c0_18, %c0_19, %c0_20], %21 {strides = array<i32>} : memref<1x232x128xf32, #tpu.memory_space<vmem>>, vector<1x232x128xf32>,
    %c0_21 = arith.constant 0 : index
    %c0_22 = arith.constant 0 : index
    %c0_23 = arith.constant 0 : index
    %22 = vector.load %arg4[%c0_21, %c0_22, %c0_23] : memref<1x232x128xf32, #tpu.memory_space<vmem>>, vector<1x232x128xf32>
    %23 = vector.shape_cast %22 : vector<1x232x128xf32> to vector<232x128xf32>
    %c0_24 = arith.constant 0 : index
    %c30 = arith.constant 30 : index
    %c0_25 = arith.constant 0 : index
    %24 = vector.load %arg1[%c0_24, %c30, %c0_25] : memref<1x262x96xf32, #tpu.memory_space<vmem>>, vector<1x232x96xf32>
    %25 = vector.shape_cast %24 : vector<1x232x96xf32> to vector<232x96xf32>
    %c2 = arith.constant 2 : index
    %c0_26 = arith.constant 0 : index
    %c0_27 = arith.constant 0 : index
    %26 = vector.load %arg2[%c2, %c0_26, %c0_27] : memref<3x96x128xf32, #tpu.memory_space<vmem>>, vector<1x96x128xf32>
    %27 = vector.shape_cast %26 : vector<1x96x128xf32> to vector<96x128xf32>
    %cst_28 = arith.constant dense<0.000000e+00> : vector<232x128xf32>
    %28 = tpu.matmul %25, %27, %cst_28 {dimension_numbers = #tpu.dot_dimension_numbers<[1], [0], [0], [1], [0, 0, 1, 1], [], []>} : vector<232x96xf32>, vector<96x128xf32>, vector<232x128xf32> -> vector<232x128xf32>
    %29 = arith.addf %23, %28 : vector<232x128xf32>
    %cst_29 = arith.constant 0.000000e+00 : f32
    %30 = vector.broadcast %cst_29 : f32 to vector<232x128xf32>
    %31 = arith.maximumf %29, %30 : vector<232x128xf32>
    %c0_30 = arith.constant 0 : index
    %c0_31 = arith.constant 0 : index
    %c0_32 = arith.constant 0 : index
    %32 = vector.load %arg4[%c0_30, %c0_31, %c0_32] : memref<1x232x128xf32, #tpu.memory_space<vmem>>, vector<1x232x128xf32>
    %33 = vector.shape_cast %32 : vector<1x232x128xf32> to vector<232x128xf32>
    %34 = vector.shape_cast %31 : vector<232x128xf32> to vector<1x232x128xf32>
    tpu.vector_store %arg4[%c0_30, %c0_31, %c0_32], %34 {strides = array<i32>} : memref<1x232x128xf32, #tpu.memory_space<vmem>>, vector<1x232x128xf32>,
    return
  }
  func.func @transform_0(%arg0: i32) -> (i32, i32, i32) {
    %c0_i32 = arith.constant 0 : i32
    %c0_i32_0 = arith.constant 0 : i32
    %c0_i32_1 = arith.constant 0 : i32
    return %arg0, %c0_i32, %c0_i32_0 : i32, i32, i32
  }
  func.func @transform_1(%arg0: i32) -> (i32, i32, i32) {
    %c0_i32 = arith.constant 0 : i32
    %c0_i32_0 = arith.constant 0 : i32
    %c0_i32_1 = arith.constant 0 : i32
    %c0_i32_2 = arith.constant 0 : i32
    return %c0_i32, %c0_i32_0, %c0_i32_1 : i32, i32, i32
  }
  func.func @transform_2(%arg0: i32) -> (i32, i32) {
    %c0_i32 = arith.constant 0 : i32
    %c0_i32_0 = arith.constant 0 : i32
    %c0_i32_1 = arith.constant 0 : i32
    return %c0_i32, %c0_i32_0 : i32, i32
  }
  func.func @transform_3(%arg0: i32) -> (i32, i32, i32) {
    %c0_i32 = arith.constant 0 : i32
    %c0_i32_0 = arith.constant 0 : i32
    %c0_i32_1 = arith.constant 0 : i32
    return %arg0, %c0_i32, %c0_i32_0 : i32, i32, i32
  }
}

module attributes {stable_mosaic.version = 11 : i64} {
  func.func @_subpixel_conv_kernel(%arg0: i32, %arg1: memref<1x964x96xf32, #tpu.memory_space<vmem>>, %arg2: memref<3x96x128xf32, #tpu.memory_space<vmem>>, %arg3: memref<1x128xf32, #tpu.memory_space<vmem>>, %arg4: memref<1x904x128xf32, #tpu.memory_space<vmem>>) attributes {dimension_semantics = [#tpu.dimension_semantics<parallel>], iteration_bounds = array<i64: 2>, scalar_prefetch = 0 : i64, scratch_operands = 0 : i64, tpu.core_type = #tpu.core_type<tc>, window_params = [{transform_indices = @transform_0, window_bounds = array<i64: 1, 964, 96>}, {pipeline_mode = #tpu.pipeline_mode<synchronous>, transform_indices = @transform_1, window_bounds = array<i64: 3, 96, 128>}, {pipeline_mode = #tpu.pipeline_mode<synchronous>, transform_indices = @transform_2, window_bounds = array<i64: 1, 128>}, {transform_indices = @transform_3, window_bounds = array<i64: 1, 904, 128>}]} {
    %c0 = arith.constant 0 : index
    %c0_0 = arith.constant 0 : index
    %0 = vector.load %arg3[%c0, %c0_0] : memref<1x128xf32, #tpu.memory_space<vmem>>, vector<1x128xf32>
    %c0_1 = arith.constant 0 : index
    %c0_2 = arith.constant 0 : index
    %c0_3 = arith.constant 0 : index
    %1 = vector.load %arg1[%c0_1, %c0_2, %c0_3] : memref<1x964x96xf32, #tpu.memory_space<vmem>>, vector<1x904x96xf32>
    %2 = vector.shape_cast %1 : vector<1x904x96xf32> to vector<904x96xf32>
    %c0_4 = arith.constant 0 : index
    %c0_5 = arith.constant 0 : index
    %c0_6 = arith.constant 0 : index
    %3 = vector.load %arg2[%c0_4, %c0_5, %c0_6] : memref<3x96x128xf32, #tpu.memory_space<vmem>>, vector<1x96x128xf32>
    %4 = vector.shape_cast %3 : vector<1x96x128xf32> to vector<96x128xf32>
    %cst = arith.constant dense<0.000000e+00> : vector<904x128xf32>
    %5 = tpu.matmul %2, %4, %cst {dimension_numbers = #tpu.dot_dimension_numbers<[1], [0], [0], [1], [0, 0, 1, 1], [], []>} : vector<904x96xf32>, vector<96x128xf32>, vector<904x128xf32> -> vector<904x128xf32>
    %6 = vector.broadcast %0 : vector<1x128xf32> to vector<904x128xf32>
    %7 = arith.addf %6, %5 : vector<904x128xf32>
    %c0_7 = arith.constant 0 : index
    %c0_8 = arith.constant 0 : index
    %c0_9 = arith.constant 0 : index
    %8 = vector.load %arg4[%c0_7, %c0_8, %c0_9] : memref<1x904x128xf32, #tpu.memory_space<vmem>>, vector<1x904x128xf32>
    %9 = vector.shape_cast %8 : vector<1x904x128xf32> to vector<904x128xf32>
    %10 = vector.shape_cast %7 : vector<904x128xf32> to vector<1x904x128xf32>
    tpu.vector_store %arg4[%c0_7, %c0_8, %c0_9], %10 {strides = array<i32>} : memref<1x904x128xf32, #tpu.memory_space<vmem>>, vector<1x904x128xf32>,
    %c0_10 = arith.constant 0 : index
    %c0_11 = arith.constant 0 : index
    %c0_12 = arith.constant 0 : index
    %11 = vector.load %arg4[%c0_10, %c0_11, %c0_12] : memref<1x904x128xf32, #tpu.memory_space<vmem>>, vector<1x904x128xf32>
    %12 = vector.shape_cast %11 : vector<1x904x128xf32> to vector<904x128xf32>
    %c0_13 = arith.constant 0 : index
    %c30 = arith.constant 30 : index
    %c0_14 = arith.constant 0 : index
    %13 = vector.load %arg1[%c0_13, %c30, %c0_14] : memref<1x964x96xf32, #tpu.memory_space<vmem>>, vector<1x904x96xf32>
    %14 = vector.shape_cast %13 : vector<1x904x96xf32> to vector<904x96xf32>
    %c1 = arith.constant 1 : index
    %c0_15 = arith.constant 0 : index
    %c0_16 = arith.constant 0 : index
    %15 = vector.load %arg2[%c1, %c0_15, %c0_16] : memref<3x96x128xf32, #tpu.memory_space<vmem>>, vector<1x96x128xf32>
    %16 = vector.shape_cast %15 : vector<1x96x128xf32> to vector<96x128xf32>
    %cst_17 = arith.constant dense<0.000000e+00> : vector<904x128xf32>
    %17 = tpu.matmul %14, %16, %cst_17 {dimension_numbers = #tpu.dot_dimension_numbers<[1], [0], [0], [1], [0, 0, 1, 1], [], []>} : vector<904x96xf32>, vector<96x128xf32>, vector<904x128xf32> -> vector<904x128xf32>
    %18 = arith.addf %12, %17 : vector<904x128xf32>
    %c0_18 = arith.constant 0 : index
    %c0_19 = arith.constant 0 : index
    %c0_20 = arith.constant 0 : index
    %19 = vector.load %arg4[%c0_18, %c0_19, %c0_20] : memref<1x904x128xf32, #tpu.memory_space<vmem>>, vector<1x904x128xf32>
    %20 = vector.shape_cast %19 : vector<1x904x128xf32> to vector<904x128xf32>
    %21 = vector.shape_cast %18 : vector<904x128xf32> to vector<1x904x128xf32>
    tpu.vector_store %arg4[%c0_18, %c0_19, %c0_20], %21 {strides = array<i32>} : memref<1x904x128xf32, #tpu.memory_space<vmem>>, vector<1x904x128xf32>,
    %c0_21 = arith.constant 0 : index
    %c0_22 = arith.constant 0 : index
    %c0_23 = arith.constant 0 : index
    %22 = vector.load %arg4[%c0_21, %c0_22, %c0_23] : memref<1x904x128xf32, #tpu.memory_space<vmem>>, vector<1x904x128xf32>
    %23 = vector.shape_cast %22 : vector<1x904x128xf32> to vector<904x128xf32>
    %c0_24 = arith.constant 0 : index
    %c60 = arith.constant 60 : index
    %c0_25 = arith.constant 0 : index
    %24 = vector.load %arg1[%c0_24, %c60, %c0_25] : memref<1x964x96xf32, #tpu.memory_space<vmem>>, vector<1x904x96xf32>
    %25 = vector.shape_cast %24 : vector<1x904x96xf32> to vector<904x96xf32>
    %c2 = arith.constant 2 : index
    %c0_26 = arith.constant 0 : index
    %c0_27 = arith.constant 0 : index
    %26 = vector.load %arg2[%c2, %c0_26, %c0_27] : memref<3x96x128xf32, #tpu.memory_space<vmem>>, vector<1x96x128xf32>
    %27 = vector.shape_cast %26 : vector<1x96x128xf32> to vector<96x128xf32>
    %cst_28 = arith.constant dense<0.000000e+00> : vector<904x128xf32>
    %28 = tpu.matmul %25, %27, %cst_28 {dimension_numbers = #tpu.dot_dimension_numbers<[1], [0], [0], [1], [0, 0, 1, 1], [], []>} : vector<904x96xf32>, vector<96x128xf32>, vector<904x128xf32> -> vector<904x128xf32>
    %29 = arith.addf %23, %28 : vector<904x128xf32>
    %c0_29 = arith.constant 0 : index
    %c0_30 = arith.constant 0 : index
    %c0_31 = arith.constant 0 : index
    %30 = vector.load %arg4[%c0_29, %c0_30, %c0_31] : memref<1x904x128xf32, #tpu.memory_space<vmem>>, vector<1x904x128xf32>
    %31 = vector.shape_cast %30 : vector<1x904x128xf32> to vector<904x128xf32>
    %32 = vector.shape_cast %29 : vector<904x128xf32> to vector<1x904x128xf32>
    tpu.vector_store %arg4[%c0_29, %c0_30, %c0_31], %32 {strides = array<i32>} : memref<1x904x128xf32, #tpu.memory_space<vmem>>, vector<1x904x128xf32>,
    return
  }
  func.func @transform_0(%arg0: i32) -> (i32, i32, i32) {
    %c0_i32 = arith.constant 0 : i32
    %c0_i32_0 = arith.constant 0 : i32
    %c0_i32_1 = arith.constant 0 : i32
    return %arg0, %c0_i32, %c0_i32_0 : i32, i32, i32
  }
  func.func @transform_1(%arg0: i32) -> (i32, i32, i32) {
    %c0_i32 = arith.constant 0 : i32
    %c0_i32_0 = arith.constant 0 : i32
    %c0_i32_1 = arith.constant 0 : i32
    %c0_i32_2 = arith.constant 0 : i32
    return %c0_i32, %c0_i32_0, %c0_i32_1 : i32, i32, i32
  }
  func.func @transform_2(%arg0: i32) -> (i32, i32) {
    %c0_i32 = arith.constant 0 : i32
    %c0_i32_0 = arith.constant 0 : i32
    %c0_i32_1 = arith.constant 0 : i32
    return %c0_i32, %c0_i32_0 : i32, i32
  }
  func.func @transform_3(%arg0: i32) -> (i32, i32, i32) {
    %c0_i32 = arith.constant 0 : i32
    %c0_i32_0 = arith.constant 0 : i32
    %c0_i32_1 = arith.constant 0 : i32
    return %arg0, %c0_i32, %c0_i32_0 : i32, i32, i32
  }
}

</mosaic_0001>

<llo_original>
// kernel: tile.38
$region0: #{tile.38}
  #allocation0 [shape = 's32[1]{0}', space=sflag, size = 0x4, scoped, tag = 'scoped memory for tile.38']
  %s0 = inlined_call_operand.vmem [shape: f32[32], index: 0, kind: input, shape index: {}]
  %s1 = inlined_call_operand.vmem [shape: f32[4,32], index: 1, kind: output, shape index: {}]
  // Predicated region
  $region2: #{tile.38} parent=0 // pred_check
    _
  $region3: #{tile.38} parent=0 // pred_check_branch
    %3 = sbr.rel (0) target = $region5
  $region4: #{tile.38} parent=0 // pred_region
    _
  $region5: #{tile.38} parent=0 // pred_fallthru
    _
  %v4 = vld [vmem:[%s0] ss:$0 sm:$0xff]
  %5 = vst [vmem:[%s1] sm:$0xf] %v4

// kernel: tile.39
$region0: #{tile.39}
  %s0 = inlined_call_operand.vmem [shape: f32[4,32], index: 0, kind: input, shape index: {}]
  %s1 = inlined_call_operand.vmem [shape: f32[1,128], index: 1, kind: output, shape index: {}]
  $region1: #{tile.39} parent=0
    #allocation0 [shape = 'u8[4096]{0}', space=vmem, size = 0x1000, scoped, tag = 'scoped mem for output reshape']
    #allocation1 [shape = 'u8[4096]{0}', space=vmem, size = 0x1000, scoped, tag = 'scoped mem for input reshape']
    %s3 = ssub.s32 16, 1
    %v4 = vld [vmem:[%s0] sm:%s3]
    %5 = vst [vmem:[#allocation1] sm:%s3] %v4
    %v6 = vld [vmem:[#allocation1] sm:$0x1]
    %vm7 = vcmask 261120
    %8 = vst.msk [vmem:[#allocation0] sm:$0x1] %vm7, %v6
    %s9 = scalar_lea.vmem [#allocation1], 3
    %v10 = vld [vmem:[%s9] sm:$0x1]
    %11 = vrot.lane.b32.xlu0 %v10, 96
    %v12 = vpop.permute.xlu0 %11
    %vm13 = vcmask 1048320
    %14 = vst.msk [vmem:[#allocation0] sm:$0x1] %vm13, %v12
    %s15 = scalar_lea.vmem [#allocation1], 2
    %v16 = vld [vmem:[%s15] sm:$0x1]
    %17 = vrot.lane.b32.xlu0 %v16, 64
    %v18 = vpop.permute.xlu0 %17
    %vm19 = vcmask 785920
    %20 = vst.msk [vmem:[#allocation0] sm:$0x1] %vm19, %v18
    %s21 = scalar_lea.vmem [#allocation1], 1
    %v22 = vld [vmem:[%s21] sm:$0x1]
    %23 = vrot.lane.b32.xlu0 %v22, 32
    %v24 = vpop.permute.xlu0 %23
    %vm25 = vcmask 523520
    %26 = vst.msk [vmem:[#allocation0] sm:$0x1] %vm25, %v24
    %s28 = ssub.s32 2, 1
    %v29 = vld [vmem:[#allocation0] sm:%s28]
    %s31 = ssub.s32 2, 1
    %32 = vst [vmem:[%s1] sm:%s31] %v29

// kernel: tile.23
$region0: #{tile.23}
  #allocation2 [shape = 's32[1]{0}', space=sflag, size = 0x4, scoped, tag = 'scoped memory for tile.23']
  %s0 = inlined_call_operand.hbm [shape: f32[32], index: 0, kind: input, shape index: {}]
  %s1 = inlined_call_operand.vmem [shape: f32[4,32], index: 1, kind: output, shape index: {}]
  $region1: #{tile.23} parent=0
    #allocation0 [shape = 'u8[512]{0}', space=vmem, size = 0x400, scoped, tag = 'operand span for operand 0']
    #allocation1 [shape = 's32[1]{0}', space=sflag, size = 0x4, scoped, tag = 'scoped memory for tile.23']
    %2 = vsyncpa [#allocation1], 0
    // Predicated region
    $region2: #{tile.23} parent=1 // pred_check
      _
    $region3: #{tile.23} parent=1 // pred_check_branch
      %4 = sbr.rel (0) target = $region5
    $region4: #{tile.23} parent=1 // pred_region
      %6 = vsyncadd [#allocation1], 0
      %s8 = sshll.u32 %s0, 4
      %s9 = int_to_ptr.hbm [resolvable:$true] %s8
      %s10 = sshll.u32 [#allocation0], 4
      %s11 = int_to_ptr.vmem [resolvable:$true] %s10
      %13 = dma.hbm_to_vmem [thread:$0]  %s9, 16, %s11, [#allocation1]
    $region5: #{tile.23} parent=1 // pred_fallthru
      _
    // Predicated region
    $region6: #{tile.23} parent=1 // pred_check
      _
    $region7: #{tile.23} parent=1 // pred_check_branch
      %15 = sbr.rel (0) target = $region9
    $region8: #{tile.23} parent=1 // pred_region
      %17 = dma.done [#allocation1], 16
    $region9: #{tile.23} parent=1 // pred_fallthru
      _
    %v18 = vld [vmem:[#allocation0] ss:$0 sm:$0xff]
    %19 = vst [vmem:[%s1] sm:$0xf] %v18
    %20 = vsyncpa [#allocation1], 1

// kernel: decoder_forward.4
$region0: #{decoder_forward.4}
  #allocation0 [shape = 'u32[]', space=smem, size = 0x4, offset = 0x4, fixed_abs, tag = 'smem constant byte address 0x4 - core index']
  #allocation1 [shape = 'u32[72,128]{1,0:T(1,128)}', space=vmem, size = 0x9000, scoped, tag = 'internal scratch']
  %s0 = inlined_call_operand.vmem [shape: f32[2,24,30], index: 0, kind: input, shape index: {}]
  %s1 = inlined_call_operand.vmem [shape: f32[3,30,128], index: 1, kind: input, shape index: {}]
  %s2 = inlined_call_operand.vmem [shape: f32[1,128], index: 2, kind: input, shape index: {}]
  %s3 = inlined_call_operand.vmem [shape: f32[2,16,128], index: 3, kind: output, shape index: {}]
  %s4 = sld [smem:[#allocation0]]
  $region45: #{decoder_forward.4} parent=0
    _
  %s6 = ssub.s32 1, %s4
  %s7 = scalar_select 0, %s6, %s4
  loop: start=0, step=1, limit=4
  $region2: #{decoder_forward.4} parent=0 // loop_pre_header
    _
  $region3: #{decoder_forward.4} parent=0 // loop_header
    %s9 = sphi 0, %s13
    %p10 = scmp.ge.s32.totalorder %s9, 4
    %s19 = sphi 0, %s21
    %s22 = sphi 0, %s19
    %s23 = sphi 0, %s22
    %s39 = sphi 0, %s23
    %s43 = sphi 0, %s43
    %s45 = sphi 0, %s43
    %s46 = sphi 0, %s45
    %s60 = sphi 0, %s46
    %s64 = sphi 0, %s64
    %s66 = sphi 0, %s64
    %s67 = sphi 0, %s66
    %s81 = sphi 0, %s67
    %s87 = sphi 0, %s89
    %s90 = sphi 0, %s87
    %s91 = sphi 0, %s90
    %s107 = sphi 0, %s91
  $region4: #{decoder_forward.4} parent=0 // loop_header_branch
    %12 = sbr.rel (%p10) target = $region8
  $region5: #{decoder_forward.4} parent=0 // loop_body
    %s14 = ssub.s32 %s9, 1
    %s15 = ssub.s32 %s9, 2
    %s16 = sadd.s32 %s9, 1
    %s17 = ssub.s32 %s9, %s16
    %p18 = scmp.eq.s32.totalorder %s17, 0
    %s20 = sadd.s32 %s19, 1
    %s21 = scalar_select %p18, %s19, %s20
    %p24 = pneg %p18
    %p25 = scmp.eq.s32.totalorder %s9, 1
    %p26 = por %p24, %p25
    %p27 = scmp.ne.s32.totalorder %s19, %s22
    %p28 = scmp.eq.s32.totalorder %s9, 0
    %p29 = por %p27, %p28
    %p30 = scmp.ne.s32.totalorder %s19, %s22
    %p31 = scmp.eq.s32.totalorder %s14, 1
    %p32 = por %p30, %p31
    %p33 = scmp.ne.s32.totalorder %s22, %s23
    %p34 = scmp.eq.s32.totalorder %s14, 0
    %p35 = por %p33, %p34
    %p36 = scmp.ne.s32.totalorder %s22, %s23
    %p37 = scmp.eq.s32.totalorder %s15, 1
    %p38 = por %p36, %p37
    %p40 = scmp.ne.s32.totalorder %s23, %s39
    %p41 = scmp.eq.s32.totalorder %s15, 0
    %p42 = por %p40, %p41
    %s44 = sadd.s32 %s43, 1
    %p47 = scmp.eq.s32.totalorder %s9, 1
    %p48 = scmp.ne.s32.totalorder %s43, %s45
    %p49 = scmp.eq.s32.totalorder %s9, 0
    %p50 = por %p48, %p49
    %p51 = scmp.ne.s32.totalorder %s43, %s45
    %p52 = scmp.eq.s32.totalorder %s14, 1
    %p53 = por %p51, %p52
    %p54 = scmp.ne.s32.totalorder %s45, %s46
    %p55 = scmp.eq.s32.totalorder %s14, 0
    %p56 = por %p54, %p55
    %p57 = scmp.ne.s32.totalorder %s45, %s46
    %p58 = scmp.eq.s32.totalorder %s15, 1
    %p59 = por %p57, %p58
    %p61 = scmp.ne.s32.totalorder %s46, %s60
    %p62 = scmp.eq.s32.totalorder %s15, 0
    %p63 = por %p61, %p62
    %s65 = sadd.s32 %s64, 1
    %p68 = scmp.eq.s32.totalorder %s9, 1
    %p69 = scmp.ne.s32.totalorder %s64, %s66
    %p70 = scmp.eq.s32.totalorder %s9, 0
    %p71 = por %p69, %p70
    %p72 = scmp.ne.s32.totalorder %s64, %s66
    %p73 = scmp.eq.s32.totalorder %s14, 1
    %p74 = por %p72, %p73
    %p75 = scmp.ne.s32.totalorder %s66, %s67
    %p76 = scmp.eq.s32.totalorder %s14, 0
    %p77 = por %p75, %p76
    %p78 = scmp.ne.s32.totalorder %s66, %s67
    %p79 = scmp.eq.s32.totalorder %s15, 1
    %p80 = por %p78, %p79
    %p82 = scmp.ne.s32.totalorder %s67, %s81
    %p83 = scmp.eq.s32.totalorder %s15, 0
    %p84 = por %p82, %p83
    %s85 = ssub.s32 %s9, %s16
    %p86 = scmp.eq.s32.totalorder %s85, 0
    %s88 = sadd.s32 %s87, 1
    %s89 = scalar_select %p86, %s87, %s88
    %p92 = pneg %p86
    %p93 = scmp.eq.s32.totalorder %s9, 1
    %p94 = por %p92, %p93
    %p95 = scmp.ne.s32.totalorder %s87, %s90
    %p96 = scmp.eq.s32.totalorder %s9, 0
    %p97 = por %p95, %p96
    %p98 = scmp.ne.s32.totalorder %s87, %s90
    %p99 = scmp.eq.s32.totalorder %s14, 1
    %p100 = por %p98, %p99
    %p101 = scmp.ne.s32.totalorder %s90, %s91
    %p102 = scmp.eq.s32.totalorder %s14, 0
    %p103 = por %p101, %p102
    %p104 = scmp.ne.s32.totalorder %s90, %s91
    %p105 = scmp.eq.s32.totalorder %s15, 1
    %p106 = por %p104, %p105
    %p108 = scmp.ne.s32.totalorder %s91, %s107
    %p109 = scmp.eq.s32.totalorder %s15, 0
    %p110 = por %p108, %p109
    %p111 = scmp.le.s32.totalorder 1, %s9
    %p112 = scmp.lt.s32.totalorder %s9, 3
    %p113 = pnand %p111, %p112
    %p114 = pneg %p113
    // Predicated region
    $region9: #{decoder_forward.4} parent=5 // pred_check
      _
    $region10: #{decoder_forward.4} parent=5 // pred_check_branch
      %116 = sbr.rel (%p113) target = $region12
    $region11: #{decoder_forward.4} parent=5 // pred_region
      %s117 = ssub.s32 %s9, 1
      // Predicated region
      $region13: #{decoder_forward.4} parent=11 // pred_check
        %p118 = pneg %p56
      $region14: #{decoder_forward.4} parent=11 // pred_check_branch
        %120 = sbr.rel (%p118) target = $region16
      $region15: #{decoder_forward.4} parent=11 // pred_region
        _
      $region16: #{decoder_forward.4} parent=11 // pred_fallthru
        _
      // Predicated region
      $region17: #{decoder_forward.4} parent=11 // pred_check
        %p121 = pneg %p77
      $region18: #{decoder_forward.4} parent=11 // pred_check_branch
        %123 = sbr.rel (%p121) target = $region20
      $region19: #{decoder_forward.4} parent=11 // pred_region
        _
      $region20: #{decoder_forward.4} parent=11 // pred_fallthru
        _
    $region12: #{decoder_forward.4} parent=5 // pred_fallthru
      _
    %p124 = scmp.lt.s32.totalorder %s9, 2
    // Predicated region
    $region21: #{decoder_forward.4} parent=5 // pred_check
      %p125 = pneg %p124
    $region22: #{decoder_forward.4} parent=5 // pred_check_branch
      %127 = sbr.rel (%p125) target = $region24
    $region23: #{decoder_forward.4} parent=5 // pred_region
      // Predicated region
      $region25: #{decoder_forward.4} parent=23 // pred_check
        %p128 = pneg %p29
      $region26: #{decoder_forward.4} parent=23 // pred_check_branch
        %130 = sbr.rel (%p128) target = $region28
      $region27: #{decoder_forward.4} parent=23 // pred_region
        %p131 = scmp.lt.s32.totalorder %s9, 1
        %s132 = scalar_select %p131, %s9, 1
        %s133 = smul.addr %s132, 3
        %s134 = smul.addr %s133, 8
        %s135 = scalar_lea.vmem %s0, %s134
      $region28: #{decoder_forward.4} parent=23 // pred_fallthru
        _
    $region24: #{decoder_forward.4} parent=5 // pred_fallthru
      _
    %p136 = scmp.le.s32.totalorder 1, %s9
    %p137 = scmp.lt.s32.totalorder %s9, 3
    %p138 = pnand %p136, %p137
    %p139 = pneg %p138
    // Predicated region
    $region29: #{decoder_forward.4} parent=5 // pred_check
      _
    $region30: #{decoder_forward.4} parent=5 // pred_check_branch
      %141 = sbr.rel (%p138) target = $region32
    $region31: #{decoder_forward.4} parent=5 // pred_region
      %s142 = ssub.s32 %s9, 1
      %p143 = scmp.lt.s32.totalorder %s14, 1
      %s144 = scalar_select %p143, %s14, 1
      %s145 = smul.addr %s144, 3
      %s146 = smul.addr %s145, 8
      %s147 = scalar_lea.vmem %s0, %s146
      %p148 = pneg %p35
      %p149 = pneg %p32
      %p150 = pneg %p56
      %p151 = pneg %p53
      %p152 = pneg %p77
      %p153 = pneg %p74
      %p154 = pneg %p103
      %p155 = pneg %p100
      %p156 = scmp.lt.s32.totalorder %s14, 1
      %s157 = scalar_select %p156, %s14, 1
      %s158 = smul.addr %s157, 2
      %s159 = smul.addr %s158, 8
      %s160 = scalar_lea.vmem %s3, %s159
      %p161 = scmp.lt.s32.totalorder %s14, 1
      %s162 = scalar_select %p161, %s14, 1
      %s163 = smul.addr %s162, 3
      %s164 = smul.addr %s163, 8
      %s165 = scalar_lea.vmem %s0, %s164
      %p166 = scmp.lt.s32.totalorder %s14, 1
      %s167 = scalar_select %p166, %s14, 1
      %s168 = smul.addr %s167, 2
      %s169 = smul.addr %s168, 8
      %s170 = scalar_lea.vmem %s3, %s169
      %v171 = vld [vmem:[%s2] sm:$0x1]
      %v172 = vld [vmem:[%s165] sm:$0xff]
      %v173 = vld [vmem:[%s165 + $0x8] sm:$0xff]
      %v174 = vld [vmem:[%s1] sm:$0xff]
      %v175 = vld [vmem:[%s1 + $0x8] sm:$0xff]
      %v176 = vld [vmem:[%s1 + $0x10] sm:$0xff]
      %v177 = vld [vmem:[%s1 + $0x18] sm:$0x3f]
      %vm178 = vcmask 244736
      %v180 = vsel %vm178, %v172, 0
      %v183 = vsel %vm178, %v173, 0
      %vm185 = vcmask 1045504
      %v187 = vsel %vm185, %v177, 0
      %189 = vmatpush.msra.mxu0 0.0
      %190 = vmatpush.msra.mxu0 0.0
      %191 = vmatpush.msra.mxu0 0.0
      %192 = vmatpush.msra.mxu0 0.0
      %193 = vmatpush.msra.mxu0 0.0
      %194 = vmatpush.msra.mxu0 0.0
      %195 = vmatpush.msra.mxu0 0.0
      %196 = vmatpush.msra.mxu0 0.0
      %197 = vmatpush.msra.mxu0 0.0
      %198 = vmatpush.msra.mxu0 0.0
      %199 = vmatpush.msra.mxu0 0.0
      %200 = vmatpush.msra.mxu0 0.0
      %201 = vmatpush.msra.mxu0 %v187
      %202 = vmatpush.msra.mxu0 %v176
      %203 = vmatpush.msra.mxu0 %v175
      %204 = vmatpush.msra.mxu0 %v174
      %205 = vmatmul.f32.gmra.mxu0 %v180
      %v206 = vpop.f32.mrf.mxu0
      %v207 = vadd.f32 0.0, %v206
      %208 = vmatmul.f32.gmra.mxu0 %v183
      %v209 = vpop.f32.mrf.mxu0
      %v210 = vadd.f32 0.0, %v209
      %211 = vdwg.mxu0
      %v213 = vperm.slane %v171, 0
      %v215 = vadd.f32 %v213, %v207
      %v216 = vadd.f32 %v213, %v210
      %217 = vst [vmem:[%s170] sm:$0xff] %v215
      %218 = vst [vmem:[%s170 + $0x8] sm:$0xff] %v216
      %v219 = vld [vmem:[%s170] sm:$0xff]
      %v220 = vld [vmem:[%s170 + $0x8] sm:$0xff]
      %v221 = vld [vmem:[%s165 + $0x4] sm:$0xff]
      %v222 = vld [vmem:[%s165 + $0xc] sm:$0xff]
      %s223 = scalar_lea.vmem %s1, 32
      %v224 = vld [vmem:[%s223] sm:$0xff]
      %v225 = vld [vmem:[%s223 + $0x8] sm:$0xff]
      %v226 = vld [vmem:[%s223 + $0x10] sm:$0xff]
      %v227 = vld [vmem:[%s223 + $0x18] sm:$0x3f]
      %v229 = vsel %vm178, %v221, 0
      %v232 = vsel %vm178, %v222, 0
      %v235 = vsel %vm185, %v227, 0
      %237 = vmatpush.msra.mxu0 0.0
      %238 = vmatpush.msra.mxu0 0.0
      %239 = vmatpush.msra.mxu0 0.0
      %240 = vmatpush.msra.mxu0 0.0
      %241 = vmatpush.msra.mxu0 0.0
      %242 = vmatpush.msra.mxu0 0.0
      %243 = vmatpush.msra.mxu0 0.0
      %244 = vmatpush.msra.mxu0 0.0
      %245 = vmatpush.msra.mxu0 0.0
      %246 = vmatpush.msra.mxu0 0.0
      %247 = vmatpush.msra.mxu0 0.0
      %248 = vmatpush.msra.mxu0 0.0
      %249 = vmatpush.msra.mxu0 %v235
      %250 = vmatpush.msra.mxu0 %v226
      %251 = vmatpush.msra.mxu0 %v225
      %252 = vmatpush.msra.mxu0 %v224
      %253 = vmatmul.f32.gmra.mxu0 %v229
      %v254 = vpop.f32.mrf.mxu0
      %v255 = vadd.f32 0.0, %v254
      %256 = vmatmul.f32.gmra.mxu0 %v232
      %v257 = vpop.f32.mrf.mxu0
      %v258 = vadd.f32 0.0, %v257
      %259 = vdwg.mxu0
      %v260 = vadd.f32 %v219, %v255
      %v261 = vadd.f32 %v220, %v258
      %262 = vst [vmem:[%s170] sm:$0xff] %v260
      %263 = vst [vmem:[%s170 + $0x8] sm:$0xff] %v261
      %v264 = vld [vmem:[%s170] sm:$0xff]
      %v265 = vld [vmem:[%s170 + $0x8] sm:$0xff]
      %v266 = vld [vmem:[%s165 + $0x8] sm:$0xff]
      %v267 = vld [vmem:[%s165 + $0x10] sm:$0xff]
      %s268 = scalar_lea.vmem %s1, 64
      %v269 = vld [vmem:[%s268] sm:$0xff]
      %v270 = vld [vmem:[%s268 + $0x8] sm:$0xff]
      %v271 = vld [vmem:[%s268 + $0x10] sm:$0xff]
      %v272 = vld [vmem:[%s268 + $0x18] sm:$0x3f]
      %v274 = vsel %vm178, %v266, 0
      %v277 = vsel %vm178, %v267, 0
      %v280 = vsel %vm185, %v272, 0
      %282 = vmatpush.msra.mxu0 0.0
      %283 = vmatpush.msra.mxu0 0.0
      %284 = vmatpush.msra.mxu0 0.0
      %285 = vmatpush.msra.mxu0 0.0
      %286 = vmatpush.msra.mxu0 0.0
      %287 = vmatpush.msra.mxu0 0.0
      %288 = vmatpush.msra.mxu0 0.0
      %289 = vmatpush.msra.mxu0 0.0
      %290 = vmatpush.msra.mxu0 0.0
      %291 = vmatpush.msra.mxu0 0.0
      %292 = vmatpush.msra.mxu0 0.0
      %293 = vmatpush.msra.mxu0 0.0
      %294 = vmatpush.msra.mxu0 %v280
      %295 = vmatpush.msra.mxu0 %v271
      %296 = vmatpush.msra.mxu0 %v270
      %297 = vmatpush.msra.mxu0 %v269
      %298 = vmatmul.f32.gmra.mxu0 %v274
      %v299 = vpop.f32.mrf.mxu0
      %v300 = vadd.f32 0.0, %v299
      %301 = vmatmul.f32.gmra.mxu0 %v277
      %v302 = vpop.f32.mrf.mxu0
      %v303 = vadd.f32 0.0, %v302
      %304 = vdwg.mxu0
      %v305 = vadd.f32 %v264, %v300
      %v306 = vadd.f32 %v265, %v303
      %v307 = vmax.f32 %v305, 0.0
      %v308 = vmax.f32 %v306, 0.0
      %309 = vst [vmem:[%s170] sm:$0xff] %v307
      %310 = vst [vmem:[%s170 + $0x8] sm:$0xff] %v308
      %p311 = scmp.lt.s32.totalorder %s14, 1
      %s312 = scalar_select %p311, %s14, 1
      %s313 = smul.addr %s312, 2
      %s314 = smul.addr %s313, 8
      %s315 = scalar_lea.vmem %s3, %s314
      // Predicated region
      $region33: #{decoder_forward.4} parent=31 // pred_check
        %p316 = pneg %p100
      $region34: #{decoder_forward.4} parent=31 // pred_check_branch
        %318 = sbr.rel (%p316) target = $region36
      $region35: #{decoder_forward.4} parent=31 // pred_region
        _
      $region36: #{decoder_forward.4} parent=31 // pred_fallthru
        _
    $region32: #{decoder_forward.4} parent=5 // pred_fallthru
      _
    %p319 = scmp.le.s32.totalorder 2, %s9
    // Predicated region
    $region37: #{decoder_forward.4} parent=5 // pred_check
      %p320 = pneg %p319
    $region38: #{decoder_forward.4} parent=5 // pred_check_branch
      %322 = sbr.rel (%p320) target = $region40
    $region39: #{decoder_forward.4} parent=5 // pred_region
      %s323 = ssub.s32 %s9, 2
      // Predicated region
      $region41: #{decoder_forward.4} parent=39 // pred_check
        %p324 = pneg %p106
      $region42: #{decoder_forward.4} parent=39 // pred_check_branch
        %326 = sbr.rel (%p324) target = $region44
      $region43: #{decoder_forward.4} parent=39 // pred_region
        %p327 = scmp.lt.s32.totalorder %s15, 1
        %s328 = scalar_select %p327, %s15, 1
        %s329 = smul.addr %s328, 2
        %s330 = smul.addr %s329, 8
        %s331 = scalar_lea.vmem %s3, %s330
      $region44: #{decoder_forward.4} parent=39 // pred_fallthru
        _
    $region40: #{decoder_forward.4} parent=5 // pred_fallthru
      _
  $region6: #{decoder_forward.4} parent=0 // loop_footer
    %s13 = sadd.s32 1, %s9
  $region7: #{decoder_forward.4} parent=0 // loop_footer_branch
    %8 = sbr.rel target = $region3
  $region8: #{decoder_forward.4} parent=0 // loop_exit
    _

// kernel: decoder_forward.5
$region0: #{decoder_forward.5}
  #allocation0 [shape = 'u32[]', space=smem, size = 0x4, offset = 0x4, fixed_abs, tag = 'smem constant byte address 0x4 - core index']
  #allocation1 [shape = 'u32[72,128]{1,0:T(1,128)}', space=vmem, size = 0x9000, scoped, tag = 'internal scratch']
  %s0 = inlined_call_operand.vmem [shape: f32[2,72,64], index: 0, kind: input, shape index: {}]
  %s1 = inlined_call_operand.vmem [shape: f32[2,64,128], index: 1, kind: input, shape index: {}]
  %s2 = inlined_call_operand.vmem [shape: f32[1,128], index: 2, kind: input, shape index: {}]
  %s3 = inlined_call_operand.vmem [shape: f32[2,64,128], index: 3, kind: output, shape index: {}]
  %s4 = sld [smem:[#allocation0]]
  $region45: #{decoder_forward.5} parent=0
    _
  %s6 = ssub.s32 1, %s4
  %s7 = scalar_select 0, %s6, %s4
  loop: start=0, step=1, limit=4
  $region2: #{decoder_forward.5} parent=0 // loop_pre_header
    _
  $region3: #{decoder_forward.5} parent=0 // loop_header
    %s9 = sphi 0, %s13
    %p10 = scmp.ge.s32.totalorder %s9, 4
    %s19 = sphi 0, %s21
    %s22 = sphi 0, %s19
    %s23 = sphi 0, %s22
    %s39 = sphi 0, %s23
    %s43 = sphi 0, %s43
    %s45 = sphi 0, %s43
    %s46 = sphi 0, %s45
    %s60 = sphi 0, %s46
    %s64 = sphi 0, %s64
    %s66 = sphi 0, %s64
    %s67 = sphi 0, %s66
    %s81 = sphi 0, %s67
    %s87 = sphi 0, %s89
    %s90 = sphi 0, %s87
    %s91 = sphi 0, %s90
    %s107 = sphi 0, %s91
  $region4: #{decoder_forward.5} parent=0 // loop_header_branch
    %12 = sbr.rel (%p10) target = $region8
  $region5: #{decoder_forward.5} parent=0 // loop_body
    %s14 = ssub.s32 %s9, 1
    %s15 = ssub.s32 %s9, 2
    %s16 = sadd.s32 %s9, 1
    %s17 = ssub.s32 %s9, %s16
    %p18 = scmp.eq.s32.totalorder %s17, 0
    %s20 = sadd.s32 %s19, 1
    %s21 = scalar_select %p18, %s19, %s20
    %p24 = pneg %p18
    %p25 = scmp.eq.s32.totalorder %s9, 1
    %p26 = por %p24, %p25
    %p27 = scmp.ne.s32.totalorder %s19, %s22
    %p28 = scmp.eq.s32.totalorder %s9, 0
    %p29 = por %p27, %p28
    %p30 = scmp.ne.s32.totalorder %s19, %s22
    %p31 = scmp.eq.s32.totalorder %s14, 1
    %p32 = por %p30, %p31
    %p33 = scmp.ne.s32.totalorder %s22, %s23
    %p34 = scmp.eq.s32.totalorder %s14, 0
    %p35 = por %p33, %p34
    %p36 = scmp.ne.s32.totalorder %s22, %s23
    %p37 = scmp.eq.s32.totalorder %s15, 1
    %p38 = por %p36, %p37
    %p40 = scmp.ne.s32.totalorder %s23, %s39
    %p41 = scmp.eq.s32.totalorder %s15, 0
    %p42 = por %p40, %p41
    %s44 = sadd.s32 %s43, 1
    %p47 = scmp.eq.s32.totalorder %s9, 1
    %p48 = scmp.ne.s32.totalorder %s43, %s45
    %p49 = scmp.eq.s32.totalorder %s9, 0
    %p50 = por %p48, %p49
    %p51 = scmp.ne.s32.totalorder %s43, %s45
    %p52 = scmp.eq.s32.totalorder %s14, 1
    %p53 = por %p51, %p52
    %p54 = scmp.ne.s32.totalorder %s45, %s46
    %p55 = scmp.eq.s32.totalorder %s14, 0
    %p56 = por %p54, %p55
    %p57 = scmp.ne.s32.totalorder %s45, %s46
    %p58 = scmp.eq.s32.totalorder %s15, 1
    %p59 = por %p57, %p58
    %p61 = scmp.ne.s32.totalorder %s46, %s60
    %p62 = scmp.eq.s32.totalorder %s15, 0
    %p63 = por %p61, %p62
    %s65 = sadd.s32 %s64, 1
    %p68 = scmp.eq.s32.totalorder %s9, 1
    %p69 = scmp.ne.s32.totalorder %s64, %s66
    %p70 = scmp.eq.s32.totalorder %s9, 0
    %p71 = por %p69, %p70
    %p72 = scmp.ne.s32.totalorder %s64, %s66
    %p73 = scmp.eq.s32.totalorder %s14, 1
    %p74 = por %p72, %p73
    %p75 = scmp.ne.s32.totalorder %s66, %s67
    %p76 = scmp.eq.s32.totalorder %s14, 0
    %p77 = por %p75, %p76
    %p78 = scmp.ne.s32.totalorder %s66, %s67
    %p79 = scmp.eq.s32.totalorder %s15, 1
    %p80 = por %p78, %p79
    %p82 = scmp.ne.s32.totalorder %s67, %s81
    %p83 = scmp.eq.s32.totalorder %s15, 0
    %p84 = por %p82, %p83
    %s85 = ssub.s32 %s9, %s16
    %p86 = scmp.eq.s32.totalorder %s85, 0
    %s88 = sadd.s32 %s87, 1
    %s89 = scalar_select %p86, %s87, %s88
    %p92 = pneg %p86
    %p93 = scmp.eq.s32.totalorder %s9, 1
    %p94 = por %p92, %p93
    %p95 = scmp.ne.s32.totalorder %s87, %s90
    %p96 = scmp.eq.s32.totalorder %s9, 0
    %p97 = por %p95, %p96
    %p98 = scmp.ne.s32.totalorder %s87, %s90
    %p99 = scmp.eq.s32.totalorder %s14, 1
    %p100 = por %p98, %p99
    %p101 = scmp.ne.s32.totalorder %s90, %s91
    %p102 = scmp.eq.s32.totalorder %s14, 0
    %p103 = por %p101, %p102
    %p104 = scmp.ne.s32.totalorder %s90, %s91
    %p105 = scmp.eq.s32.totalorder %s15, 1
    %p106 = por %p104, %p105
    %p108 = scmp.ne.s32.totalorder %s91, %s107
    %p109 = scmp.eq.s32.totalorder %s15, 0
    %p110 = por %p108, %p109
    %p111 = scmp.le.s32.totalorder 1, %s9
    %p112 = scmp.lt.s32.totalorder %s9, 3
    %p113 = pnand %p111, %p112
    %p114 = pneg %p113
    // Predicated region
    $region9: #{decoder_forward.5} parent=5 // pred_check
      _
    $region10: #{decoder_forward.5} parent=5 // pred_check_branch
      %116 = sbr.rel (%p113) target = $region12
    $region11: #{decoder_forward.5} parent=5 // pred_region
      %s117 = ssub.s32 %s9, 1
      // Predicated region
      $region13: #{decoder_forward.5} parent=11 // pred_check
        %p118 = pneg %p56
      $region14: #{decoder_forward.5} parent=11 // pred_check_branch
        %120 = sbr.rel (%p118) target = $region16
      $region15: #{decoder_forward.5} parent=11 // pred_region
        _
      $region16: #{decoder_forward.5} parent=11 // pred_fallthru
        _
      // Predicated region
      $region17: #{decoder_forward.5} parent=11 // pred_check
        %p121 = pneg %p77
      $region18: #{decoder_forward.5} parent=11 // pred_check_branch
        %123 = sbr.rel (%p121) target = $region20
      $region19: #{decoder_forward.5} parent=11 // pred_region
        _
      $region20: #{decoder_forward.5} parent=11 // pred_fallthru
        _
    $region12: #{decoder_forward.5} parent=5 // pred_fallthru
      _
    %p124 = scmp.lt.s32.totalorder %s9, 2
    // Predicated region
    $region21: #{decoder_forward.5} parent=5 // pred_check
      %p125 = pneg %p124
    $region22: #{decoder_forward.5} parent=5 // pred_check_branch
      %127 = sbr.rel (%p125) target = $region24
    $region23: #{decoder_forward.5} parent=5 // pred_region
      // Predicated region
      $region25: #{decoder_forward.5} parent=23 // pred_check
        %p128 = pneg %p29
      $region26: #{decoder_forward.5} parent=23 // pred_check_branch
        %130 = sbr.rel (%p128) target = $region28
      $region27: #{decoder_forward.5} parent=23 // pred_region
        %p131 = scmp.lt.s32.totalorder %s9, 1
        %s132 = scalar_select %p131, %s9, 1
        %s133 = smul.addr %s132, 9
        %s134 = smul.addr %s133, 8
        %s135 = scalar_lea.vmem %s0, %s134
      $region28: #{decoder_forward.5} parent=23 // pred_fallthru
        _
    $region24: #{decoder_forward.5} parent=5 // pred_fallthru
      _
    %p136 = scmp.le.s32.totalorder 1, %s9
    %p137 = scmp.lt.s32.totalorder %s9, 3
    %p138 = pnand %p136, %p137
    %p139 = pneg %p138
    // Predicated region
    $region29: #{decoder_forward.5} parent=5 // pred_check
      _
    $region30: #{decoder_forward.5} parent=5 // pred_check_branch
      %141 = sbr.rel (%p138) target = $region32
    $region31: #{decoder_forward.5} parent=5 // pred_region
      %s142 = ssub.s32 %s9, 1
      %p143 = scmp.lt.s32.totalorder %s14, 1
      %s144 = scalar_select %p143, %s14, 1
      %s145 = smul.addr %s144, 9
      %s146 = smul.addr %s145, 8
      %s147 = scalar_lea.vmem %s0, %s146
      %p148 = pneg %p35
      %p149 = pneg %p32
      %p150 = pneg %p56
      %p151 = pneg %p53
      %p152 = pneg %p77
      %p153 = pneg %p74
      %p154 = pneg %p103
      %p155 = pneg %p100
      %p156 = scmp.lt.s32.totalorder %s14, 1
      %s157 = scalar_select %p156, %s14, 1
      %s158 = smul.addr %s157, 8
      %s159 = smul.addr %s158, 8
      %s160 = scalar_lea.vmem %s3, %s159
      %p161 = scmp.lt.s32.totalorder %s14, 1
      %s162 = scalar_select %p161, %s14, 1
      %s163 = smul.addr %s162, 9
      %s164 = smul.addr %s163, 8
      %s165 = scalar_lea.vmem %s0, %s164
      %p166 = scmp.lt.s32.totalorder %s14, 1
      %s167 = scalar_select %p166, %s14, 1
      %s168 = smul.addr %s167, 8
      %s169 = smul.addr %s168, 8
      %s170 = scalar_lea.vmem %s3, %s169
      %v171 = vld [vmem:[%s2] sm:$0x1]
      %v172 = vld [vmem:[%s165] sm:$0xff]
      %v173 = vld [vmem:[%s165 + $0x8] sm:$0xff]
      %v174 = vld [vmem:[%s165 + $0x10] sm:$0xff]
      %v175 = vld [vmem:[%s165 + $0x18] sm:$0xff]
      %v176 = vld [vmem:[%s165 + $0x20] sm:$0xff]
      %v177 = vld [vmem:[%s165 + $0x28] sm:$0xff]
      %v178 = vld [vmem:[%s165 + $0x30] sm:$0xff]
      %v179 = vld [vmem:[%s165 + $0x38] sm:$0xff]
      %v180 = vld [vmem:[%s1] sm:$0xff]
      %v181 = vld [vmem:[%s1 + $0x8] sm:$0xff]
      %v182 = vld [vmem:[%s1 + $0x10] sm:$0xff]
      %v183 = vld [vmem:[%s1 + $0x18] sm:$0xff]
      %v184 = vld [vmem:[%s1 + $0x20] sm:$0xff]
      %v185 = vld [vmem:[%s1 + $0x28] sm:$0xff]
      %v186 = vld [vmem:[%s1 + $0x30] sm:$0xff]
      %v187 = vld [vmem:[%s1 + $0x38] sm:$0xff]
      %vm188 = vcmask 523264
      %v190 = vsel %vm188, %v172, 0
      %v193 = vsel %vm188, %v173, 0
      %v196 = vsel %vm188, %v174, 0
      %v199 = vsel %vm188, %v175, 0
      %v202 = vsel %vm188, %v176, 0
      %v205 = vsel %vm188, %v177, 0
      %v208 = vsel %vm188, %v178, 0
      %v211 = vsel %vm188, %v179, 0
      %213 = vmatpush.msra.mxu0 0.0
      %214 = vmatpush.msra.mxu0 0.0
      %215 = vmatpush.msra.mxu0 0.0
      %216 = vmatpush.msra.mxu0 0.0
      %217 = vmatpush.msra.mxu0 0.0
      %218 = vmatpush.msra.mxu0 0.0
      %219 = vmatpush.msra.mxu0 0.0
      %220 = vmatpush.msra.mxu0 0.0
      %221 = vmatpush.msra.mxu0 %v187
      %222 = vmatpush.msra.mxu0 %v186
      %223 = vmatpush.msra.mxu0 %v185
      %224 = vmatpush.msra.mxu0 %v184
      %225 = vmatpush.msra.mxu0 %v183
      %226 = vmatpush.msra.mxu0 %v182
      %227 = vmatpush.msra.mxu0 %v181
      %228 = vmatpush.msra.mxu0 %v180
      %229 = vmatmul.f32.gmra.mxu0 %v190
      %v230 = vpop.f32.mrf.mxu0
      %v231 = vadd.f32 0.0, %v230
      %232 = vmatmul.f32.gmra.mxu0 %v193
      %v233 = vpop.f32.mrf.mxu0
      %v234 = vadd.f32 0.0, %v233
      %235 = vmatmul.f32.gmra.mxu0 %v196
      %v236 = vpop.f32.mrf.mxu0
      %v237 = vadd.f32 0.0, %v236
      %238 = vmatmul.f32.gmra.mxu0 %v199
      %v239 = vpop.f32.mrf.mxu0
      %v240 = vadd.f32 0.0, %v239
      %241 = vmatmul.f32.gmra.mxu0 %v202
      %v242 = vpop.f32.mrf.mxu0
      %v243 = vadd.f32 0.0, %v242
      %244 = vmatmul.f32.gmra.mxu0 %v205
      %v245 = vpop.f32.mrf.mxu0
      %v246 = vadd.f32 0.0, %v245
      %247 = vmatmul.f32.gmra.mxu0 %v208
      %v248 = vpop.f32.mrf.mxu0
      %v249 = vadd.f32 0.0, %v248
      %250 = vmatmul.f32.gmra.mxu0 %v211
      %v251 = vpop.f32.mrf.mxu0
      %v252 = vadd.f32 0.0, %v251
      %253 = vdwg.mxu0
      %v255 = vperm.slane %v171, 0
      %v257 = vadd.f32 %v255, %v231
      %v258 = vadd.f32 %v255, %v234
      %v259 = vadd.f32 %v255, %v237
      %v260 = vadd.f32 %v255, %v240
      %v261 = vadd.f32 %v255, %v243
      %v262 = vadd.f32 %v255, %v246
      %v263 = vadd.f32 %v255, %v249
      %v264 = vadd.f32 %v255, %v252
      %265 = vst [vmem:[%s170] sm:$0xff] %v257
      %266 = vst [vmem:[%s170 + $0x8] sm:$0xff] %v258
      %267 = vst [vmem:[%s170 + $0x10] sm:$0xff] %v259
      %268 = vst [vmem:[%s170 + $0x18] sm:$0xff] %v260
      %269 = vst [vmem:[%s170 + $0x20] sm:$0xff] %v261
      %270 = vst [vmem:[%s170 + $0x28] sm:$0xff] %v262
      %271 = vst [vmem:[%s170 + $0x30] sm:$0xff] %v263
      %272 = vst [vmem:[%s170 + $0x38] sm:$0xff] %v264
      %v273 = vld [vmem:[%s170] sm:$0xff]
      %v274 = vld [vmem:[%s170 + $0x8] sm:$0xff]
      %v275 = vld [vmem:[%s170 + $0x10] sm:$0xff]
      %v276 = vld [vmem:[%s170 + $0x18] sm:$0xff]
      %v277 = vld [vmem:[%s170 + $0x20] sm:$0xff]
      %v278 = vld [vmem:[%s170 + $0x28] sm:$0xff]
      %v279 = vld [vmem:[%s170 + $0x30] sm:$0xff]
      %v280 = vld [vmem:[%s170 + $0x38] sm:$0xff]
      %v281 = vld [vmem:[%s165 + $0x8] sm:$0xff]
      %v282 = vld [vmem:[%s165 + $0x10] sm:$0xff]
      %v283 = vld [vmem:[%s165 + $0x18] sm:$0xff]
      %v284 = vld [vmem:[%s165 + $0x20] sm:$0xff]
      %v285 = vld [vmem:[%s165 + $0x28] sm:$0xff]
      %v286 = vld [vmem:[%s165 + $0x30] sm:$0xff]
      %v287 = vld [vmem:[%s165 + $0x38] sm:$0xff]
      %v288 = vld [vmem:[%s165 + $0x40] sm:$0xff]
      %s289 = scalar_lea.vmem %s1, 64
      %v290 = vld [vmem:[%s289] sm:$0xff]
      %v291 = vld [vmem:[%s289 + $0x8] sm:$0xff]
      %v292 = vld [vmem:[%s289 + $0x10] sm:$0xff]
      %v293 = vld [vmem:[%s289 + $0x18] sm:$0xff]
      %v294 = vld [vmem:[%s289 + $0x20] sm:$0xff]
      %v295 = vld [vmem:[%s289 + $0x28] sm:$0xff]
      %v296 = vld [vmem:[%s289 + $0x30] sm:$0xff]
      %v297 = vld [vmem:[%s289 + $0x38] sm:$0xff]
      %v299 = vsel %vm188, %v281, 0
      %v302 = vsel %vm188, %v282, 0
      %v305 = vsel %vm188, %v283, 0
      %v308 = vsel %vm188, %v284, 0
      %v311 = vsel %vm188, %v285, 0
      %v314 = vsel %vm188, %v286, 0
      %v317 = vsel %vm188, %v287, 0
      %v320 = vsel %vm188, %v288, 0
      %322 = vmatpush.msra.mxu0 0.0
      %323 = vmatpush.msra.mxu0 0.0
      %324 = vmatpush.msra.mxu0 0.0
      %325 = vmatpush.msra.mxu0 0.0
      %326 = vmatpush.msra.mxu0 0.0
      %327 = vmatpush.msra.mxu0 0.0
      %328 = vmatpush.msra.mxu0 0.0
      %329 = vmatpush.msra.mxu0 0.0
      %330 = vmatpush.msra.mxu0 %v297
      %331 = vmatpush.msra.mxu0 %v296
      %332 = vmatpush.msra.mxu0 %v295
      %333 = vmatpush.msra.mxu0 %v294
      %334 = vmatpush.msra.mxu0 %v293
      %335 = vmatpush.msra.mxu0 %v292
      %336 = vmatpush.msra.mxu0 %v291
      %337 = vmatpush.msra.mxu0 %v290
      %338 = vmatmul.f32.gmra.mxu0 %v299
      %v339 = vpop.f32.mrf.mxu0
      %v340 = vadd.f32 0.0, %v339
      %341 = vmatmul.f32.gmra.mxu0 %v302
      %v342 = vpop.f32.mrf.mxu0
      %v343 = vadd.f32 0.0, %v342
      %344 = vmatmul.f32.gmra.mxu0 %v305
      %v345 = vpop.f32.mrf.mxu0
      %v346 = vadd.f32 0.0, %v345
      %347 = vmatmul.f32.gmra.mxu0 %v308
      %v348 = vpop.f32.mrf.mxu0
      %v349 = vadd.f32 0.0, %v348
      %350 = vmatmul.f32.gmra.mxu0 %v311
      %v351 = vpop.f32.mrf.mxu0
      %v352 = vadd.f32 0.0, %v351
      %353 = vmatmul.f32.gmra.mxu0 %v314
      %v354 = vpop.f32.mrf.mxu0
      %v355 = vadd.f32 0.0, %v354
      %356 = vmatmul.f32.gmra.mxu0 %v317
      %v357 = vpop.f32.mrf.mxu0
      %v358 = vadd.f32 0.0, %v357
      %359 = vmatmul.f32.gmra.mxu0 %v320
      %v360 = vpop.f32.mrf.mxu0
      %v361 = vadd.f32 0.0, %v360
      %362 = vdwg.mxu0
      %v363 = vadd.f32 %v273, %v340
      %v364 = vadd.f32 %v274, %v343
      %v365 = vadd.f32 %v275, %v346
      %v366 = vadd.f32 %v276, %v349
      %v367 = vadd.f32 %v277, %v352
      %v368 = vadd.f32 %v278, %v355
      %v369 = vadd.f32 %v279, %v358
      %v370 = vadd.f32 %v280, %v361
      %v371 = vmax.f32 %v363, 0.0
      %v372 = vmax.f32 %v364, 0.0
      %v373 = vmax.f32 %v365, 0.0
      %v374 = vmax.f32 %v366, 0.0
      %v375 = vmax.f32 %v367, 0.0
      %v376 = vmax.f32 %v368, 0.0
      %v377 = vmax.f32 %v369, 0.0
      %v378 = vmax.f32 %v370, 0.0
      %379 = vst [vmem:[%s170] sm:$0xff] %v371
      %380 = vst [vmem:[%s170 + $0x8] sm:$0xff] %v372
      %381 = vst [vmem:[%s170 + $0x10] sm:$0xff] %v373
      %382 = vst [vmem:[%s170 + $0x18] sm:$0xff] %v374
      %383 = vst [vmem:[%s170 + $0x20] sm:$0xff] %v375
      %384 = vst [vmem:[%s170 + $0x28] sm:$0xff] %v376
      %385 = vst [vmem:[%s170 + $0x30] sm:$0xff] %v377
      %386 = vst [vmem:[%s170 + $0x38] sm:$0xff] %v378
      %p387 = scmp.lt.s32.totalorder %s14, 1
      %s388 = scalar_select %p387, %s14, 1
      %s389 = smul.addr %s388, 8
      %s390 = smul.addr %s389, 8
      %s391 = scalar_lea.vmem %s3, %s390
      // Predicated region
      $region33: #{decoder_forward.5} parent=31 // pred_check
        %p392 = pneg %p100
      $region34: #{decoder_forward.5} parent=31 // pred_check_branch
        %394 = sbr.rel (%p392) target = $region36
      $region35: #{decoder_forward.5} parent=31 // pred_region
        _
      $region36: #{decoder_forward.5} parent=31 // pred_fallthru
        _
    $region32: #{decoder_forward.5} parent=5 // pred_fallthru
      _
    %p395 = scmp.le.s32.totalorder 2, %s9
    // Predicated region
    $region37: #{decoder_forward.5} parent=5 // pred_check
      %p396 = pneg %p395
    $region38: #{decoder_forward.5} parent=5 // pred_check_branch
      %398 = sbr.rel (%p396) target = $region40
    $region39: #{decoder_forward.5} parent=5 // pred_region
      %s399 = ssub.s32 %s9, 2
      // Predicated region
      $region41: #{decoder_forward.5} parent=39 // pred_check
        %p400 = pneg %p106
      $region42: #{decoder_forward.5} parent=39 // pred_check_branch
        %402 = sbr.rel (%p400) target = $region44
      $region43: #{decoder_forward.5} parent=39 // pred_region
        %p403 = scmp.lt.s32.totalorder %s15, 1
        %s404 = scalar_select %p403, %s15, 1
        %s405 = smul.addr %s404, 8
        %s406 = smul.addr %s405, 8
        %s407 = scalar_lea.vmem %s3, %s406
      $region44: #{decoder_forward.5} parent=39 // pred_fallthru
        _
    $region40: #{decoder_forward.5} parent=5 // pred_fallthru
      _
  $region6: #{decoder_forward.5} parent=0 // loop_footer
    %s13 = sadd.s32 1, %s9
  $region7: #{decoder_forward.5} parent=0 // loop_footer_branch
    %8 = sbr.rel target = $region3
  $region8: #{decoder_forward.5} parent=0 // loop_exit
    _

// kernel: decoder_forward.6
$region0: #{decoder_forward.6}
  #allocation0 [shape = 'u32[]', space=smem, size = 0x4, offset = 0x4, fixed_abs, tag = 'smem constant byte address 0x4 - core index']
  #allocation1 [shape = 'u32[72,128]{1,0:T(1,128)}', space=vmem, size = 0x9000, scoped, tag = 'internal scratch']
  %s0 = inlined_call_operand.vmem [shape: f32[2,262,96], index: 0, kind: input, shape index: {}]
  %s1 = inlined_call_operand.vmem [shape: f32[3,96,128], index: 1, kind: input, shape index: {}]
  %s2 = inlined_call_operand.vmem [shape: f32[1,128], index: 2, kind: input, shape index: {}]
  %s3 = inlined_call_operand.vmem [shape: f32[2,232,128], index: 3, kind: output, shape index: {}]
  %s4 = sld [smem:[#allocation0]]
  $region45: #{decoder_forward.6} parent=0
    _
  %s6 = ssub.s32 1, %s4
  %s7 = scalar_select 0, %s6, %s4
  loop: start=0, step=1, limit=4
  $region2: #{decoder_forward.6} parent=0 // loop_pre_header
    _
  $region3: #{decoder_forward.6} parent=0 // loop_header
    %s9 = sphi 0, %s13
    %p10 = scmp.ge.s32.totalorder %s9, 4
    %s19 = sphi 0, %s21
    %s22 = sphi 0, %s19
    %s23 = sphi 0, %s22
    %s39 = sphi 0, %s23
    %s43 = sphi 0, %s43
    %s45 = sphi 0, %s43
    %s46 = sphi 0, %s45
    %s60 = sphi 0, %s46
    %s64 = sphi 0, %s64
    %s66 = sphi 0, %s64
    %s67 = sphi 0, %s66
    %s81 = sphi 0, %s67
    %s87 = sphi 0, %s89
    %s90 = sphi 0, %s87
    %s91 = sphi 0, %s90
    %s107 = sphi 0, %s91
  $region4: #{decoder_forward.6} parent=0 // loop_header_branch
    %12 = sbr.rel (%p10) target = $region8
  $region5: #{decoder_forward.6} parent=0 // loop_body
    %s14 = ssub.s32 %s9, 1
    %s15 = ssub.s32 %s9, 2
    %s16 = sadd.s32 %s9, 1
    %s17 = ssub.s32 %s9, %s16
    %p18 = scmp.eq.s32.totalorder %s17, 0
    %s20 = sadd.s32 %s19, 1
    %s21 = scalar_select %p18, %s19, %s20
    %p24 = pneg %p18
    %p25 = scmp.eq.s32.totalorder %s9, 1
    %p26 = por %p24, %p25
    %p27 = scmp.ne.s32.totalorder %s19, %s22
    %p28 = scmp.eq.s32.totalorder %s9, 0
    %p29 = por %p27, %p28
    %p30 = scmp.ne.s32.totalorder %s19, %s22
    %p31 = scmp.eq.s32.totalorder %s14, 1
    %p32 = por %p30, %p31
    %p33 = scmp.ne.s32.totalorder %s22, %s23
    %p34 = scmp.eq.s32.totalorder %s14, 0
    %p35 = por %p33, %p34
    %p36 = scmp.ne.s32.totalorder %s22, %s23
    %p37 = scmp.eq.s32.totalorder %s15, 1
    %p38 = por %p36, %p37
    %p40 = scmp.ne.s32.totalorder %s23, %s39
    %p41 = scmp.eq.s32.totalorder %s15, 0
    %p42 = por %p40, %p41
    %s44 = sadd.s32 %s43, 1
    %p47 = scmp.eq.s32.totalorder %s9, 1
    %p48 = scmp.ne.s32.totalorder %s43, %s45
    %p49 = scmp.eq.s32.totalorder %s9, 0
    %p50 = por %p48, %p49
    %p51 = scmp.ne.s32.totalorder %s43, %s45
    %p52 = scmp.eq.s32.totalorder %s14, 1
    %p53 = por %p51, %p52
    %p54 = scmp.ne.s32.totalorder %s45, %s46
    %p55 = scmp.eq.s32.totalorder %s14, 0
    %p56 = por %p54, %p55
    %p57 = scmp.ne.s32.totalorder %s45, %s46
    %p58 = scmp.eq.s32.totalorder %s15, 1
    %p59 = por %p57, %p58
    %p61 = scmp.ne.s32.totalorder %s46, %s60
    %p62 = scmp.eq.s32.totalorder %s15, 0
    %p63 = por %p61, %p62
    %s65 = sadd.s32 %s64, 1
    %p68 = scmp.eq.s32.totalorder %s9, 1
    %p69 = scmp.ne.s32.totalorder %s64, %s66
    %p70 = scmp.eq.s32.totalorder %s9, 0
    %p71 = por %p69, %p70
    %p72 = scmp.ne.s32.totalorder %s64, %s66
    %p73 = scmp.eq.s32.totalorder %s14, 1
    %p74 = por %p72, %p73
    %p75 = scmp.ne.s32.totalorder %s66, %s67
    %p76 = scmp.eq.s32.totalorder %s14, 0
    %p77 = por %p75, %p76
    %p78 = scmp.ne.s32.totalorder %s66, %s67
    %p79 = scmp.eq.s32.totalorder %s15, 1
    %p80 = por %p78, %p79
    %p82 = scmp.ne.s32.totalorder %s67, %s81
    %p83 = scmp.eq.s32.totalorder %s15, 0
    %p84 = por %p82, %p83
    %s85 = ssub.s32 %s9, %s16
    %p86 = scmp.eq.s32.totalorder %s85, 0
    %s88 = sadd.s32 %s87, 1
    %s89 = scalar_select %p86, %s87, %s88
    %p92 = pneg %p86
    %p93 = scmp.eq.s32.totalorder %s9, 1
    %p94 = por %p92, %p93
    %p95 = scmp.ne.s32.totalorder %s87, %s90
    %p96 = scmp.eq.s32.totalorder %s9, 0
    %p97 = por %p95, %p96
    %p98 = scmp.ne.s32.totalorder %s87, %s90
    %p99 = scmp.eq.s32.totalorder %s14, 1
    %p100 = por %p98, %p99
    %p101 = scmp.ne.s32.totalorder %s90, %s91
    %p102 = scmp.eq.s32.totalorder %s14, 0
    %p103 = por %p101, %p102
    %p104 = scmp.ne.s32.totalorder %s90, %s91
    %p105 = scmp.eq.s32.totalorder %s15, 1
    %p106 = por %p104, %p105
    %p108 = scmp.ne.s32.totalorder %s91, %s107
    %p109 = scmp.eq.s32.totalorder %s15, 0
    %p110 = por %p108, %p109
    %p111 = scmp.le.s32.totalorder 1, %s9
    %p112 = scmp.lt.s32.totalorder %s9, 3
    %p113 = pnand %p111, %p112
    %p114 = pneg %p113
    // Predicated region
    $region9: #{decoder_forward.6} parent=5 // pred_check
      _
    $region10: #{decoder_forward.6} parent=5 // pred_check_branch
      %116 = sbr.rel (%p113) target = $region12
    $region11: #{decoder_forward.6} parent=5 // pred_region
      %s117 = ssub.s32 %s9, 1
      // Predicated region
      $region13: #{decoder_forward.6} parent=11 // pred_check
        %p118 = pneg %p56
      $region14: #{decoder_forward.6} parent=11 // pred_check_branch
        %120 = sbr.rel (%p118) target = $region16
      $region15: #{decoder_forward.6} parent=11 // pred_region
        _
      $region16: #{decoder_forward.6} parent=11 // pred_fallthru
        _
      // Predicated region
      $region17: #{decoder_forward.6} parent=11 // pred_check
        %p121 = pneg %p77
      $region18: #{decoder_forward.6} parent=11 // pred_check_branch
        %123 = sbr.rel (%p121) target = $region20
      $region19: #{decoder_forward.6} parent=11 // pred_region
        _
      $region20: #{decoder_forward.6} parent=11 // pred_fallthru
        _
    $region12: #{decoder_forward.6} parent=5 // pred_fallthru
      _
    %p124 = scmp.lt.s32.totalorder %s9, 2
    // Predicated region
    $region21: #{decoder_forward.6} parent=5 // pred_check
      %p125 = pneg %p124
    $region22: #{decoder_forward.6} parent=5 // pred_check_branch
      %127 = sbr.rel (%p125) target = $region24
    $region23: #{decoder_forward.6} parent=5 // pred_region
      // Predicated region
      $region25: #{decoder_forward.6} parent=23 // pred_check
        %p128 = pneg %p29
      $region26: #{decoder_forward.6} parent=23 // pred_check_branch
        %130 = sbr.rel (%p128) target = $region28
      $region27: #{decoder_forward.6} parent=23 // pred_region
        %p131 = scmp.lt.s32.totalorder %s9, 1
        %s132 = scalar_select %p131, %s9, 1
        %s133 = smul.addr %s132, 33
        %s134 = smul.addr %s133, 8
        %s135 = scalar_lea.vmem %s0, %s134
      $region28: #{decoder_forward.6} parent=23 // pred_fallthru
        _
    $region24: #{decoder_forward.6} parent=5 // pred_fallthru
      _
    %p136 = scmp.le.s32.totalorder 1, %s9
    %p137 = scmp.lt.s32.totalorder %s9, 3
    %p138 = pnand %p136, %p137
    %p139 = pneg %p138
    // Predicated region
    $region29: #{decoder_forward.6} parent=5 // pred_check
      _
    $region30: #{decoder_forward.6} parent=5 // pred_check_branch
      %141 = sbr.rel (%p138) target = $region32
    $region31: #{decoder_forward.6} parent=5 // pred_region
      %s142 = ssub.s32 %s9, 1
      %p143 = scmp.lt.s32.totalorder %s14, 1
      %s144 = scalar_select %p143, %s14, 1
      %s145 = smul.addr %s144, 33
      %s146 = smul.addr %s145, 8
      %s147 = scalar_lea.vmem %s0, %s146
      %p148 = pneg %p35
      %p149 = pneg %p32
      %p150 = pneg %p56
      %p151 = pneg %p53
      %p152 = pneg %p77
      %p153 = pneg %p74
      %p154 = pneg %p103
      %p155 = pneg %p100
      %p156 = scmp.lt.s32.totalorder %s14, 1
      %s157 = scalar_select %p156, %s14, 1
      %s158 = smul.addr %s157, 29
      %s159 = smul.addr %s158, 8
      %s160 = scalar_lea.vmem %s3, %s159
      %p161 = scmp.lt.s32.totalorder %s14, 1
      %s162 = scalar_select %p161, %s14, 1
      %s163 = smul.addr %s162, 33
      %s164 = smul.addr %s163, 8
      %s165 = scalar_lea.vmem %s0, %s164
      %p166 = scmp.lt.s32.totalorder %s14, 1
      %s167 = scalar_select %p166, %s14, 1
      %s168 = smul.addr %s167, 29
      %s169 = smul.addr %s168, 8
      %s170 = scalar_lea.vmem %s3, %s169
      %v171 = vld [vmem:[%s2] sm:$0x1]
      %v172 = vld [vmem:[%s165] sm:$0xff]
      %v173 = vld [vmem:[%s165 + $0x8] sm:$0xff]
      %v174 = vld [vmem:[%s165 + $0x10] sm:$0xff]
      %v175 = vld [vmem:[%s165 + $0x18] sm:$0xff]
      %v176 = vld [vmem:[%s165 + $0x20] sm:$0xff]
      %v177 = vld [vmem:[%s165 + $0x28] sm:$0xff]
      %v178 = vld [vmem:[%s165 + $0x30] sm:$0xff]
      %v179 = vld [vmem:[%s165 + $0x38] sm:$0xff]
      %v180 = vld [vmem:[%s165 + $0x40] sm:$0xff]
      %v181 = vld [vmem:[%s165 + $0x48] sm:$0xff]
      %v182 = vld [vmem:[%s165 + $0x50] sm:$0xff]
      %v183 = vld [vmem:[%s165 + $0x58] sm:$0xff]
      %v184 = vld [vmem:[%s165 + $0x60] sm:$0xff]
      %v185 = vld [vmem:[%s165 + $0x68] sm:$0xff]
      %v186 = vld [vmem:[%s165 + $0x70] sm:$0xff]
      %v187 = vld [vmem:[%s165 + $0x78] sm:$0xff]
      %v188 = vld [vmem:[%s165 + $0x80] sm:$0xff]
      %v189 = vld [vmem:[%s165 + $0x88] sm:$0xff]
      %v190 = vld [vmem:[%s165 + $0x90] sm:$0xff]
      %v191 = vld [vmem:[%s165 + $0x98] sm:$0xff]
      %v192 = vld [vmem:[%s165 + $0xa0] sm:$0xff]
      %v193 = vld [vmem:[%s165 + $0xa8] sm:$0xff]
      %v194 = vld [vmem:[%s165 + $0xb0] sm:$0xff]
      %v195 = vld [vmem:[%s165 + $0xb8] sm:$0xff]
      %v196 = vld [vmem:[%s165 + $0xc0] sm:$0xff]
      %v197 = vld [vmem:[%s165 + $0xc8] sm:$0xff]
      %v198 = vld [vmem:[%s165 + $0xd0] sm:$0xff]
      %v199 = vld [vmem:[%s165 + $0xd8] sm:$0xff]
      %v200 = vld [vmem:[%s165 + $0xe0] sm:$0xff]
      %v201 = vld [vmem:[%s1] sm:$0xff]
      %v202 = vld [vmem:[%s1 + $0x8] sm:$0xff]
      %v203 = vld [vmem:[%s1 + $0x10] sm:$0xff]
      %v204 = vld [vmem:[%s1 + $0x18] sm:$0xff]
      %v205 = vld [vmem:[%s1 + $0x20] sm:$0xff]
      %v206 = vld [vmem:[%s1 + $0x28] sm:$0xff]
      %v207 = vld [vmem:[%s1 + $0x30] sm:$0xff]
      %v208 = vld [vmem:[%s1 + $0x38] sm:$0xff]
      %v209 = vld [vmem:[%s1 + $0x40] sm:$0xff]
      %v210 = vld [vmem:[%s1 + $0x48] sm:$0xff]
      %v211 = vld [vmem:[%s1 + $0x50] sm:$0xff]
      %v212 = vld [vmem:[%s1 + $0x58] sm:$0xff]
      %vm213 = vcmask 785408
      %v215 = vsel %vm213, %v172, 0
      %v218 = vsel %vm213, %v173, 0
      %v221 = vsel %vm213, %v174, 0
      %v224 = vsel %vm213, %v175, 0
      %v227 = vsel %vm213, %v176, 0
      %v230 = vsel %vm213, %v177, 0
      %v233 = vsel %vm213, %v178, 0
      %v236 = vsel %vm213, %v179, 0
      %v239 = vsel %vm213, %v180, 0
      %v242 = vsel %vm213, %v181, 0
      %v245 = vsel %vm213, %v182, 0
      %v248 = vsel %vm213, %v183, 0
      %v251 = vsel %vm213, %v184, 0
      %v254 = vsel %vm213, %v185, 0
      %v257 = vsel %vm213, %v186, 0
      %v260 = vsel %vm213, %v187, 0
      %v263 = vsel %vm213, %v188, 0
      %v266 = vsel %vm213, %v189, 0
      %v269 = vsel %vm213, %v190, 0
      %v272 = vsel %vm213, %v191, 0
      %v275 = vsel %vm213, %v192, 0
      %v278 = vsel %vm213, %v193, 0
      %v281 = vsel %vm213, %v194, 0
      %v284 = vsel %vm213, %v195, 0
      %v287 = vsel %vm213, %v196, 0
      %v290 = vsel %vm213, %v197, 0
      %v293 = vsel %vm213, %v198, 0
      %v296 = vsel %vm213, %v199, 0
      %v299 = vsel %vm213, %v200, 0
      %301 = vmatpush.msra.mxu0 0.0
      %302 = vmatpush.msra.mxu0 0.0
      %303 = vmatpush.msra.mxu0 0.0
      %304 = vmatpush.msra.mxu0 0.0
      %305 = vmatpush.msra.mxu0 %v212
      %306 = vmatpush.msra.mxu0 %v211
      %307 = vmatpush.msra.mxu0 %v210
      %308 = vmatpush.msra.mxu0 %v209
      %309 = vmatpush.msra.mxu0 %v208
      %310 = vmatpush.msra.mxu0 %v207
      %311 = vmatpush.msra.mxu0 %v206
      %312 = vmatpush.msra.mxu0 %v205
      %313 = vmatpush.msra.mxu0 %v204
      %314 = vmatpush.msra.mxu0 %v203
      %315 = vmatpush.msra.mxu0 %v202
      %316 = vmatpush.msra.mxu0 %v201
      %317 = vmatmul.f32.gmra.mxu0 %v215
      %v318 = vpop.f32.mrf.mxu0
      %v319 = vadd.f32 0.0, %v318
      %320 = vmatmul.f32.gmra.mxu0 %v218
      %v321 = vpop.f32.mrf.mxu0
      %v322 = vadd.f32 0.0, %v321
      %323 = vmatmul.f32.gmra.mxu0 %v221
      %v324 = vpop.f32.mrf.mxu0
      %v325 = vadd.f32 0.0, %v324
      %326 = vmatmul.f32.gmra.mxu0 %v224
      %v327 = vpop.f32.mrf.mxu0
      %v328 = vadd.f32 0.0, %v327
      %329 = vmatmul.f32.gmra.mxu0 %v227
      %v330 = vpop.f32.mrf.mxu0
      %v331 = vadd.f32 0.0, %v330
      %332 = vmatmul.f32.gmra.mxu0 %v230
      %v333 = vpop.f32.mrf.mxu0
      %v334 = vadd.f32 0.0, %v333
      %335 = vmatmul.f32.gmra.mxu0 %v233
      %v336 = vpop.f32.mrf.mxu0
      %v337 = vadd.f32 0.0, %v336
      %338 = vmatmul.f32.gmra.mxu0 %v236
      %v339 = vpop.f32.mrf.mxu0
      %v340 = vadd.f32 0.0, %v339
      %341 = vmatmul.f32.gmra.mxu0 %v239
      %v342 = vpop.f32.mrf.mxu0
      %v343 = vadd.f32 0.0, %v342
      %344 = vmatmul.f32.gmra.mxu0 %v242
      %v345 = vpop.f32.mrf.mxu0
      %v346 = vadd.f32 0.0, %v345
      %347 = vmatmul.f32.gmra.mxu0 %v245
      %v348 = vpop.f32.mrf.mxu0
      %v349 = vadd.f32 0.0, %v348
      %350 = vmatmul.f32.gmra.mxu0 %v248
      %v351 = vpop.f32.mrf.mxu0
      %v352 = vadd.f32 0.0, %v351
      %353 = vmatmul.f32.gmra.mxu0 %v251
      %v354 = vpop.f32.mrf.mxu0
      %v355 = vadd.f32 0.0, %v354
      %356 = vmatmul.f32.gmra.mxu0 %v254
      %v357 = vpop.f32.mrf.mxu0
      %v358 = vadd.f32 0.0, %v357
      %359 = vmatmul.f32.gmra.mxu0 %v257
      %v360 = vpop.f32.mrf.mxu0
      %v361 = vadd.f32 0.0, %v360
      %362 = vmatmul.f32.gmra.mxu0 %v260
      %v363 = vpop.f32.mrf.mxu0
      %v364 = vadd.f32 0.0, %v363
      %365 = vmatmul.f32.gmra.mxu0 %v263
      %v366 = vpop.f32.mrf.mxu0
      %v367 = vadd.f32 0.0, %v366
      %368 = vmatmul.f32.gmra.mxu0 %v266
      %v369 = vpop.f32.mrf.mxu0
      %v370 = vadd.f32 0.0, %v369
      %371 = vmatmul.f32.gmra.mxu0 %v269
      %v372 = vpop.f32.mrf.mxu0
      %v373 = vadd.f32 0.0, %v372
      %374 = vmatmul.f32.gmra.mxu0 %v272
      %v375 = vpop.f32.mrf.mxu0
      %v376 = vadd.f32 0.0, %v375
      %377 = vmatmul.f32.gmra.mxu0 %v275
      %v378 = vpop.f32.mrf.mxu0
      %v379 = vadd.f32 0.0, %v378
      %380 = vmatmul.f32.gmra.mxu0 %v278
      %v381 = vpop.f32.mrf.mxu0
      %v382 = vadd.f32 0.0, %v381
      %383 = vmatmul.f32.gmra.mxu0 %v281
      %v384 = vpop.f32.mrf.mxu0
      %v385 = vadd.f32 0.0, %v384
      %386 = vmatmul.f32.gmra.mxu0 %v284
      %v387 = vpop.f32.mrf.mxu0
      %v388 = vadd.f32 0.0, %v387
      %389 = vmatmul.f32.gmra.mxu0 %v287
      %v390 = vpop.f32.mrf.mxu0
      %v391 = vadd.f32 0.0, %v390
      %392 = vmatmul.f32.gmra.mxu0 %v290
      %v393 = vpop.f32.mrf.mxu0
      %v394 = vadd.f32 0.0, %v393
      %395 = vmatmul.f32.gmra.mxu0 %v293
      %v396 = vpop.f32.mrf.mxu0
      %v397 = vadd.f32 0.0, %v396
      %398 = vmatmul.f32.gmra.mxu0 %v296
      %v399 = vpop.f32.mrf.mxu0
      %v400 = vadd.f32 0.0, %v399
      %401 = vmatmul.f32.gmra.mxu0 %v299
      %v402 = vpop.f32.mrf.mxu0
      %v403 = vadd.f32 0.0, %v402
      %404 = vdwg.mxu0
      %v406 = vperm.slane %v171, 0
      %v408 = vadd.f32 %v406, %v319
      %v409 = vadd.f32 %v406, %v322
      %v410 = vadd.f32 %v406, %v325
      %v411 = vadd.f32 %v406, %v328
      %v412 = vadd.f32 %v406, %v331
      %v413 = vadd.f32 %v406, %v334
      %v414 = vadd.f32 %v406, %v337
      %v415 = vadd.f32 %v406, %v340
      %v416 = vadd.f32 %v406, %v343
      %v417 = vadd.f32 %v406, %v346
      %v418 = vadd.f32 %v406, %v349
      %v419 = vadd.f32 %v406, %v352
      %v420 = vadd.f32 %v406, %v355
      %v421 = vadd.f32 %v406, %v358
      %v422 = vadd.f32 %v406, %v361
      %v423 = vadd.f32 %v406, %v364
      %v424 = vadd.f32 %v406, %v367
      %v425 = vadd.f32 %v406, %v370
      %v426 = vadd.f32 %v406, %v373
      %v427 = vadd.f32 %v406, %v376
      %v428 = vadd.f32 %v406, %v379
      %v429 = vadd.f32 %v406, %v382
      %v430 = vadd.f32 %v406, %v385
      %v431 = vadd.f32 %v406, %v388
      %v432 = vadd.f32 %v406, %v391
      %v433 = vadd.f32 %v406, %v394
      %v434 = vadd.f32 %v406, %v397
      %v435 = vadd.f32 %v406, %v400
      %v436 = vadd.f32 %v406, %v403
      %437 = vst [vmem:[%s170] sm:$0xff] %v408
      %438 = vst [vmem:[%s170 + $0x8] sm:$0xff] %v409
      %439 = vst [vmem:[%s170 + $0x10] sm:$0xff] %v410
      %440 = vst [vmem:[%s170 + $0x18] sm:$0xff] %v411
      %441 = vst [vmem:[%s170 + $0x20] sm:$0xff] %v412
      %442 = vst [vmem:[%s170 + $0x28] sm:$0xff] %v413
      %443 = vst [vmem:[%s170 + $0x30] sm:$0xff] %v414
      %444 = vst [vmem:[%s170 + $0x38] sm:$0xff] %v415
      %445 = vst [vmem:[%s170 + $0x40] sm:$0xff] %v416
      %446 = vst [vmem:[%s170 + $0x48] sm:$0xff] %v417
      %447 = vst [vmem:[%s170 + $0x50] sm:$0xff] %v418
      %448 = vst [vmem:[%s170 + $0x58] sm:$0xff] %v419
      %449 = vst [vmem:[%s170 + $0x60] sm:$0xff] %v420
      %450 = vst [vmem:[%s170 + $0x68] sm:$0xff] %v421
      %451 = vst [vmem:[%s170 + $0x70] sm:$0xff] %v422
      %452 = vst [vmem:[%s170 + $0x78] sm:$0xff] %v423
      %453 = vst [vmem:[%s170 + $0x80] sm:$0xff] %v424
      %454 = vst [vmem:[%s170 + $0x88] sm:$0xff] %v425
      %455 = vst [vmem:[%s170 + $0x90] sm:$0xff] %v426
      %456 = vst [vmem:[%s170 + $0x98] sm:$0xff] %v427
      %457 = vst [vmem:[%s170 + $0xa0] sm:$0xff] %v428
      %458 = vst [vmem:[%s170 + $0xa8] sm:$0xff] %v429
      %459 = vst [vmem:[%s170 + $0xb0] sm:$0xff] %v430
      %460 = vst [vmem:[%s170 + $0xb8] sm:$0xff] %v431
      %461 = vst [vmem:[%s170 + $0xc0] sm:$0xff] %v432
      %462 = vst [vmem:[%s170 + $0xc8] sm:$0xff] %v433
      %463 = vst [vmem:[%s170 + $0xd0] sm:$0xff] %v434
      %464 = vst [vmem:[%s170 + $0xd8] sm:$0xff] %v435
      %465 = vst [vmem:[%s170 + $0xe0] sm:$0xff] %v436
      %v466 = vld [vmem:[%s170] sm:$0xff]
      %v467 = vld [vmem:[%s170 + $0x8] sm:$0xff]
      %v468 = vld [vmem:[%s170 + $0x10] sm:$0xff]
      %v469 = vld [vmem:[%s170 + $0x18] sm:$0xff]
      %v470 = vld [vmem:[%s170 + $0x20] sm:$0xff]
      %v471 = vld [vmem:[%s170 + $0x28] sm:$0xff]
      %v472 = vld [vmem:[%s170 + $0x30] sm:$0xff]
      %v473 = vld [vmem:[%s170 + $0x38] sm:$0xff]
      %v474 = vld [vmem:[%s170 + $0x40] sm:$0xff]
      %v475 = vld [vmem:[%s170 + $0x48] sm:$0xff]
      %v476 = vld [vmem:[%s170 + $0x50] sm:$0xff]
      %v477 = vld [vmem:[%s170 + $0x58] sm:$0xff]
      %v478 = vld [vmem:[%s170 + $0x60] sm:$0xff]
      %v479 = vld [vmem:[%s170 + $0x68] sm:$0xff]
      %v480 = vld [vmem:[%s170 + $0x70] sm:$0xff]
      %v481 = vld [vmem:[%s170 + $0x78] sm:$0xff]
      %v482 = vld [vmem:[%s170 + $0x80] sm:$0xff]
      %v483 = vld [vmem:[%s170 + $0x88] sm:$0xff]
      %v484 = vld [vmem:[%s170 + $0x90] sm:$0xff]
      %v485 = vld [vmem:[%s170 + $0x98] sm:$0xff]
      %v486 = vld [vmem:[%s170 + $0xa0] sm:$0xff]
      %v487 = vld [vmem:[%s170 + $0xa8] sm:$0xff]
      %v488 = vld [vmem:[%s170 + $0xb0] sm:$0xff]
      %v489 = vld [vmem:[%s170 + $0xb8] sm:$0xff]
      %v490 = vld [vmem:[%s170 + $0xc0] sm:$0xff]
      %v491 = vld [vmem:[%s170 + $0xc8] sm:$0xff]
      %v492 = vld [vmem:[%s170 + $0xd0] sm:$0xff]
      %v493 = vld [vmem:[%s170 + $0xd8] sm:$0xff]
      %v494 = vld [vmem:[%s170 + $0xe0] sm:$0xff]
      %v495 = vld [vmem:[%s165 + $0xf] sm:$0xff]
      %v496 = vld [vmem:[%s165 + $0x17] sm:$0xff]
      %v497 = vld [vmem:[%s165 + $0x1f] sm:$0xff]
      %v498 = vld [vmem:[%s165 + $0x27] sm:$0xff]
      %v499 = vld [vmem:[%s165 + $0x2f] sm:$0xff]
      %v500 = vld [vmem:[%s165 + $0x37] sm:$0xff]
      %v501 = vld [vmem:[%s165 + $0x3f] sm:$0xff]
      %v502 = vld [vmem:[%s165 + $0x47] sm:$0xff]
      %v503 = vld [vmem:[%s165 + $0x4f] sm:$0xff]
      %v504 = vld [vmem:[%s165 + $0x57] sm:$0xff]
      %v505 = vld [vmem:[%s165 + $0x5f] sm:$0xff]
      %v506 = vld [vmem:[%s165 + $0x67] sm:$0xff]
      %v507 = vld [vmem:[%s165 + $0x6f] sm:$0xff]
      %v508 = vld [vmem:[%s165 + $0x77] sm:$0xff]
      %v509 = vld [vmem:[%s165 + $0x7f] sm:$0xff]
      %v510 = vld [vmem:[%s165 + $0x87] sm:$0xff]
      %v511 = vld [vmem:[%s165 + $0x8f] sm:$0xff]
      %v512 = vld [vmem:[%s165 + $0x97] sm:$0xff]
      %v513 = vld [vmem:[%s165 + $0x9f] sm:$0xff]
      %v514 = vld [vmem:[%s165 + $0xa7] sm:$0xff]
      %v515 = vld [vmem:[%s165 + $0xaf] sm:$0xff]
      %v516 = vld [vmem:[%s165 + $0xb7] sm:$0xff]
      %v517 = vld [vmem:[%s165 + $0xbf] sm:$0xff]
      %v518 = vld [vmem:[%s165 + $0xc7] sm:$0xff]
      %v519 = vld [vmem:[%s165 + $0xcf] sm:$0xff]
      %v520 = vld [vmem:[%s165 + $0xd7] sm:$0xff]
      %v521 = vld [vmem:[%s165 + $0xdf] sm:$0xff]
      %v522 = vld [vmem:[%s165 + $0xe7] sm:$0xff]
      %v523 = vld [vmem:[%s165 + $0xef] sm:$0xff]
      %s524 = scalar_lea.vmem %s1, 96
      %v525 = vld [vmem:[%s524] sm:$0xff]
      %v526 = vld [vmem:[%s524 + $0x8] sm:$0xff]
      %v527 = vld [vmem:[%s524 + $0x10] sm:$0xff]
      %v528 = vld [vmem:[%s524 + $0x18] sm:$0xff]
      %v529 = vld [vmem:[%s524 + $0x20] sm:$0xff]
      %v530 = vld [vmem:[%s524 + $0x28] sm:$0xff]
      %v531 = vld [vmem:[%s524 + $0x30] sm:$0xff]
      %v532 = vld [vmem:[%s524 + $0x38] sm:$0xff]
      %v533 = vld [vmem:[%s524 + $0x40] sm:$0xff]
      %v534 = vld [vmem:[%s524 + $0x48] sm:$0xff]
      %v535 = vld [vmem:[%s524 + $0x50] sm:$0xff]
      %v536 = vld [vmem:[%s524 + $0x58] sm:$0xff]
      %v538 = vsel %vm213, %v495, 0
      %v541 = vsel %vm213, %v496, 0
      %v544 = vsel %vm213, %v497, 0
      %v547 = vsel %vm213, %v498, 0
      %v550 = vsel %vm213, %v499, 0
      %v553 = vsel %vm213, %v500, 0
      %v556 = vsel %vm213, %v501, 0
      %v559 = vsel %vm213, %v502, 0
      %v562 = vsel %vm213, %v503, 0
      %v565 = vsel %vm213, %v504, 0
      %v568 = vsel %vm213, %v505, 0
      %v571 = vsel %vm213, %v506, 0
      %v574 = vsel %vm213, %v507, 0
      %v577 = vsel %vm213, %v508, 0
      %v580 = vsel %vm213, %v509, 0
      %v583 = vsel %vm213, %v510, 0
      %v586 = vsel %vm213, %v511, 0
      %v589 = vsel %vm213, %v512, 0
      %v592 = vsel %vm213, %v513, 0
      %v595 = vsel %vm213, %v514, 0
      %v598 = vsel %vm213, %v515, 0
      %v601 = vsel %vm213, %v516, 0
      %v604 = vsel %vm213, %v517, 0
      %v607 = vsel %vm213, %v518, 0
      %v610 = vsel %vm213, %v519, 0
      %v613 = vsel %vm213, %v520, 0
      %v616 = vsel %vm213, %v521, 0
      %v619 = vsel %vm213, %v522, 0
      %v622 = vsel %vm213, %v523, 0
      %624 = vmatpush.msra.mxu0 0.0
      %625 = vmatpush.msra.mxu0 0.0
      %626 = vmatpush.msra.mxu0 0.0
      %627 = vmatpush.msra.mxu0 0.0
      %628 = vmatpush.msra.mxu0 %v536
      %629 = vmatpush.msra.mxu0 %v535
      %630 = vmatpush.msra.mxu0 %v534
      %631 = vmatpush.msra.mxu0 %v533
      %632 = vmatpush.msra.mxu0 %v532
      %633 = vmatpush.msra.mxu0 %v531
      %634 = vmatpush.msra.mxu0 %v530
      %635 = vmatpush.msra.mxu0 %v529
      %636 = vmatpush.msra.mxu0 %v528
      %637 = vmatpush.msra.mxu0 %v527
      %638 = vmatpush.msra.mxu0 %v526
      %639 = vmatpush.msra.mxu0 %v525
      %640 = vmatmul.f32.gmra.mxu0 %v538
      %v641 = vpop.f32.mrf.mxu0
      %v642 = vadd.f32 0.0, %v641
      %643 = vmatmul.f32.gmra.mxu0 %v541
      %v644 = vpop.f32.mrf.mxu0
      %v645 = vadd.f32 0.0, %v644
      %646 = vmatmul.f32.gmra.mxu0 %v544
      %v647 = vpop.f32.mrf.mxu0
      %v648 = vadd.f32 0.0, %v647
      %649 = vmatmul.f32.gmra.mxu0 %v547
      %v650 = vpop.f32.mrf.mxu0
      %v651 = vadd.f32 0.0, %v650
      %652 = vmatmul.f32.gmra.mxu0 %v550
      %v653 = vpop.f32.mrf.mxu0
      %v654 = vadd.f32 0.0, %v653
      %655 = vmatmul.f32.gmra.mxu0 %v553
      %v656 = vpop.f32.mrf.mxu0
      %v657 = vadd.f32 0.0, %v656
      %658 = vmatmul.f32.gmra.mxu0 %v556
      %v659 = vpop.f32.mrf.mxu0
      %v660 = vadd.f32 0.0, %v659
      %661 = vmatmul.f32.gmra.mxu0 %v559
      %v662 = vpop.f32.mrf.mxu0
      %v663 = vadd.f32 0.0, %v662
      %664 = vmatmul.f32.gmra.mxu0 %v562
      %v665 = vpop.f32.mrf.mxu0
      %v666 = vadd.f32 0.0, %v665
      %667 = vmatmul.f32.gmra.mxu0 %v565
      %v668 = vpop.f32.mrf.mxu0
      %v669 = vadd.f32 0.0, %v668
      %670 = vmatmul.f32.gmra.mxu0 %v568
      %v671 = vpop.f32.mrf.mxu0
      %v672 = vadd.f32 0.0, %v671
      %673 = vmatmul.f32.gmra.mxu0 %v571
      %v674 = vpop.f32.mrf.mxu0
      %v675 = vadd.f32 0.0, %v674
      %676 = vmatmul.f32.gmra.mxu0 %v574
      %v677 = vpop.f32.mrf.mxu0
      %v678 = vadd.f32 0.0, %v677
      %679 = vmatmul.f32.gmra.mxu0 %v577
      %v680 = vpop.f32.mrf.mxu0
      %v681 = vadd.f32 0.0, %v680
      %682 = vmatmul.f32.gmra.mxu0 %v580
      %v683 = vpop.f32.mrf.mxu0
      %v684 = vadd.f32 0.0, %v683
      %685 = vmatmul.f32.gmra.mxu0 %v583
      %v686 = vpop.f32.mrf.mxu0
      %v687 = vadd.f32 0.0, %v686
      %688 = vmatmul.f32.gmra.mxu0 %v586
      %v689 = vpop.f32.mrf.mxu0
      %v690 = vadd.f32 0.0, %v689
      %691 = vmatmul.f32.gmra.mxu0 %v589
      %v692 = vpop.f32.mrf.mxu0
      %v693 = vadd.f32 0.0, %v692
      %694 = vmatmul.f32.gmra.mxu0 %v592
      %v695 = vpop.f32.mrf.mxu0
      %v696 = vadd.f32 0.0, %v695
      %697 = vmatmul.f32.gmra.mxu0 %v595
      %v698 = vpop.f32.mrf.mxu0
      %v699 = vadd.f32 0.0, %v698
      %700 = vmatmul.f32.gmra.mxu0 %v598
      %v701 = vpop.f32.mrf.mxu0
      %v702 = vadd.f32 0.0, %v701
      %703 = vmatmul.f32.gmra.mxu0 %v601
      %v704 = vpop.f32.mrf.mxu0
      %v705 = vadd.f32 0.0, %v704
      %706 = vmatmul.f32.gmra.mxu0 %v604
      %v707 = vpop.f32.mrf.mxu0
      %v708 = vadd.f32 0.0, %v707
      %709 = vmatmul.f32.gmra.mxu0 %v607
      %v710 = vpop.f32.mrf.mxu0
      %v711 = vadd.f32 0.0, %v710
      %712 = vmatmul.f32.gmra.mxu0 %v610
      %v713 = vpop.f32.mrf.mxu0
      %v714 = vadd.f32 0.0, %v713
      %715 = vmatmul.f32.gmra.mxu0 %v613
      %v716 = vpop.f32.mrf.mxu0
      %v717 = vadd.f32 0.0, %v716
      %718 = vmatmul.f32.gmra.mxu0 %v616
      %v719 = vpop.f32.mrf.mxu0
      %v720 = vadd.f32 0.0, %v719
      %721 = vmatmul.f32.gmra.mxu0 %v619
      %v722 = vpop.f32.mrf.mxu0
      %v723 = vadd.f32 0.0, %v722
      %724 = vmatmul.f32.gmra.mxu0 %v622
      %v725 = vpop.f32.mrf.mxu0
      %v726 = vadd.f32 0.0, %v725
      %727 = vdwg.mxu0
      %v728 = vadd.f32 %v466, %v642
      %v729 = vadd.f32 %v467, %v645
      %v730 = vadd.f32 %v468, %v648
      %v731 = vadd.f32 %v469, %v651
      %v732 = vadd.f32 %v470, %v654
      %v733 = vadd.f32 %v471, %v657
      %v734 = vadd.f32 %v472, %v660
      %v735 = vadd.f32 %v473, %v663
      %v736 = vadd.f32 %v474, %v666
      %v737 = vadd.f32 %v475, %v669
      %v738 = vadd.f32 %v476, %v672
      %v739 = vadd.f32 %v477, %v675
      %v740 = vadd.f32 %v478, %v678
      %v741 = vadd.f32 %v479, %v681
      %v742 = vadd.f32 %v480, %v684
      %v743 = vadd.f32 %v481, %v687
      %v744 = vadd.f32 %v482, %v690
      %v745 = vadd.f32 %v483, %v693
      %v746 = vadd.f32 %v484, %v696
      %v747 = vadd.f32 %v485, %v699
      %v748 = vadd.f32 %v486, %v702
      %v749 = vadd.f32 %v487, %v705
      %v750 = vadd.f32 %v488, %v708
      %v751 = vadd.f32 %v489, %v711
      %v752 = vadd.f32 %v490, %v714
      %v753 = vadd.f32 %v491, %v717
      %v754 = vadd.f32 %v492, %v720
      %v755 = vadd.f32 %v493, %v723
      %v756 = vadd.f32 %v494, %v726
      %757 = vst [vmem:[%s170] sm:$0xff] %v728
      %758 = vst [vmem:[%s170 + $0x8] sm:$0xff] %v729
      %759 = vst [vmem:[%s170 + $0x10] sm:$0xff] %v730
      %760 = vst [vmem:[%s170 + $0x18] sm:$0xff] %v731
      %761 = vst [vmem:[%s170 + $0x20] sm:$0xff] %v732
      %762 = vst [vmem:[%s170 + $0x28] sm:$0xff] %v733
      %763 = vst [vmem:[%s170 + $0x30] sm:$0xff] %v734
      %764 = vst [vmem:[%s170 + $0x38] sm:$0xff] %v735
      %765 = vst [vmem:[%s170 + $0x40] sm:$0xff] %v736
      %766 = vst [vmem:[%s170 + $0x48] sm:$0xff] %v737
      %767 = vst [vmem:[%s170 + $0x50] sm:$0xff] %v738
      %768 = vst [vmem:[%s170 + $0x58] sm:$0xff] %v739
      %769 = vst [vmem:[%s170 + $0x60] sm:$0xff] %v740
      %770 = vst [vmem:[%s170 + $0x68] sm:$0xff] %v741
      %771 = vst [vmem:[%s170 + $0x70] sm:$0xff] %v742
      %772 = vst [vmem:[%s170 + $0x78] sm:$0xff] %v743
      %773 = vst [vmem:[%s170 + $0x80] sm:$0xff] %v744
      %774 = vst [vmem:[%s170 + $0x88] sm:$0xff] %v745
      %775 = vst [vmem:[%s170 + $0x90] sm:$0xff] %v746
      %776 = vst [vmem:[%s170 + $0x98] sm:$0xff] %v747
      %777 = vst [vmem:[%s170 + $0xa0] sm:$0xff] %v748
      %778 = vst [vmem:[%s170 + $0xa8] sm:$0xff] %v749
      %779 = vst [vmem:[%s170 + $0xb0] sm:$0xff] %v750
      %780 = vst [vmem:[%s170 + $0xb8] sm:$0xff] %v751
      %781 = vst [vmem:[%s170 + $0xc0] sm:$0xff] %v752
      %782 = vst [vmem:[%s170 + $0xc8] sm:$0xff] %v753
      %783 = vst [vmem:[%s170 + $0xd0] sm:$0xff] %v754
      %784 = vst [vmem:[%s170 + $0xd8] sm:$0xff] %v755
      %785 = vst [vmem:[%s170 + $0xe0] sm:$0xff] %v756
      %v786 = vld [vmem:[%s170] sm:$0xff]
      %v787 = vld [vmem:[%s170 + $0x8] sm:$0xff]
      %v788 = vld [vmem:[%s170 + $0x10] sm:$0xff]
      %v789 = vld [vmem:[%s170 + $0x18] sm:$0xff]
      %v790 = vld [vmem:[%s170 + $0x20] sm:$0xff]
      %v791 = vld [vmem:[%s170 + $0x28] sm:$0xff]
      %v792 = vld [vmem:[%s170 + $0x30] sm:$0xff]
      %v793 = vld [vmem:[%s170 + $0x38] sm:$0xff]
      %v794 = vld [vmem:[%s170 + $0x40] sm:$0xff]
      %v795 = vld [vmem:[%s170 + $0x48] sm:$0xff]
      %v796 = vld [vmem:[%s170 + $0x50] sm:$0xff]
      %v797 = vld [vmem:[%s170 + $0x58] sm:$0xff]
      %v798 = vld [vmem:[%s170 + $0x60] sm:$0xff]
      %v799 = vld [vmem:[%s170 + $0x68] sm:$0xff]
      %v800 = vld [vmem:[%s170 + $0x70] sm:$0xff]
      %v801 = vld [vmem:[%s170 + $0x78] sm:$0xff]
      %v802 = vld [vmem:[%s170 + $0x80] sm:$0xff]
      %v803 = vld [vmem:[%s170 + $0x88] sm:$0xff]
      %v804 = vld [vmem:[%s170 + $0x90] sm:$0xff]
      %v805 = vld [vmem:[%s170 + $0x98] sm:$0xff]
      %v806 = vld [vmem:[%s170 + $0xa0] sm:$0xff]
      %v807 = vld [vmem:[%s170 + $0xa8] sm:$0xff]
      %v808 = vld [vmem:[%s170 + $0xb0] sm:$0xff]
      %v809 = vld [vmem:[%s170 + $0xb8] sm:$0xff]
      %v810 = vld [vmem:[%s170 + $0xc0] sm:$0xff]
      %v811 = vld [vmem:[%s170 + $0xc8] sm:$0xff]
      %v812 = vld [vmem:[%s170 + $0xd0] sm:$0xff]
      %v813 = vld [vmem:[%s170 + $0xd8] sm:$0xff]
      %v814 = vld [vmem:[%s170 + $0xe0] sm:$0xff]
      %v815 = vld [vmem:[%s165 + $0x1e] sm:$0xff]
      %v816 = vld [vmem:[%s165 + $0x26] sm:$0xff]
      %v817 = vld [vmem:[%s165 + $0x2e] sm:$0xff]
      %v818 = vld [vmem:[%s165 + $0x36] sm:$0xff]
      %v819 = vld [vmem:[%s165 + $0x3e] sm:$0xff]
      %v820 = vld [vmem:[%s165 + $0x46] sm:$0xff]
      %v821 = vld [vmem:[%s165 + $0x4e] sm:$0xff]
      %v822 = vld [vmem:[%s165 + $0x56] sm:$0xff]
      %v823 = vld [vmem:[%s165 + $0x5e] sm:$0xff]
      %v824 = vld [vmem:[%s165 + $0x66] sm:$0xff]
      %v825 = vld [vmem:[%s165 + $0x6e] sm:$0xff]
      %v826 = vld [vmem:[%s165 + $0x76] sm:$0xff]
      %v827 = vld [vmem:[%s165 + $0x7e] sm:$0xff]
      %v828 = vld [vmem:[%s165 + $0x86] sm:$0xff]
      %v829 = vld [vmem:[%s165 + $0x8e] sm:$0xff]
      %v830 = vld [vmem:[%s165 + $0x96] sm:$0xff]
      %v831 = vld [vmem:[%s165 + $0x9e] sm:$0xff]
      %v832 = vld [vmem:[%s165 + $0xa6] sm:$0xff]
      %v833 = vld [vmem:[%s165 + $0xae] sm:$0xff]
      %v834 = vld [vmem:[%s165 + $0xb6] sm:$0xff]
      %v835 = vld [vmem:[%s165 + $0xbe] sm:$0xff]
      %v836 = vld [vmem:[%s165 + $0xc6] sm:$0xff]
      %v837 = vld [vmem:[%s165 + $0xce] sm:$0xff]
      %v838 = vld [vmem:[%s165 + $0xd6] sm:$0xff]
      %v839 = vld [vmem:[%s165 + $0xde] sm:$0xff]
      %v840 = vld [vmem:[%s165 + $0xe6] sm:$0xff]
      %v841 = vld [vmem:[%s165 + $0xee] sm:$0xff]
      %v842 = vld [vmem:[%s165 + $0xf6] sm:$0xff]
      %v843 = vld [vmem:[%s165 + $0xfe] sm:$0xff]
      %s844 = scalar_lea.vmem %s1, 192
      %v845 = vld [vmem:[%s844] sm:$0xff]
      %v846 = vld [vmem:[%s844 + $0x8] sm:$0xff]
      %v847 = vld [vmem:[%s844 + $0x10] sm:$0xff]
      %v848 = vld [vmem:[%s844 + $0x18] sm:$0xff]
      %v849 = vld [vmem:[%s844 + $0x20] sm:$0xff]
      %v850 = vld [vmem:[%s844 + $0x28] sm:$0xff]
      %v851 = vld [vmem:[%s844 + $0x30] sm:$0xff]
      %v852 = vld [vmem:[%s844 + $0x38] sm:$0xff]
      %v853 = vld [vmem:[%s844 + $0x40] sm:$0xff]
      %v854 = vld [vmem:[%s844 + $0x48] sm:$0xff]
      %v855 = vld [vmem:[%s844 + $0x50] sm:$0xff]
      %v856 = vld [vmem:[%s844 + $0x58] sm:$0xff]
      %v858 = vsel %vm213, %v815, 0
      %v861 = vsel %vm213, %v816, 0
      %v864 = vsel %vm213, %v817, 0
      %v867 = vsel %vm213, %v818, 0
      %v870 = vsel %vm213, %v819, 0
      %v873 = vsel %vm213, %v820, 0
      %v876 = vsel %vm213, %v821, 0
      %v879 = vsel %vm213, %v822, 0
      %v882 = vsel %vm213, %v823, 0
      %v885 = vsel %vm213, %v824, 0
      %v888 = vsel %vm213, %v825, 0
      %v891 = vsel %vm213, %v826, 0
      %v894 = vsel %vm213, %v827, 0
      %v897 = vsel %vm213, %v828, 0
      %v900 = vsel %vm213, %v829, 0
      %v903 = vsel %vm213, %v830, 0
      %v906 = vsel %vm213, %v831, 0
      %v909 = vsel %vm213, %v832, 0
      %v912 = vsel %vm213, %v833, 0
      %v915 = vsel %vm213, %v834, 0
      %v918 = vsel %vm213, %v835, 0
      %v921 = vsel %vm213, %v836, 0
      %v924 = vsel %vm213, %v837, 0
      %v927 = vsel %vm213, %v838, 0
      %v930 = vsel %vm213, %v839, 0
      %v933 = vsel %vm213, %v840, 0
      %v936 = vsel %vm213, %v841, 0
      %v939 = vsel %vm213, %v842, 0
      %v942 = vsel %vm213, %v843, 0
      %944 = vmatpush.msra.mxu0 0.0
      %945 = vmatpush.msra.mxu0 0.0
      %946 = vmatpush.msra.mxu0 0.0
      %947 = vmatpush.msra.mxu0 0.0
      %948 = vmatpush.msra.mxu0 %v856
      %949 = vmatpush.msra.mxu0 %v855
      %950 = vmatpush.msra.mxu0 %v854
      %951 = vmatpush.msra.mxu0 %v853
      %952 = vmatpush.msra.mxu0 %v852
      %953 = vmatpush.msra.mxu0 %v851
      %954 = vmatpush.msra.mxu0 %v850
      %955 = vmatpush.msra.mxu0 %v849
      %956 = vmatpush.msra.mxu0 %v848
      %957 = vmatpush.msra.mxu0 %v847
      %958 = vmatpush.msra.mxu0 %v846
      %959 = vmatpush.msra.mxu0 %v845
      %960 = vmatmul.f32.gmra.mxu0 %v858
      %v961 = vpop.f32.mrf.mxu0
      %v962 = vadd.f32 0.0, %v961
      %963 = vmatmul.f32.gmra.mxu0 %v861
      %v964 = vpop.f32.mrf.mxu0
      %v965 = vadd.f32 0.0, %v964
      %966 = vmatmul.f32.gmra.mxu0 %v864
      %v967 = vpop.f32.mrf.mxu0
      %v968 = vadd.f32 0.0, %v967
      %969 = vmatmul.f32.gmra.mxu0 %v867
      %v970 = vpop.f32.mrf.mxu0
      %v971 = vadd.f32 0.0, %v970
      %972 = vmatmul.f32.gmra.mxu0 %v870
      %v973 = vpop.f32.mrf.mxu0
      %v974 = vadd.f32 0.0, %v973
      %975 = vmatmul.f32.gmra.mxu0 %v873
      %v976 = vpop.f32.mrf.mxu0
      %v977 = vadd.f32 0.0, %v976
      %978 = vmatmul.f32.gmra.mxu0 %v876
      %v979 = vpop.f32.mrf.mxu0
      %v980 = vadd.f32 0.0, %v979
      %981 = vmatmul.f32.gmra.mxu0 %v879
      %v982 = vpop.f32.mrf.mxu0
      %v983 = vadd.f32 0.0, %v982
      %984 = vmatmul.f32.gmra.mxu0 %v882
      %v985 = vpop.f32.mrf.mxu0
      %v986 = vadd.f32 0.0, %v985
      %987 = vmatmul.f32.gmra.mxu0 %v885
      %v988 = vpop.f32.mrf.mxu0
      %v989 = vadd.f32 0.0, %v988
      %990 = vmatmul.f32.gmra.mxu0 %v888
      %v991 = vpop.f32.mrf.mxu0
      %v992 = vadd.f32 0.0, %v991
      %993 = vmatmul.f32.gmra.mxu0 %v891
      %v994 = vpop.f32.mrf.mxu0
      %v995 = vadd.f32 0.0, %v994
      %996 = vmatmul.f32.gmra.mxu0 %v894
      %v997 = vpop.f32.mrf.mxu0
      %v998 = vadd.f32 0.0, %v997
      %999 = vmatmul.f32.gmra.mxu0 %v897
      %v1000 = vpop.f32.mrf.mxu0
      %v1001 = vadd.f32 0.0, %v1000
      %1002 = vmatmul.f32.gmra.mxu0 %v900
      %v1003 = vpop.f32.mrf.mxu0
      %v1004 = vadd.f32 0.0, %v1003
      %1005 = vmatmul.f32.gmra.mxu0 %v903
      %v1006 = vpop.f32.mrf.mxu0
      %v1007 = vadd.f32 0.0, %v1006
      %1008 = vmatmul.f32.gmra.mxu0 %v906
      %v1009 = vpop.f32.mrf.mxu0
      %v1010 = vadd.f32 0.0, %v1009
      %1011 = vmatmul.f32.gmra.mxu0 %v909
      %v1012 = vpop.f32.mrf.mxu0
      %v1013 = vadd.f32 0.0, %v1012
      %1014 = vmatmul.f32.gmra.mxu0 %v912
      %v1015 = vpop.f32.mrf.mxu0
      %v1016 = vadd.f32 0.0, %v1015
      %1017 = vmatmul.f32.gmra.mxu0 %v915
      %v1018 = vpop.f32.mrf.mxu0
      %v1019 = vadd.f32 0.0, %v1018
      %1020 = vmatmul.f32.gmra.mxu0 %v918
      %v1021 = vpop.f32.mrf.mxu0
      %v1022 = vadd.f32 0.0, %v1021
      %1023 = vmatmul.f32.gmra.mxu0 %v921
      %v1024 = vpop.f32.mrf.mxu0
      %v1025 = vadd.f32 0.0, %v1024
      %1026 = vmatmul.f32.gmra.mxu0 %v924
      %v1027 = vpop.f32.mrf.mxu0
      %v1028 = vadd.f32 0.0, %v1027
      %1029 = vmatmul.f32.gmra.mxu0 %v927
      %v1030 = vpop.f32.mrf.mxu0
      %v1031 = vadd.f32 0.0, %v1030
      %1032 = vmatmul.f32.gmra.mxu0 %v930
      %v1033 = vpop.f32.mrf.mxu0
      %v1034 = vadd.f32 0.0, %v1033
      %1035 = vmatmul.f32.gmra.mxu0 %v933
      %v1036 = vpop.f32.mrf.mxu0
      %v1037 = vadd.f32 0.0, %v1036
      %1038 = vmatmul.f32.gmra.mxu0 %v936
      %v1039 = vpop.f32.mrf.mxu0
      %v1040 = vadd.f32 0.0, %v1039
      %1041 = vmatmul.f32.gmra.mxu0 %v939
      %v1042 = vpop.f32.mrf.mxu0
      %v1043 = vadd.f32 0.0, %v1042
      %1044 = vmatmul.f32.gmra.mxu0 %v942
      %v1045 = vpop.f32.mrf.mxu0
      %v1046 = vadd.f32 0.0, %v1045
      %1047 = vdwg.mxu0
      %v1048 = vadd.f32 %v786, %v962
      %v1049 = vadd.f32 %v787, %v965
      %v1050 = vadd.f32 %v788, %v968
      %v1051 = vadd.f32 %v789, %v971
      %v1052 = vadd.f32 %v790, %v974
      %v1053 = vadd.f32 %v791, %v977
      %v1054 = vadd.f32 %v792, %v980
      %v1055 = vadd.f32 %v793, %v983
      %v1056 = vadd.f32 %v794, %v986
      %v1057 = vadd.f32 %v795, %v989
      %v1058 = vadd.f32 %v796, %v992
      %v1059 = vadd.f32 %v797, %v995
      %v1060 = vadd.f32 %v798, %v998
      %v1061 = vadd.f32 %v799, %v1001
      %v1062 = vadd.f32 %v800, %v1004
      %v1063 = vadd.f32 %v801, %v1007
      %v1064 = vadd.f32 %v802, %v1010
      %v1065 = vadd.f32 %v803, %v1013
      %v1066 = vadd.f32 %v804, %v1016
      %v1067 = vadd.f32 %v805, %v1019
      %v1068 = vadd.f32 %v806, %v1022
      %v1069 = vadd.f32 %v807, %v1025
      %v1070 = vadd.f32 %v808, %v1028
      %v1071 = vadd.f32 %v809, %v1031
      %v1072 = vadd.f32 %v810, %v1034
      %v1073 = vadd.f32 %v811, %v1037
      %v1074 = vadd.f32 %v812, %v1040
      %v1075 = vadd.f32 %v813, %v1043
      %v1076 = vadd.f32 %v814, %v1046
      %v1077 = vmax.f32 %v1048, 0.0
      %v1078 = vmax.f32 %v1049, 0.0
      %v1079 = vmax.f32 %v1050, 0.0
      %v1080 = vmax.f32 %v1051, 0.0
      %v1081 = vmax.f32 %v1052, 0.0
      %v1082 = vmax.f32 %v1053, 0.0
      %v1083 = vmax.f32 %v1054, 0.0
      %v1084 = vmax.f32 %v1055, 0.0
      %v1085 = vmax.f32 %v1056, 0.0
      %v1086 = vmax.f32 %v1057, 0.0
      %v1087 = vmax.f32 %v1058, 0.0
      %v1088 = vmax.f32 %v1059, 0.0
      %v1089 = vmax.f32 %v1060, 0.0
      %v1090 = vmax.f32 %v1061, 0.0
      %v1091 = vmax.f32 %v1062, 0.0
      %v1092 = vmax.f32 %v1063, 0.0
      %v1093 = vmax.f32 %v1064, 0.0
      %v1094 = vmax.f32 %v1065, 0.0
      %v1095 = vmax.f32 %v1066, 0.0
      %v1096 = vmax.f32 %v1067, 0.0
      %v1097 = vmax.f32 %v1068, 0.0
      %v1098 = vmax.f32 %v1069, 0.0
      %v1099 = vmax.f32 %v1070, 0.0
      %v1100 = vmax.f32 %v1071, 0.0
      %v1101 = vmax.f32 %v1072, 0.0
      %v1102 = vmax.f32 %v1073, 0.0
      %v1103 = vmax.f32 %v1074, 0.0
      %v1104 = vmax.f32 %v1075, 0.0
      %v1105 = vmax.f32 %v1076, 0.0
      %1106 = vst [vmem:[%s170] sm:$0xff] %v1077
      %1107 = vst [vmem:[%s170 + $0x8] sm:$0xff] %v1078
      %1108 = vst [vmem:[%s170 + $0x10] sm:$0xff] %v1079
      %1109 = vst [vmem:[%s170 + $0x18] sm:$0xff] %v1080
      %1110 = vst [vmem:[%s170 + $0x20] sm:$0xff] %v1081
      %1111 = vst [vmem:[%s170 + $0x28] sm:$0xff] %v1082
      %1112 = vst [vmem:[%s170 + $0x30] sm:$0xff] %v1083
      %1113 = vst [vmem:[%s170 + $0x38] sm:$0xff] %v1084
      %1114 = vst [vmem:[%s170 + $0x40] sm:$0xff] %v1085
      %1115 = vst [vmem:[%s170 + $0x48] sm:$0xff] %v1086
      %1116 = vst [vmem:[%s170 + $0x50] sm:$0xff] %v1087
      %1117 = vst [vmem:[%s170 + $0x58] sm:$0xff] %v1088
      %1118 = vst [vmem:[%s170 + $0x60] sm:$0xff] %v1089
      %1119 = vst [vmem:[%s170 + $0x68] sm:$0xff] %v1090
      %1120 = vst [vmem:[%s170 + $0x70] sm:$0xff] %v1091
      %1121 = vst [vmem:[%s170 + $0x78] sm:$0xff] %v1092
      %1122 = vst [vmem:[%s170 + $0x80] sm:$0xff] %v1093
      %1123 = vst [vmem:[%s170 + $0x88] sm:$0xff] %v1094
      %1124 = vst [vmem:[%s170 + $0x90] sm:$0xff] %v1095
      %1125 = vst [vmem:[%s170 + $0x98] sm:$0xff] %v1096
      %1126 = vst [vmem:[%s170 + $0xa0] sm:$0xff] %v1097
      %1127 = vst [vmem:[%s170 + $0xa8] sm:$0xff] %v1098
      %1128 = vst [vmem:[%s170 + $0xb0] sm:$0xff] %v1099
      %1129 = vst [vmem:[%s170 + $0xb8] sm:$0xff] %v1100
      %1130 = vst [vmem:[%s170 + $0xc0] sm:$0xff] %v1101
      %1131 = vst [vmem:[%s170 + $0xc8] sm:$0xff] %v1102
      %1132 = vst [vmem:[%s170 + $0xd0] sm:$0xff] %v1103
      %1133 = vst [vmem:[%s170 + $0xd8] sm:$0xff] %v1104
      %1134 = vst [vmem:[%s170 + $0xe0] sm:$0xff] %v1105
      %p1135 = scmp.lt.s32.totalorder %s14, 1
      %s1136 = scalar_select %p1135, %s14, 1
      %s1137 = smul.addr %s1136, 29
      %s1138 = smul.addr %s1137, 8
      %s1139 = scalar_lea.vmem %s3, %s1138
      // Predicated region
      $region33: #{decoder_forward.6} parent=31 // pred_check
        %p1140 = pneg %p100
      $region34: #{decoder_forward.6} parent=31 // pred_check_branch
        %1142 = sbr.rel (%p1140) target = $region36
      $region35: #{decoder_forward.6} parent=31 // pred_region
        _
      $region36: #{decoder_forward.6} parent=31 // pred_fallthru
        _
    $region32: #{decoder_forward.6} parent=5 // pred_fallthru
      _
    %p1143 = scmp.le.s32.totalorder 2, %s9
    // Predicated region
    $region37: #{decoder_forward.6} parent=5 // pred_check
      %p1144 = pneg %p1143
    $region38: #{decoder_forward.6} parent=5 // pred_check_branch
      %1146 = sbr.rel (%p1144) target = $region40
    $region39: #{decoder_forward.6} parent=5 // pred_region
      %s1147 = ssub.s32 %s9, 2
      // Predicated region
      $region41: #{decoder_forward.6} parent=39 // pred_check
        %p1148 = pneg %p106
      $region42: #{decoder_forward.6} parent=39 // pred_check_branch
        %1150 = sbr.rel (%p1148) target = $region44
      $region43: #{decoder_forward.6} parent=39 // pred_region
        %p1151 = scmp.lt.s32.totalorder %s15, 1
        %s1152 = scalar_select %p1151, %s15, 1
        %s1153 = smul.addr %s1152, 29
        %s1154 = smul.addr %s1153, 8
        %s1155 = scalar_lea.vmem %s3, %s1154
      $region44: #{decoder_forward.6} parent=39 // pred_fallthru
        _
    $region40: #{decoder_forward.6} parent=5 // pred_fallthru
      _
  $region6: #{decoder_forward.6} parent=0 // loop_footer
    %s13 = sadd.s32 1, %s9
  $region7: #{decoder_forward.6} parent=0 // loop_footer_branch
    %8 = sbr.rel target = $region3
  $region8: #{decoder_forward.6} parent=0 // loop_exit
    _

// kernel: decoder_forward.7
$region0: #{decoder_forward.7}
  #allocation0 [shape = 'u32[]', space=smem, size = 0x4, offset = 0x4, fixed_abs, tag = 'smem constant byte address 0x4 - core index']
  #allocation1 [shape = 'u32[72,128]{1,0:T(1,128)}', space=vmem, size = 0x9000, scoped, tag = 'internal scratch']
  %s0 = inlined_call_operand.vmem [shape: f32[2,964,96], index: 0, kind: input, shape index: {}]
  %s1 = inlined_call_operand.vmem [shape: f32[3,96,128], index: 1, kind: input, shape index: {}]
  %s2 = inlined_call_operand.vmem [shape: f32[1,128], index: 2, kind: input, shape index: {}]
  %s3 = inlined_call_operand.vmem [shape: f32[2,904,128], index: 3, kind: output, shape index: {}]
  %s4 = sld [smem:[#allocation0]]
  $region45: #{decoder_forward.7} parent=0
    _
  %s6 = ssub.s32 1, %s4
  %s7 = scalar_select 0, %s6, %s4
  loop: start=0, step=1, limit=4
  $region2: #{decoder_forward.7} parent=0 // loop_pre_header
    _
  $region3: #{decoder_forward.7} parent=0 // loop_header
    %s9 = sphi 0, %s13
    %p10 = scmp.ge.s32.totalorder %s9, 4
    %s19 = sphi 0, %s21
    %s22 = sphi 0, %s19
    %s23 = sphi 0, %s22
    %s39 = sphi 0, %s23
    %s43 = sphi 0, %s43
    %s45 = sphi 0, %s43
    %s46 = sphi 0, %s45
    %s60 = sphi 0, %s46
    %s64 = sphi 0, %s64
    %s66 = sphi 0, %s64
    %s67 = sphi 0, %s66
    %s81 = sphi 0, %s67
    %s87 = sphi 0, %s89
    %s90 = sphi 0, %s87
    %s91 = sphi 0, %s90
    %s107 = sphi 0, %s91
  $region4: #{decoder_forward.7} parent=0 // loop_header_branch
    %12 = sbr.rel (%p10) target = $region8
  $region5: #{decoder_forward.7} parent=0 // loop_body
    %s14 = ssub.s32 %s9, 1
    %s15 = ssub.s32 %s9, 2
    %s16 = sadd.s32 %s9, 1
    %s17 = ssub.s32 %s9, %s16
    %p18 = scmp.eq.s32.totalorder %s17, 0
    %s20 = sadd.s32 %s19, 1
    %s21 = scalar_select %p18, %s19, %s20
    %p24 = pneg %p18
    %p25 = scmp.eq.s32.totalorder %s9, 1
    %p26 = por %p24, %p25
    %p27 = scmp.ne.s32.totalorder %s19, %s22
    %p28 = scmp.eq.s32.totalorder %s9, 0
    %p29 = por %p27, %p28
    %p30 = scmp.ne.s32.totalorder %s19, %s22
    %p31 = scmp.eq.s32.totalorder %s14, 1
    %p32 = por %p30, %p31
    %p33 = scmp.ne.s32.totalorder %s22, %s23
    %p34 = scmp.eq.s32.totalorder %s14, 0
    %p35 = por %p33, %p34
    %p36 = scmp.ne.s32.totalorder %s22, %s23
    %p37 = scmp.eq.s32.totalorder %s15, 1
    %p38 = por %p36, %p37
    %p40 = scmp.ne.s32.totalorder %s23, %s39
    %p41 = scmp.eq.s32.totalorder %s15, 0
    %p42 = por %p40, %p41
    %s44 = sadd.s32 %s43, 1
    %p47 = scmp.eq.s32.totalorder %s9, 1
    %p48 = scmp.ne.s32.totalorder %s43, %s45
    %p49 = scmp.eq.s32.totalorder %s9, 0
    %p50 = por %p48, %p49
    %p51 = scmp.ne.s32.totalorder %s43, %s45
    %p52 = scmp.eq.s32.totalorder %s14, 1
    %p53 = por %p51, %p52
    %p54 = scmp.ne.s32.totalorder %s45, %s46
    %p55 = scmp.eq.s32.totalorder %s14, 0
    %p56 = por %p54, %p55
    %p57 = scmp.ne.s32.totalorder %s45, %s46
    %p58 = scmp.eq.s32.totalorder %s15, 1
    %p59 = por %p57, %p58
    %p61 = scmp.ne.s32.totalorder %s46, %s60
    %p62 = scmp.eq.s32.totalorder %s15, 0
    %p63 = por %p61, %p62
    %s65 = sadd.s32 %s64, 1
    %p68 = scmp.eq.s32.totalorder %s9, 1
    %p69 = scmp.ne.s32.totalorder %s64, %s66
    %p70 = scmp.eq.s32.totalorder %s9, 0
    %p71 = por %p69, %p70
    %p72 = scmp.ne.s32.totalorder %s64, %s66
    %p73 = scmp.eq.s32.totalorder %s14, 1
    %p74 = por %p72, %p73
    %p75 = scmp.ne.s32.totalorder %s66, %s67
    %p76 = scmp.eq.s32.totalorder %s14, 0
    %p77 = por %p75, %p76
    %p78 = scmp.ne.s32.totalorder %s66, %s67
    %p79 = scmp.eq.s32.totalorder %s15, 1
    %p80 = por %p78, %p79
    %p82 = scmp.ne.s32.totalorder %s67, %s81
    %p83 = scmp.eq.s32.totalorder %s15, 0
    %p84 = por %p82, %p83
    %s85 = ssub.s32 %s9, %s16
    %p86 = scmp.eq.s32.totalorder %s85, 0
    %s88 = sadd.s32 %s87, 1
    %s89 = scalar_select %p86, %s87, %s88
    %p92 = pneg %p86
    %p93 = scmp.eq.s32.totalorder %s9, 1
    %p94 = por %p92, %p93
    %p95 = scmp.ne.s32.totalorder %s87, %s90
    %p96 = scmp.eq.s32.totalorder %s9, 0
    %p97 = por %p95, %p96
    %p98 = scmp.ne.s32.totalorder %s87, %s90
    %p99 = scmp.eq.s32.totalorder %s14, 1
    %p100 = por %p98, %p99
    %p101 = scmp.ne.s32.totalorder %s90, %s91
    %p102 = scmp.eq.s32.totalorder %s14, 0
    %p103 = por %p101, %p102
    %p104 = scmp.ne.s32.totalorder %s90, %s91
    %p105 = scmp.eq.s32.totalorder %s15, 1
    %p106 = por %p104, %p105
    %p108 = scmp.ne.s32.totalorder %s91, %s107
    %p109 = scmp.eq.s32.totalorder %s15, 0
    %p110 = por %p108, %p109
    %p111 = scmp.le.s32.totalorder 1, %s9
    %p112 = scmp.lt.s32.totalorder %s9, 3
    %p113 = pnand %p111, %p112
    %p114 = pneg %p113
    // Predicated region
    $region9: #{decoder_forward.7} parent=5 // pred_check
      _
    $region10: #{decoder_forward.7} parent=5 // pred_check_branch
      %116 = sbr.rel (%p113) target = $region12
    $region11: #{decoder_forward.7} parent=5 // pred_region
      %s117 = ssub.s32 %s9, 1
      // Predicated region
      $region13: #{decoder_forward.7} parent=11 // pred_check
        %p118 = pneg %p56
      $region14: #{decoder_forward.7} parent=11 // pred_check_branch
        %120 = sbr.rel (%p118) target = $region16
      $region15: #{decoder_forward.7} parent=11 // pred_region
        _
      $region16: #{decoder_forward.7} parent=11 // pred_fallthru
        _
      // Predicated region
      $region17: #{decoder_forward.7} parent=11 // pred_check
        %p121 = pneg %p77
      $region18: #{decoder_forward.7} parent=11 // pred_check_branch
        %123 = sbr.rel (%p121) target = $region20
      $region19: #{decoder_forward.7} parent=11 // pred_region
        _
      $region20: #{decoder_forward.7} parent=11 // pred_fallthru
        _
    $region12: #{decoder_forward.7} parent=5 // pred_fallthru
      _
    %p124 = scmp.lt.s32.totalorder %s9, 2
    // Predicated region
    $region21: #{decoder_forward.7} parent=5 // pred_check
      %p125 = pneg %p124
    $region22: #{decoder_forward.7} parent=5 // pred_check_branch
      %127 = sbr.rel (%p125) target = $region24
    $region23: #{decoder_forward.7} parent=5 // pred_region
      // Predicated region
      $region25: #{decoder_forward.7} parent=23 // pred_check
        %p128 = pneg %p29
      $region26: #{decoder_forward.7} parent=23 // pred_check_branch
        %130 = sbr.rel (%p128) target = $region28
      $region27: #{decoder_forward.7} parent=23 // pred_region
        %p131 = scmp.lt.s32.totalorder %s9, 1
        %s132 = scalar_select %p131, %s9, 1
        %s133 = smul.addr %s132, 121
        %s134 = smul.addr %s133, 8
        %s135 = scalar_lea.vmem %s0, %s134
      $region28: #{decoder_forward.7} parent=23 // pred_fallthru
        _
    $region24: #{decoder_forward.7} parent=5 // pred_fallthru
      _
    %p136 = scmp.le.s32.totalorder 1, %s9
    %p137 = scmp.lt.s32.totalorder %s9, 3
    %p138 = pnand %p136, %p137
    %p139 = pneg %p138
    // Predicated region
    $region29: #{decoder_forward.7} parent=5 // pred_check
      _
    $region30: #{decoder_forward.7} parent=5 // pred_check_branch
      %141 = sbr.rel (%p138) target = $region32
    $region31: #{decoder_forward.7} parent=5 // pred_region
      %s142 = ssub.s32 %s9, 1
      %p143 = scmp.lt.s32.totalorder %s14, 1
      %s144 = scalar_select %p143, %s14, 1
      %s145 = smul.addr %s144, 121
      %s146 = smul.addr %s145, 8
      %s147 = scalar_lea.vmem %s0, %s146
      %p148 = pneg %p35
      %p149 = pneg %p32
      %p150 = pneg %p56
      %p151 = pneg %p53
      %p152 = pneg %p77
      %p153 = pneg %p74
      %p154 = pneg %p103
      %p155 = pneg %p100
      %p156 = scmp.lt.s32.totalorder %s14, 1
      %s157 = scalar_select %p156, %s14, 1
      %s158 = smul.addr %s157, 113
      %s159 = smul.addr %s158, 8
      %s160 = scalar_lea.vmem %s3, %s159
      %p161 = scmp.lt.s32.totalorder %s14, 1
      %s162 = scalar_select %p161, %s14, 1
      %s163 = smul.addr %s162, 121
      %s164 = smul.addr %s163, 8
      %s165 = scalar_lea.vmem %s0, %s164
      %p166 = scmp.lt.s32.totalorder %s14, 1
      %s167 = scalar_select %p166, %s14, 1
      %s168 = smul.addr %s167, 113
      %s169 = smul.addr %s168, 8
      %s170 = scalar_lea.vmem %s3, %s169
      %v171 = vld [vmem:[%s2] sm:$0x1]
      %v172 = vld [vmem:[%s165] sm:$0xff]
      %v173 = vld [vmem:[%s165 + $0x8] sm:$0xff]
      %v174 = vld [vmem:[%s165 + $0x10] sm:$0xff]
      %v175 = vld [vmem:[%s165 + $0x18] sm:$0xff]
      %v176 = vld [vmem:[%s165 + $0x20] sm:$0xff]
      %v177 = vld [vmem:[%s165 + $0x28] sm:$0xff]
      %v178 = vld [vmem:[%s165 + $0x30] sm:$0xff]
      %v179 = vld [vmem:[%s165 + $0x38] sm:$0xff]
      %v180 = vld [vmem:[%s165 + $0x40] sm:$0xff]
      %v181 = vld [vmem:[%s165 + $0x48] sm:$0xff]
      %v182 = vld [vmem:[%s165 + $0x50] sm:$0xff]
      %v183 = vld [vmem:[%s165 + $0x58] sm:$0xff]
      %v184 = vld [vmem:[%s165 + $0x60] sm:$0xff]
      %v185 = vld [vmem:[%s165 + $0x68] sm:$0xff]
      %v186 = vld [vmem:[%s165 + $0x70] sm:$0xff]
      %v187 = vld [vmem:[%s165 + $0x78] sm:$0xff]
      %v188 = vld [vmem:[%s165 + $0x80] sm:$0xff]
      %v189 = vld [vmem:[%s165 + $0x88] sm:$0xff]
      %v190 = vld [vmem:[%s165 + $0x90] sm:$0xff]
      %v191 = vld [vmem:[%s165 + $0x98] sm:$0xff]
      %v192 = vld [vmem:[%s165 + $0xa0] sm:$0xff]
      %v193 = vld [vmem:[%s165 + $0xa8] sm:$0xff]
      %v194 = vld [vmem:[%s165 + $0xb0] sm:$0xff]
      %v195 = vld [vmem:[%s165 + $0xb8] sm:$0xff]
      %v196 = vld [vmem:[%s165 + $0xc0] sm:$0xff]
      %v197 = vld [vmem:[%s165 + $0xc8] sm:$0xff]
      %v198 = vld [vmem:[%s165 + $0xd0] sm:$0xff]
      %v199 = vld [vmem:[%s165 + $0xd8] sm:$0xff]
      %v200 = vld [vmem:[%s165 + $0xe0] sm:$0xff]
      %v201 = vld [vmem:[%s165 + $0xe8] sm:$0xff]
      %v202 = vld [vmem:[%s165 + $0xf0] sm:$0xff]
      %v203 = vld [vmem:[%s165 + $0xf8] sm:$0xff]
      %v204 = vld [vmem:[%s165 + $0x100] sm:$0xff]
      %v205 = vld [vmem:[%s165 + $0x108] sm:$0xff]
      %v206 = vld [vmem:[%s165 + $0x110] sm:$0xff]
      %v207 = vld [vmem:[%s165 + $0x118] sm:$0xff]
      %v208 = vld [vmem:[%s165 + $0x120] sm:$0xff]
      %v209 = vld [vmem:[%s165 + $0x128] sm:$0xff]
      %v210 = vld [vmem:[%s165 + $0x130] sm:$0xff]
      %v211 = vld [vmem:[%s165 + $0x138] sm:$0xff]
      %v212 = vld [vmem:[%s165 + $0x140] sm:$0xff]
      %v213 = vld [vmem:[%s165 + $0x148] sm:$0xff]
      %v214 = vld [vmem:[%s165 + $0x150] sm:$0xff]
      %v215 = vld [vmem:[%s165 + $0x158] sm:$0xff]
      %v216 = vld [vmem:[%s165 + $0x160] sm:$0xff]
      %v217 = vld [vmem:[%s165 + $0x168] sm:$0xff]
      %v218 = vld [vmem:[%s165 + $0x170] sm:$0xff]
      %v219 = vld [vmem:[%s165 + $0x178] sm:$0xff]
      %v220 = vld [vmem:[%s165 + $0x180] sm:$0xff]
      %v221 = vld [vmem:[%s165 + $0x188] sm:$0xff]
      %v222 = vld [vmem:[%s165 + $0x190] sm:$0xff]
      %v223 = vld [vmem:[%s165 + $0x198] sm:$0xff]
      %v224 = vld [vmem:[%s165 + $0x1a0] sm:$0xff]
      %v225 = vld [vmem:[%s165 + $0x1a8] sm:$0xff]
      %v226 = vld [vmem:[%s165 + $0x1b0] sm:$0xff]
      %v227 = vld [vmem:[%s165 + $0x1b8] sm:$0xff]
      %v228 = vld [vmem:[%s165 + $0x1c0] sm:$0xff]
      %v229 = vld [vmem:[%s165 + $0x1c8] sm:$0xff]
      %v230 = vld [vmem:[%s165 + $0x1d0] sm:$0xff]
      %v231 = vld [vmem:[%s165 + $0x1d8] sm:$0xff]
      %v232 = vld [vmem:[%s165 + $0x1e0] sm:$0xff]
      %v233 = vld [vmem:[%s165 + $0x1e8] sm:$0xff]
      %v234 = vld [vmem:[%s165 + $0x1f0] sm:$0xff]
      %v235 = vld [vmem:[%s165 + $0x1f8] sm:$0xff]
      %v236 = vld [vmem:[%s165 + $0x200] sm:$0xff]
      %v237 = vld [vmem:[%s165 + $0x208] sm:$0xff]
      %v238 = vld [vmem:[%s165 + $0x210] sm:$0xff]
      %v239 = vld [vmem:[%s165 + $0x218] sm:$0xff]
      %v240 = vld [vmem:[%s165 + $0x220] sm:$0xff]
      %v241 = vld [vmem:[%s165 + $0x228] sm:$0xff]
      %v242 = vld [vmem:[%s165 + $0x230] sm:$0xff]
      %v243 = vld [vmem:[%s165 + $0x238] sm:$0xff]
      %v244 = vld [vmem:[%s165 + $0x240] sm:$0xff]
      %v245 = vld [vmem:[%s165 + $0x248] sm:$0xff]
      %v246 = vld [vmem:[%s165 + $0x250] sm:$0xff]
      %v247 = vld [vmem:[%s165 + $0x258] sm:$0xff]
      %v248 = vld [vmem:[%s165 + $0x260] sm:$0xff]
      %v249 = vld [vmem:[%s165 + $0x268] sm:$0xff]
      %v250 = vld [vmem:[%s165 + $0x270] sm:$0xff]
      %v251 = vld [vmem:[%s165 + $0x278] sm:$0xff]
      %v252 = vld [vmem:[%s165 + $0x280] sm:$0xff]
      %v253 = vld [vmem:[%s165 + $0x288] sm:$0xff]
      %v254 = vld [vmem:[%s165 + $0x290] sm:$0xff]
      %v255 = vld [vmem:[%s165 + $0x298] sm:$0xff]
      %v256 = vld [vmem:[%s165 + $0x2a0] sm:$0xff]
      %v257 = vld [vmem:[%s165 + $0x2a8] sm:$0xff]
      %v258 = vld [vmem:[%s165 + $0x2b0] sm:$0xff]
      %v259 = vld [vmem:[%s165 + $0x2b8] sm:$0xff]
      %v260 = vld [vmem:[%s165 + $0x2c0] sm:$0xff]
      %v261 = vld [vmem:[%s165 + $0x2c8] sm:$0xff]
      %v262 = vld [vmem:[%s165 + $0x2d0] sm:$0xff]
      %v263 = vld [vmem:[%s165 + $0x2d8] sm:$0xff]
      %v264 = vld [vmem:[%s165 + $0x2e0] sm:$0xff]
      %v265 = vld [vmem:[%s165 + $0x2e8] sm:$0xff]
      %v266 = vld [vmem:[%s165 + $0x2f0] sm:$0xff]
      %v267 = vld [vmem:[%s165 + $0x2f8] sm:$0xff]
      %v268 = vld [vmem:[%s165 + $0x300] sm:$0xff]
      %v269 = vld [vmem:[%s165 + $0x308] sm:$0xff]
      %v270 = vld [vmem:[%s165 + $0x310] sm:$0xff]
      %v271 = vld [vmem:[%s165 + $0x318] sm:$0xff]
      %v272 = vld [vmem:[%s165 + $0x320] sm:$0xff]
      %v273 = vld [vmem:[%s165 + $0x328] sm:$0xff]
      %v274 = vld [vmem:[%s165 + $0x330] sm:$0xff]
      %v275 = vld [vmem:[%s165 + $0x338] sm:$0xff]
      %v276 = vld [vmem:[%s165 + $0x340] sm:$0xff]
      %v277 = vld [vmem:[%s165 + $0x348] sm:$0xff]
      %v278 = vld [vmem:[%s165 + $0x350] sm:$0xff]
      %v279 = vld [vmem:[%s165 + $0x358] sm:$0xff]
      %v280 = vld [vmem:[%s165 + $0x360] sm:$0xff]
      %v281 = vld [vmem:[%s165 + $0x368] sm:$0xff]
      %v282 = vld [vmem:[%s165 + $0x370] sm:$0xff]
      %v283 = vld [vmem:[%s165 + $0x378] sm:$0xff]
      %v284 = vld [vmem:[%s165 + $0x380] sm:$0xff]
      %v285 = vld [vmem:[%s1] sm:$0xff]
      %v286 = vld [vmem:[%s1 + $0x8] sm:$0xff]
      %v287 = vld [vmem:[%s1 + $0x10] sm:$0xff]
      %v288 = vld [vmem:[%s1 + $0x18] sm:$0xff]
      %v289 = vld [vmem:[%s1 + $0x20] sm:$0xff]
      %v290 = vld [vmem:[%s1 + $0x28] sm:$0xff]
      %v291 = vld [vmem:[%s1 + $0x30] sm:$0xff]
      %v292 = vld [vmem:[%s1 + $0x38] sm:$0xff]
      %v293 = vld [vmem:[%s1 + $0x40] sm:$0xff]
      %v294 = vld [vmem:[%s1 + $0x48] sm:$0xff]
      %v295 = vld [vmem:[%s1 + $0x50] sm:$0xff]
      %v296 = vld [vmem:[%s1 + $0x58] sm:$0xff]
      %vm297 = vcmask 785408
      %v299 = vsel %vm297, %v172, 0
      %v302 = vsel %vm297, %v173, 0
      %v305 = vsel %vm297, %v174, 0
      %v308 = vsel %vm297, %v175, 0
      %v311 = vsel %vm297, %v176, 0
      %v314 = vsel %vm297, %v177, 0
      %v317 = vsel %vm297, %v178, 0
      %v320 = vsel %vm297, %v179, 0
      %v323 = vsel %vm297, %v180, 0
      %v326 = vsel %vm297, %v181, 0
      %v329 = vsel %vm297, %v182, 0
      %v332 = vsel %vm297, %v183, 0
      %v335 = vsel %vm297, %v184, 0
      %v338 = vsel %vm297, %v185, 0
      %v341 = vsel %vm297, %v186, 0
      %v344 = vsel %vm297, %v187, 0
      %v347 = vsel %vm297, %v188, 0
      %v350 = vsel %vm297, %v189, 0
      %v353 = vsel %vm297, %v190, 0
      %v356 = vsel %vm297, %v191, 0
      %v359 = vsel %vm297, %v192, 0
      %v362 = vsel %vm297, %v193, 0
      %v365 = vsel %vm297, %v194, 0
      %v368 = vsel %vm297, %v195, 0
      %v371 = vsel %vm297, %v196, 0
      %v374 = vsel %vm297, %v197, 0
      %v377 = vsel %vm297, %v198, 0
      %v380 = vsel %vm297, %v199, 0
      %v383 = vsel %vm297, %v200, 0
      %v386 = vsel %vm297, %v201, 0
      %v389 = vsel %vm297, %v202, 0
      %v392 = vsel %vm297, %v203, 0
      %v395 = vsel %vm297, %v204, 0
      %v398 = vsel %vm297, %v205, 0
      %v401 = vsel %vm297, %v206, 0
      %v404 = vsel %vm297, %v207, 0
      %v407 = vsel %vm297, %v208, 0
      %v410 = vsel %vm297, %v209, 0
      %v413 = vsel %vm297, %v210, 0
      %v416 = vsel %vm297, %v211, 0
      %v419 = vsel %vm297, %v212, 0
      %v422 = vsel %vm297, %v213, 0
      %v425 = vsel %vm297, %v214, 0
      %v428 = vsel %vm297, %v215, 0
      %v431 = vsel %vm297, %v216, 0
      %v434 = vsel %vm297, %v217, 0
      %v437 = vsel %vm297, %v218, 0
      %v440 = vsel %vm297, %v219, 0
      %v443 = vsel %vm297, %v220, 0
      %v446 = vsel %vm297, %v221, 0
      %v449 = vsel %vm297, %v222, 0
      %v452 = vsel %vm297, %v223, 0
      %v455 = vsel %vm297, %v224, 0
      %v458 = vsel %vm297, %v225, 0
      %v461 = vsel %vm297, %v226, 0
      %v464 = vsel %vm297, %v227, 0
      %v467 = vsel %vm297, %v228, 0
      %v470 = vsel %vm297, %v229, 0
      %v473 = vsel %vm297, %v230, 0
      %v476 = vsel %vm297, %v231, 0
      %v479 = vsel %vm297, %v232, 0
      %v482 = vsel %vm297, %v233, 0
      %v485 = vsel %vm297, %v234, 0
      %v488 = vsel %vm297, %v235, 0
      %v491 = vsel %vm297, %v236, 0
      %v494 = vsel %vm297, %v237, 0
      %v497 = vsel %vm297, %v238, 0
      %v500 = vsel %vm297, %v239, 0
      %v503 = vsel %vm297, %v240, 0
      %v506 = vsel %vm297, %v241, 0
      %v509 = vsel %vm297, %v242, 0
      %v512 = vsel %vm297, %v243, 0
      %v515 = vsel %vm297, %v244, 0
      %v518 = vsel %vm297, %v245, 0
      %v521 = vsel %vm297, %v246, 0
      %v524 = vsel %vm297, %v247, 0
      %v527 = vsel %vm297, %v248, 0
      %v530 = vsel %vm297, %v249, 0
      %v533 = vsel %vm297, %v250, 0
      %v536 = vsel %vm297, %v251, 0
      %v539 = vsel %vm297, %v252, 0
      %v542 = vsel %vm297, %v253, 0
      %v545 = vsel %vm297, %v254, 0
      %v548 = vsel %vm297, %v255, 0
      %v551 = vsel %vm297, %v256, 0
      %v554 = vsel %vm297, %v257, 0
      %v557 = vsel %vm297, %v258, 0
      %v560 = vsel %vm297, %v259, 0
      %v563 = vsel %vm297, %v260, 0
      %v566 = vsel %vm297, %v261, 0
      %v569 = vsel %vm297, %v262, 0
      %v572 = vsel %vm297, %v263, 0
      %v575 = vsel %vm297, %v264, 0
      %v578 = vsel %vm297, %v265, 0
      %v581 = vsel %vm297, %v266, 0
      %v584 = vsel %vm297, %v267, 0
      %v587 = vsel %vm297, %v268, 0
      %v590 = vsel %vm297, %v269, 0
      %v593 = vsel %vm297, %v270, 0
      %v596 = vsel %vm297, %v271, 0
      %v599 = vsel %vm297, %v272, 0
      %v602 = vsel %vm297, %v273, 0
      %v605 = vsel %vm297, %v274, 0
      %v608 = vsel %vm297, %v275, 0
      %v611 = vsel %vm297, %v276, 0
      %v614 = vsel %vm297, %v277, 0
      %v617 = vsel %vm297, %v278, 0
      %v620 = vsel %vm297, %v279, 0
      %v623 = vsel %vm297, %v280, 0
      %v626 = vsel %vm297, %v281, 0
      %v629 = vsel %vm297, %v282, 0
      %v632 = vsel %vm297, %v283, 0
      %v635 = vsel %vm297, %v284, 0
      %637 = vmatpush.msra.mxu0 0.0
      %638 = vmatpush.msra.mxu0 0.0
      %639 = vmatpush.msra.mxu0 0.0
      %640 = vmatpush.msra.mxu0 0.0
      %641 = vmatpush.msra.mxu0 %v296
      %642 = vmatpush.msra.mxu0 %v295
      %643 = vmatpush.msra.mxu0 %v294
      %644 = vmatpush.msra.mxu0 %v293
      %645 = vmatpush.msra.mxu0 %v292
      %646 = vmatpush.msra.mxu0 %v291
      %647 = vmatpush.msra.mxu0 %v290
      %648 = vmatpush.msra.mxu0 %v289
      %649 = vmatpush.msra.mxu0 %v288
      %650 = vmatpush.msra.mxu0 %v287
      %651 = vmatpush.msra.mxu0 %v286
      %652 = vmatpush.msra.mxu0 %v285
      %653 = vmatmul.f32.gmra.mxu0 %v299
      %v654 = vpop.f32.mrf.mxu0
      %v655 = vadd.f32 0.0, %v654
      %656 = vmatmul.f32.gmra.mxu0 %v302
      %v657 = vpop.f32.mrf.mxu0
      %v658 = vadd.f32 0.0, %v657
      %659 = vmatmul.f32.gmra.mxu0 %v305
      %v660 = vpop.f32.mrf.mxu0
      %v661 = vadd.f32 0.0, %v660
      %662 = vmatmul.f32.gmra.mxu0 %v308
      %v663 = vpop.f32.mrf.mxu0
      %v664 = vadd.f32 0.0, %v663
      %665 = vmatmul.f32.gmra.mxu0 %v311
      %v666 = vpop.f32.mrf.mxu0
      %v667 = vadd.f32 0.0, %v666
      %668 = vmatmul.f32.gmra.mxu0 %v314
      %v669 = vpop.f32.mrf.mxu0
      %v670 = vadd.f32 0.0, %v669
      %671 = vmatmul.f32.gmra.mxu0 %v317
      %v672 = vpop.f32.mrf.mxu0
      %v673 = vadd.f32 0.0, %v672
      %674 = vmatmul.f32.gmra.mxu0 %v320
      %v675 = vpop.f32.mrf.mxu0
      %v676 = vadd.f32 0.0, %v675
      %677 = vmatmul.f32.gmra.mxu0 %v323
      %v678 = vpop.f32.mrf.mxu0
      %v679 = vadd.f32 0.0, %v678
      %680 = vmatmul.f32.gmra.mxu0 %v326
      %v681 = vpop.f32.mrf.mxu0
      %v682 = vadd.f32 0.0, %v681
      %683 = vmatmul.f32.gmra.mxu0 %v329
      %v684 = vpop.f32.mrf.mxu0
      %v685 = vadd.f32 0.0, %v684
      %686 = vmatmul.f32.gmra.mxu0 %v332
      %v687 = vpop.f32.mrf.mxu0
      %v688 = vadd.f32 0.0, %v687
      %689 = vmatmul.f32.gmra.mxu0 %v335
      %v690 = vpop.f32.mrf.mxu0
      %v691 = vadd.f32 0.0, %v690
      %692 = vmatmul.f32.gmra.mxu0 %v338
      %v693 = vpop.f32.mrf.mxu0
      %v694 = vadd.f32 0.0, %v693
      %695 = vmatmul.f32.gmra.mxu0 %v341
      %v696 = vpop.f32.mrf.mxu0
      %v697 = vadd.f32 0.0, %v696
      %698 = vmatmul.f32.gmra.mxu0 %v344
      %v699 = vpop.f32.mrf.mxu0
      %v700 = vadd.f32 0.0, %v699
      %701 = vmatmul.f32.gmra.mxu0 %v347
      %v702 = vpop.f32.mrf.mxu0
      %v703 = vadd.f32 0.0, %v702
      %704 = vmatmul.f32.gmra.mxu0 %v350
      %v705 = vpop.f32.mrf.mxu0
      %v706 = vadd.f32 0.0, %v705
      %707 = vmatmul.f32.gmra.mxu0 %v353
      %v708 = vpop.f32.mrf.mxu0
      %v709 = vadd.f32 0.0, %v708
      %710 = vmatmul.f32.gmra.mxu0 %v356
      %v711 = vpop.f32.mrf.mxu0
      %v712 = vadd.f32 0.0, %v711
      %713 = vmatmul.f32.gmra.mxu0 %v359
      %v714 = vpop.f32.mrf.mxu0
      %v715 = vadd.f32 0.0, %v714
      %716 = vmatmul.f32.gmra.mxu0 %v362
      %v717 = vpop.f32.mrf.mxu0
      %v718 = vadd.f32 0.0, %v717
      %719 = vmatmul.f32.gmra.mxu0 %v365
      %v720 = vpop.f32.mrf.mxu0
      %v721 = vadd.f32 0.0, %v720
      %722 = vmatmul.f32.gmra.mxu0 %v368
      %v723 = vpop.f32.mrf.mxu0
      %v724 = vadd.f32 0.0, %v723
      %725 = vmatmul.f32.gmra.mxu0 %v371
      %v726 = vpop.f32.mrf.mxu0
      %v727 = vadd.f32 0.0, %v726
      %728 = vmatmul.f32.gmra.mxu0 %v374
      %v729 = vpop.f32.mrf.mxu0
      %v730 = vadd.f32 0.0, %v729
      %731 = vmatmul.f32.gmra.mxu0 %v377
      %v732 = vpop.f32.mrf.mxu0
      %v733 = vadd.f32 0.0, %v732
      %734 = vmatmul.f32.gmra.mxu0 %v380
      %v735 = vpop.f32.mrf.mxu0
      %v736 = vadd.f32 0.0, %v735
      %737 = vmatmul.f32.gmra.mxu0 %v383
      %v738 = vpop.f32.mrf.mxu0
      %v739 = vadd.f32 0.0, %v738
      %740 = vmatmul.f32.gmra.mxu0 %v386
      %v741 = vpop.f32.mrf.mxu0
      %v742 = vadd.f32 0.0, %v741
      %743 = vmatmul.f32.gmra.mxu0 %v389
      %v744 = vpop.f32.mrf.mxu0
      %v745 = vadd.f32 0.0, %v744
      %746 = vmatmul.f32.gmra.mxu0 %v392
      %v747 = vpop.f32.mrf.mxu0
      %v748 = vadd.f32 0.0, %v747
      %749 = vmatmul.f32.gmra.mxu0 %v395
      %v750 = vpop.f32.mrf.mxu0
      %v751 = vadd.f32 0.0, %v750
      %752 = vmatmul.f32.gmra.mxu0 %v398
      %v753 = vpop.f32.mrf.mxu0
      %v754 = vadd.f32 0.0, %v753
      %755 = vmatmul.f32.gmra.mxu0 %v401
      %v756 = vpop.f32.mrf.mxu0
      %v757 = vadd.f32 0.0, %v756
      %758 = vmatmul.f32.gmra.mxu0 %v404
      %v759 = vpop.f32.mrf.mxu0
      %v760 = vadd.f32 0.0, %v759
      %761 = vmatmul.f32.gmra.mxu0 %v407
      %v762 = vpop.f32.mrf.mxu0
      %v763 = vadd.f32 0.0, %v762
      %764 = vmatmul.f32.gmra.mxu0 %v410
      %v765 = vpop.f32.mrf.mxu0
      %v766 = vadd.f32 0.0, %v765
      %767 = vmatmul.f32.gmra.mxu0 %v413
      %v768 = vpop.f32.mrf.mxu0
      %v769 = vadd.f32 0.0, %v768
      %770 = vmatmul.f32.gmra.mxu0 %v416
      %v771 = vpop.f32.mrf.mxu0
      %v772 = vadd.f32 0.0, %v771
      %773 = vmatmul.f32.gmra.mxu0 %v419
      %v774 = vpop.f32.mrf.mxu0
      %v775 = vadd.f32 0.0, %v774
      %776 = vmatmul.f32.gmra.mxu0 %v422
      %v777 = vpop.f32.mrf.mxu0
      %v778 = vadd.f32 0.0, %v777
      %779 = vmatmul.f32.gmra.mxu0 %v425
      %v780 = vpop.f32.mrf.mxu0
      %v781 = vadd.f32 0.0, %v780
      %782 = vmatmul.f32.gmra.mxu0 %v428
      %v783 = vpop.f32.mrf.mxu0
      %v784 = vadd.f32 0.0, %v783
      %785 = vmatmul.f32.gmra.mxu0 %v431
      %v786 = vpop.f32.mrf.mxu0
      %v787 = vadd.f32 0.0, %v786
      %788 = vmatmul.f32.gmra.mxu0 %v434
      %v789 = vpop.f32.mrf.mxu0
      %v790 = vadd.f32 0.0, %v789
      %791 = vmatmul.f32.gmra.mxu0 %v437
      %v792 = vpop.f32.mrf.mxu0
      %v793 = vadd.f32 0.0, %v792
      %794 = vmatmul.f32.gmra.mxu0 %v440
      %v795 = vpop.f32.mrf.mxu0
      %v796 = vadd.f32 0.0, %v795
      %797 = vmatmul.f32.gmra.mxu0 %v443
      %v798 = vpop.f32.mrf.mxu0
      %v799 = vadd.f32 0.0, %v798
      %800 = vmatmul.f32.gmra.mxu0 %v446
      %v801 = vpop.f32.mrf.mxu0
      %v802 = vadd.f32 0.0, %v801
      %803 = vmatmul.f32.gmra.mxu0 %v449
      %v804 = vpop.f32.mrf.mxu0
      %v805 = vadd.f32 0.0, %v804
      %806 = vmatmul.f32.gmra.mxu0 %v452
      %v807 = vpop.f32.mrf.mxu0
      %v808 = vadd.f32 0.0, %v807
      %809 = vmatmul.f32.gmra.mxu0 %v455
      %v810 = vpop.f32.mrf.mxu0
      %v811 = vadd.f32 0.0, %v810
      %812 = vmatmul.f32.gmra.mxu0 %v458
      %v813 = vpop.f32.mrf.mxu0
      %v814 = vadd.f32 0.0, %v813
      %815 = vmatmul.f32.gmra.mxu0 %v461
      %v816 = vpop.f32.mrf.mxu0
      %v817 = vadd.f32 0.0, %v816
      %818 = vmatmul.f32.gmra.mxu0 %v464
      %v819 = vpop.f32.mrf.mxu0
      %v820 = vadd.f32 0.0, %v819
      %821 = vmatmul.f32.gmra.mxu0 %v467
      %v822 = vpop.f32.mrf.mxu0
      %v823 = vadd.f32 0.0, %v822
      %824 = vmatmul.f32.gmra.mxu0 %v470
      %v825 = vpop.f32.mrf.mxu0
      %v826 = vadd.f32 0.0, %v825
      %827 = vmatmul.f32.gmra.mxu0 %v473
      %v828 = vpop.f32.mrf.mxu0
      %v829 = vadd.f32 0.0, %v828
      %830 = vmatmul.f32.gmra.mxu0 %v476
      %v831 = vpop.f32.mrf.mxu0
      %v832 = vadd.f32 0.0, %v831
      %833 = vmatmul.f32.gmra.mxu0 %v479
      %v834 = vpop.f32.mrf.mxu0
      %v835 = vadd.f32 0.0, %v834
      %836 = vmatmul.f32.gmra.mxu0 %v482
      %v837 = vpop.f32.mrf.mxu0
      %v838 = vadd.f32 0.0, %v837
      %839 = vmatmul.f32.gmra.mxu0 %v485
      %v840 = vpop.f32.mrf.mxu0
      %v841 = vadd.f32 0.0, %v840
      %842 = vmatmul.f32.gmra.mxu0 %v488
      %v843 = vpop.f32.mrf.mxu0
      %v844 = vadd.f32 0.0, %v843
      %845 = vmatmul.f32.gmra.mxu0 %v491
      %v846 = vpop.f32.mrf.mxu0
      %v847 = vadd.f32 0.0, %v846
      %848 = vmatmul.f32.gmra.mxu0 %v494
      %v849 = vpop.f32.mrf.mxu0
      %v850 = vadd.f32 0.0, %v849
      %851 = vmatmul.f32.gmra.mxu0 %v497
      %v852 = vpop.f32.mrf.mxu0
      %v853 = vadd.f32 0.0, %v852
      %854 = vmatmul.f32.gmra.mxu0 %v500
      %v855 = vpop.f32.mrf.mxu0
      %v856 = vadd.f32 0.0, %v855
      %857 = vmatmul.f32.gmra.mxu0 %v503
      %v858 = vpop.f32.mrf.mxu0
      %v859 = vadd.f32 0.0, %v858
      %860 = vmatmul.f32.gmra.mxu0 %v506
      %v861 = vpop.f32.mrf.mxu0
      %v862 = vadd.f32 0.0, %v861
      %863 = vmatmul.f32.gmra.mxu0 %v509
      %v864 = vpop.f32.mrf.mxu0
      %v865 = vadd.f32 0.0, %v864
      %866 = vmatmul.f32.gmra.mxu0 %v512
      %v867 = vpop.f32.mrf.mxu0
      %v868 = vadd.f32 0.0, %v867
      %869 = vmatmul.f32.gmra.mxu0 %v515
      %v870 = vpop.f32.mrf.mxu0
      %v871 = vadd.f32 0.0, %v870
      %872 = vmatmul.f32.gmra.mxu0 %v518
      %v873 = vpop.f32.mrf.mxu0
      %v874 = vadd.f32 0.0, %v873
      %875 = vmatmul.f32.gmra.mxu0 %v521
      %v876 = vpop.f32.mrf.mxu0
      %v877 = vadd.f32 0.0, %v876
      %878 = vmatmul.f32.gmra.mxu0 %v524
      %v879 = vpop.f32.mrf.mxu0
      %v880 = vadd.f32 0.0, %v879
      %881 = vmatmul.f32.gmra.mxu0 %v527
      %v882 = vpop.f32.mrf.mxu0
      %v883 = vadd.f32 0.0, %v882
      %884 = vmatmul.f32.gmra.mxu0 %v530
      %v885 = vpop.f32.mrf.mxu0
      %v886 = vadd.f32 0.0, %v885
      %887 = vmatmul.f32.gmra.mxu0 %v533
      %v888 = vpop.f32.mrf.mxu0
      %v889 = vadd.f32 0.0, %v888
      %890 = vmatmul.f32.gmra.mxu0 %v536
      %v891 = vpop.f32.mrf.mxu0
      %v892 = vadd.f32 0.0, %v891
      %893 = vmatmul.f32.gmra.mxu0 %v539
      %v894 = vpop.f32.mrf.mxu0
      %v895 = vadd.f32 0.0, %v894
      %896 = vmatmul.f32.gmra.mxu0 %v542
      %v897 = vpop.f32.mrf.mxu0
      %v898 = vadd.f32 0.0, %v897
      %899 = vmatmul.f32.gmra.mxu0 %v545
      %v900 = vpop.f32.mrf.mxu0
      %v901 = vadd.f32 0.0, %v900
      %902 = vmatmul.f32.gmra.mxu0 %v548
      %v903 = vpop.f32.mrf.mxu0
      %v904 = vadd.f32 0.0, %v903
      %905 = vmatmul.f32.gmra.mxu0 %v551
      %v906 = vpop.f32.mrf.mxu0
      %v907 = vadd.f32 0.0, %v906
      %908 = vmatmul.f32.gmra.mxu0 %v554
      %v909 = vpop.f32.mrf.mxu0
      %v910 = vadd.f32 0.0, %v909
      %911 = vmatmul.f32.gmra.mxu0 %v557
      %v912 = vpop.f32.mrf.mxu0
      %v913 = vadd.f32 0.0, %v912
      %914 = vmatmul.f32.gmra.mxu0 %v560
      %v915 = vpop.f32.mrf.mxu0
      %v916 = vadd.f32 0.0, %v915
      %917 = vmatmul.f32.gmra.mxu0 %v563
      %v918 = vpop.f32.mrf.mxu0
      %v919 = vadd.f32 0.0, %v918
      %920 = vmatmul.f32.gmra.mxu0 %v566
      %v921 = vpop.f32.mrf.mxu0
      %v922 = vadd.f32 0.0, %v921
      %923 = vmatmul.f32.gmra.mxu0 %v569
      %v924 = vpop.f32.mrf.mxu0
      %v925 = vadd.f32 0.0, %v924
      %926 = vmatmul.f32.gmra.mxu0 %v572
      %v927 = vpop.f32.mrf.mxu0
      %v928 = vadd.f32 0.0, %v927
      %929 = vmatmul.f32.gmra.mxu0 %v575
      %v930 = vpop.f32.mrf.mxu0
      %v931 = vadd.f32 0.0, %v930
      %932 = vmatmul.f32.gmra.mxu0 %v578
      %v933 = vpop.f32.mrf.mxu0
      %v934 = vadd.f32 0.0, %v933
      %935 = vmatmul.f32.gmra.mxu0 %v581
      %v936 = vpop.f32.mrf.mxu0
      %v937 = vadd.f32 0.0, %v936
      %938 = vmatmul.f32.gmra.mxu0 %v584
      %v939 = vpop.f32.mrf.mxu0
      %v940 = vadd.f32 0.0, %v939
      %941 = vmatmul.f32.gmra.mxu0 %v587
      %v942 = vpop.f32.mrf.mxu0
      %v943 = vadd.f32 0.0, %v942
      %944 = vmatmul.f32.gmra.mxu0 %v590
      %v945 = vpop.f32.mrf.mxu0
      %v946 = vadd.f32 0.0, %v945
      %947 = vmatmul.f32.gmra.mxu0 %v593
      %v948 = vpop.f32.mrf.mxu0
      %v949 = vadd.f32 0.0, %v948
      %950 = vmatmul.f32.gmra.mxu0 %v596
      %v951 = vpop.f32.mrf.mxu0
      %v952 = vadd.f32 0.0, %v951
      %953 = vmatmul.f32.gmra.mxu0 %v599
      %v954 = vpop.f32.mrf.mxu0
      %v955 = vadd.f32 0.0, %v954
      %956 = vmatmul.f32.gmra.mxu0 %v602
      %v957 = vpop.f32.mrf.mxu0
      %v958 = vadd.f32 0.0, %v957
      %959 = vmatmul.f32.gmra.mxu0 %v605
      %v960 = vpop.f32.mrf.mxu0
      %v961 = vadd.f32 0.0, %v960
      %962 = vmatmul.f32.gmra.mxu0 %v608
      %v963 = vpop.f32.mrf.mxu0
      %v964 = vadd.f32 0.0, %v963
      %965 = vmatmul.f32.gmra.mxu0 %v611
      %v966 = vpop.f32.mrf.mxu0
      %v967 = vadd.f32 0.0, %v966
      %968 = vmatmul.f32.gmra.mxu0 %v614
      %v969 = vpop.f32.mrf.mxu0
      %v970 = vadd.f32 0.0, %v969
      %971 = vmatmul.f32.gmra.mxu0 %v617
      %v972 = vpop.f32.mrf.mxu0
      %v973 = vadd.f32 0.0, %v972
      %974 = vmatmul.f32.gmra.mxu0 %v620
      %v975 = vpop.f32.mrf.mxu0
      %v976 = vadd.f32 0.0, %v975
      %977 = vmatmul.f32.gmra.mxu0 %v623
      %v978 = vpop.f32.mrf.mxu0
      %v979 = vadd.f32 0.0, %v978
      %980 = vmatmul.f32.gmra.mxu0 %v626
      %v981 = vpop.f32.mrf.mxu0
      %v982 = vadd.f32 0.0, %v981
      %983 = vmatmul.f32.gmra.mxu0 %v629
      %v984 = vpop.f32.mrf.mxu0
      %v985 = vadd.f32 0.0, %v984
      %986 = vmatmul.f32.gmra.mxu0 %v632
      %v987 = vpop.f32.mrf.mxu0
      %v988 = vadd.f32 0.0, %v987
      %989 = vmatmul.f32.gmra.mxu0 %v635
      %v990 = vpop.f32.mrf.mxu0
      %v991 = vadd.f32 0.0, %v990
      %992 = vdwg.mxu0
      %v994 = vperm.slane %v171, 0
      %v996 = vadd.f32 %v994, %v655
      %v997 = vadd.f32 %v994, %v658
      %v998 = vadd.f32 %v994, %v661
      %v999 = vadd.f32 %v994, %v664
      %v1000 = vadd.f32 %v994, %v667
      %v1001 = vadd.f32 %v994, %v670
      %v1002 = vadd.f32 %v994, %v673
      %v1003 = vadd.f32 %v994, %v676
      %v1004 = vadd.f32 %v994, %v679
      %v1005 = vadd.f32 %v994, %v682
      %v1006 = vadd.f32 %v994, %v685
      %v1007 = vadd.f32 %v994, %v688
      %v1008 = vadd.f32 %v994, %v691
      %v1009 = vadd.f32 %v994, %v694
      %v1010 = vadd.f32 %v994, %v697
      %v1011 = vadd.f32 %v994, %v700
      %v1012 = vadd.f32 %v994, %v703
      %v1013 = vadd.f32 %v994, %v706
      %v1014 = vadd.f32 %v994, %v709
      %v1015 = vadd.f32 %v994, %v712
      %v1016 = vadd.f32 %v994, %v715
      %v1017 = vadd.f32 %v994, %v718
      %v1018 = vadd.f32 %v994, %v721
      %v1019 = vadd.f32 %v994, %v724
      %v1020 = vadd.f32 %v994, %v727
      %v1021 = vadd.f32 %v994, %v730
      %v1022 = vadd.f32 %v994, %v733
      %v1023 = vadd.f32 %v994, %v736
      %v1024 = vadd.f32 %v994, %v739
      %v1025 = vadd.f32 %v994, %v742
      %v1026 = vadd.f32 %v994, %v745
      %v1027 = vadd.f32 %v994, %v748
      %v1028 = vadd.f32 %v994, %v751
      %v1029 = vadd.f32 %v994, %v754
      %v1030 = vadd.f32 %v994, %v757
      %v1031 = vadd.f32 %v994, %v760
      %v1032 = vadd.f32 %v994, %v763
      %v1033 = vadd.f32 %v994, %v766
      %v1034 = vadd.f32 %v994, %v769
      %v1035 = vadd.f32 %v994, %v772
      %v1036 = vadd.f32 %v994, %v775
      %v1037 = vadd.f32 %v994, %v778
      %v1038 = vadd.f32 %v994, %v781
      %v1039 = vadd.f32 %v994, %v784
      %v1040 = vadd.f32 %v994, %v787
      %v1041 = vadd.f32 %v994, %v790
      %v1042 = vadd.f32 %v994, %v793
      %v1043 = vadd.f32 %v994, %v796
      %v1044 = vadd.f32 %v994, %v799
      %v1045 = vadd.f32 %v994, %v802
      %v1046 = vadd.f32 %v994, %v805
      %v1047 = vadd.f32 %v994, %v808
      %v1048 = vadd.f32 %v994, %v811
      %v1049 = vadd.f32 %v994, %v814
      %v1050 = vadd.f32 %v994, %v817
      %v1051 = vadd.f32 %v994, %v820
      %v1052 = vadd.f32 %v994, %v823
      %v1053 = vadd.f32 %v994, %v826
      %v1054 = vadd.f32 %v994, %v829
      %v1055 = vadd.f32 %v994, %v832
      %v1056 = vadd.f32 %v994, %v835
      %v1057 = vadd.f32 %v994, %v838
      %v1058 = vadd.f32 %v994, %v841
      %v1059 = vadd.f32 %v994, %v844
      %v1060 = vadd.f32 %v994, %v847
      %v1061 = vadd.f32 %v994, %v850
      %v1062 = vadd.f32 %v994, %v853
      %v1063 = vadd.f32 %v994, %v856
      %v1064 = vadd.f32 %v994, %v859
      %v1065 = vadd.f32 %v994, %v862
      %v1066 = vadd.f32 %v994, %v865
      %v1067 = vadd.f32 %v994, %v868
      %v1068 = vadd.f32 %v994, %v871
      %v1069 = vadd.f32 %v994, %v874
      %v1070 = vadd.f32 %v994, %v877
      %v1071 = vadd.f32 %v994, %v880
      %v1072 = vadd.f32 %v994, %v883
      %v1073 = vadd.f32 %v994, %v886
      %v1074 = vadd.f32 %v994, %v889
      %v1075 = vadd.f32 %v994, %v892
      %v1076 = vadd.f32 %v994, %v895
      %v1077 = vadd.f32 %v994, %v898
      %v1078 = vadd.f32 %v994, %v901
      %v1079 = vadd.f32 %v994, %v904
      %v1080 = vadd.f32 %v994, %v907
      %v1081 = vadd.f32 %v994, %v910
      %v1082 = vadd.f32 %v994, %v913
      %v1083 = vadd.f32 %v994, %v916
      %v1084 = vadd.f32 %v994, %v919
      %v1085 = vadd.f32 %v994, %v922
      %v1086 = vadd.f32 %v994, %v925
      %v1087 = vadd.f32 %v994, %v928
      %v1088 = vadd.f32 %v994, %v931
      %v1089 = vadd.f32 %v994, %v934
      %v1090 = vadd.f32 %v994, %v937
      %v1091 = vadd.f32 %v994, %v940
      %v1092 = vadd.f32 %v994, %v943
      %v1093 = vadd.f32 %v994, %v946
      %v1094 = vadd.f32 %v994, %v949
      %v1095 = vadd.f32 %v994, %v952
      %v1096 = vadd.f32 %v994, %v955
      %v1097 = vadd.f32 %v994, %v958
      %v1098 = vadd.f32 %v994, %v961
      %v1099 = vadd.f32 %v994, %v964
      %v1100 = vadd.f32 %v994, %v967
      %v1101 = vadd.f32 %v994, %v970
      %v1102 = vadd.f32 %v994, %v973
      %v1103 = vadd.f32 %v994, %v976
      %v1104 = vadd.f32 %v994, %v979
      %v1105 = vadd.f32 %v994, %v982
      %v1106 = vadd.f32 %v994, %v985
      %v1107 = vadd.f32 %v994, %v988
      %v1108 = vadd.f32 %v994, %v991
      %1109 = vst [vmem:[%s170] sm:$0xff] %v996
      %1110 = vst [vmem:[%s170 + $0x8] sm:$0xff] %v997
      %1111 = vst [vmem:[%s170 + $0x10] sm:$0xff] %v998
      %1112 = vst [vmem:[%s170 + $0x18] sm:$0xff] %v999
      %1113 = vst [vmem:[%s170 + $0x20] sm:$0xff] %v1000
      %1114 = vst [vmem:[%s170 + $0x28] sm:$0xff] %v1001
      %1115 = vst [vmem:[%s170 + $0x30] sm:$0xff] %v1002
      %1116 = vst [vmem:[%s170 + $0x38] sm:$0xff] %v1003
      %1117 = vst [vmem:[%s170 + $0x40] sm:$0xff] %v1004
      %1118 = vst [vmem:[%s170 + $0x48] sm:$0xff] %v1005
      %1119 = vst [vmem:[%s170 + $0x50] sm:$0xff] %v1006
      %1120 = vst [vmem:[%s170 + $0x58] sm:$0xff] %v1007
      %1121 = vst [vmem:[%s170 + $0x60] sm:$0xff] %v1008
      %1122 = vst [vmem:[%s170 + $0x68] sm:$0xff] %v1009
      %1123 = vst [vmem:[%s170 + $0x70] sm:$0xff] %v1010
      %1124 = vst [vmem:[%s170 + $0x78] sm:$0xff] %v1011
      %1125 = vst [vmem:[%s170 + $0x80] sm:$0xff] %v1012
      %1126 = vst [vmem:[%s170 + $0x88] sm:$0xff] %v1013
      %1127 = vst [vmem:[%s170 + $0x90] sm:$0xff] %v1014
      %1128 = vst [vmem:[%s170 + $0x98] sm:$0xff] %v1015
      %1129 = vst [vmem:[%s170 + $0xa0] sm:$0xff] %v1016
      %1130 = vst [vmem:[%s170 + $0xa8] sm:$0xff] %v1017
      %1131 = vst [vmem:[%s170 + $0xb0] sm:$0xff] %v1018
      %1132 = vst [vmem:[%s170 + $0xb8] sm:$0xff] %v1019
      %1133 = vst [vmem:[%s170 + $0xc0] sm:$0xff] %v1020
      %1134 = vst [vmem:[%s170 + $0xc8] sm:$0xff] %v1021
      %1135 = vst [vmem:[%s170 + $0xd0] sm:$0xff] %v1022
      %1136 = vst [vmem:[%s170 + $0xd8] sm:$0xff] %v1023
      %1137 = vst [vmem:[%s170 + $0xe0] sm:$0xff] %v1024
      %1138 = vst [vmem:[%s170 + $0xe8] sm:$0xff] %v1025
      %1139 = vst [vmem:[%s170 + $0xf0] sm:$0xff] %v1026
      %1140 = vst [vmem:[%s170 + $0xf8] sm:$0xff] %v1027
      %1141 = vst [vmem:[%s170 + $0x100] sm:$0xff] %v1028
      %1142 = vst [vmem:[%s170 + $0x108] sm:$0xff] %v1029
      %1143 = vst [vmem:[%s170 + $0x110] sm:$0xff] %v1030
      %1144 = vst [vmem:[%s170 + $0x118] sm:$0xff] %v1031
      %1145 = vst [vmem:[%s170 + $0x120] sm:$0xff] %v1032
      %1146 = vst [vmem:[%s170 + $0x128] sm:$0xff] %v1033
      %1147 = vst [vmem:[%s170 + $0x130] sm:$0xff] %v1034
      %1148 = vst [vmem:[%s170 + $0x138] sm:$0xff] %v1035
      %1149 = vst [vmem:[%s170 + $0x140] sm:$0xff] %v1036
      %1150 = vst [vmem:[%s170 + $0x148] sm:$0xff] %v1037
      %1151 = vst [vmem:[%s170 + $0x150] sm:$0xff] %v1038
      %1152 = vst [vmem:[%s170 + $0x158] sm:$0xff] %v1039
      %1153 = vst [vmem:[%s170 + $0x160] sm:$0xff] %v1040
      %1154 = vst [vmem:[%s170 + $0x168] sm:$0xff] %v1041
      %1155 = vst [vmem:[%s170 + $0x170] sm:$0xff] %v1042
      %1156 = vst [vmem:[%s170 + $0x178] sm:$0xff] %v1043
      %1157 = vst [vmem:[%s170 + $0x180] sm:$0xff] %v1044
      %1158 = vst [vmem:[%s170 + $0x188] sm:$0xff] %v1045
      %1159 = vst [vmem:[%s170 + $0x190] sm:$0xff] %v1046
      %1160 = vst [vmem:[%s170 + $0x198] sm:$0xff] %v1047
      %1161 = vst [vmem:[%s170 + $0x1a0] sm:$0xff] %v1048
      %1162 = vst [vmem:[%s170 + $0x1a8] sm:$0xff] %v1049
      %1163 = vst [vmem:[%s170 + $0x1b0] sm:$0xff] %v1050
      %1164 = vst [vmem:[%s170 + $0x1b8] sm:$0xff] %v1051
      %1165 = vst [vmem:[%s170 + $0x1c0] sm:$0xff] %v1052
      %1166 = vst [vmem:[%s170 + $0x1c8] sm:$0xff] %v1053
      %1167 = vst [vmem:[%s170 + $0x1d0] sm:$0xff] %v1054
      %1168 = vst [vmem:[%s170 + $0x1d8] sm:$0xff] %v1055
      %1169 = vst [vmem:[%s170 + $0x1e0] sm:$0xff] %v1056
      %1170 = vst [vmem:[%s170 + $0x1e8] sm:$0xff] %v1057
      %1171 = vst [vmem:[%s170 + $0x1f0] sm:$0xff] %v1058
      %1172 = vst [vmem:[%s170 + $0x1f8] sm:$0xff] %v1059
      %1173 = vst [vmem:[%s170 + $0x200] sm:$0xff] %v1060
      %1174 = vst [vmem:[%s170 + $0x208] sm:$0xff] %v1061
      %1175 = vst [vmem:[%s170 + $0x210] sm:$0xff] %v1062
      %1176 = vst [vmem:[%s170 + $0x218] sm:$0xff] %v1063
      %1177 = vst [vmem:[%s170 + $0x220] sm:$0xff] %v1064
      %1178 = vst [vmem:[%s170 + $0x228] sm:$0xff] %v1065
      %1179 = vst [vmem:[%s170 + $0x230] sm:$0xff] %v1066
      %1180 = vst [vmem:[%s170 + $0x238] sm:$0xff] %v1067
      %1181 = vst [vmem:[%s170 + $0x240] sm:$0xff] %v1068
      %1182 = vst [vmem:[%s170 + $0x248] sm:$0xff] %v1069
      %1183 = vst [vmem:[%s170 + $0x250] sm:$0xff] %v1070
      %1184 = vst [vmem:[%s170 + $0x258] sm:$0xff] %v1071
      %1185 = vst [vmem:[%s170 + $0x260] sm:$0xff] %v1072
      %1186 = vst [vmem:[%s170 + $0x268] sm:$0xff] %v1073
      %1187 = vst [vmem:[%s170 + $0x270] sm:$0xff] %v1074
      %1188 = vst [vmem:[%s170 + $0x278] sm:$0xff] %v1075
      %1189 = vst [vmem:[%s170 + $0x280] sm:$0xff] %v1076
      %1190 = vst [vmem:[%s170 + $0x288] sm:$0xff] %v1077
      %1191 = vst [vmem:[%s170 + $0x290] sm:$0xff] %v1078
      %1192 = vst [vmem:[%s170 + $0x298] sm:$0xff] %v1079
      %1193 = vst [vmem:[%s170 + $0x2a0] sm:$0xff] %v1080
      %1194 = vst [vmem:[%s170 + $0x2a8] sm:$0xff] %v1081
      %1195 = vst [vmem:[%s170 + $0x2b0] sm:$0xff] %v1082
      %1196 = vst [vmem:[%s170 + $0x2b8] sm:$0xff] %v1083
      %1197 = vst [vmem:[%s170 + $0x2c0] sm:$0xff] %v1084
      %1198 = vst [vmem:[%s170 + $0x2c8] sm:$0xff] %v1085
      %1199 = vst [vmem:[%s170 + $0x2d0] sm:$0xff] %v1086
      %1200 = vst [vmem:[%s170 + $0x2d8] sm:$0xff] %v1087
      %1201 = vst [vmem:[%s170 + $0x2e0] sm:$0xff] %v1088
      %1202 = vst [vmem:[%s170 + $0x2e8] sm:$0xff] %v1089
      %1203 = vst [vmem:[%s170 + $0x2f0] sm:$0xff] %v1090
      %1204 = vst [vmem:[%s170 + $0x2f8] sm:$0xff] %v1091
      %1205 = vst [vmem:[%s170 + $0x300] sm:$0xff] %v1092
      %1206 = vst [vmem:[%s170 + $0x308] sm:$0xff] %v1093
      %1207 = vst [vmem:[%s170 + $0x310] sm:$0xff] %v1094
      %1208 = vst [vmem:[%s170 + $0x318] sm:$0xff] %v1095
      %1209 = vst [vmem:[%s170 + $0x320] sm:$0xff] %v1096
      %1210 = vst [vmem:[%s170 + $0x328] sm:$0xff] %v1097
      %1211 = vst [vmem:[%s170 + $0x330] sm:$0xff] %v1098
      %1212 = vst [vmem:[%s170 + $0x338] sm:$0xff] %v1099
      %1213 = vst [vmem:[%s170 + $0x340] sm:$0xff] %v1100
      %1214 = vst [vmem:[%s170 + $0x348] sm:$0xff] %v1101
      %1215 = vst [vmem:[%s170 + $0x350] sm:$0xff] %v1102
      %1216 = vst [vmem:[%s170 + $0x358] sm:$0xff] %v1103
      %1217 = vst [vmem:[%s170 + $0x360] sm:$0xff] %v1104
      %1218 = vst [vmem:[%s170 + $0x368] sm:$0xff] %v1105
      %1219 = vst [vmem:[%s170 + $0x370] sm:$0xff] %v1106
      %1220 = vst [vmem:[%s170 + $0x378] sm:$0xff] %v1107
      %1221 = vst [vmem:[%s170 + $0x380] sm:$0xff] %v1108
      %v1222 = vld [vmem:[%s170] sm:$0xff]
      %v1223 = vld [vmem:[%s170 + $0x8] sm:$0xff]
      %v1224 = vld [vmem:[%s170 + $0x10] sm:$0xff]
      %v1225 = vld [vmem:[%s170 + $0x18] sm:$0xff]
      %v1226 = vld [vmem:[%s170 + $0x20] sm:$0xff]
      %v1227 = vld [vmem:[%s170 + $0x28] sm:$0xff]
      %v1228 = vld [vmem:[%s170 + $0x30] sm:$0xff]
      %v1229 = vld [vmem:[%s170 + $0x38] sm:$0xff]
      %v1230 = vld [vmem:[%s170 + $0x40] sm:$0xff]
      %v1231 = vld [vmem:[%s170 + $0x48] sm:$0xff]
      %v1232 = vld [vmem:[%s170 + $0x50] sm:$0xff]
      %v1233 = vld [vmem:[%s170 + $0x58] sm:$0xff]
      %v1234 = vld [vmem:[%s170 + $0x60] sm:$0xff]
      %v1235 = vld [vmem:[%s170 + $0x68] sm:$0xff]
      %v1236 = vld [vmem:[%s170 + $0x70] sm:$0xff]
      %v1237 = vld [vmem:[%s170 + $0x78] sm:$0xff]
      %v1238 = vld [vmem:[%s170 + $0x80] sm:$0xff]
      %v1239 = vld [vmem:[%s170 + $0x88] sm:$0xff]
      %v1240 = vld [vmem:[%s170 + $0x90] sm:$0xff]
      %v1241 = vld [vmem:[%s170 + $0x98] sm:$0xff]
      %v1242 = vld [vmem:[%s170 + $0xa0] sm:$0xff]
      %v1243 = vld [vmem:[%s170 + $0xa8] sm:$0xff]
      %v1244 = vld [vmem:[%s170 + $0xb0] sm:$0xff]
      %v1245 = vld [vmem:[%s170 + $0xb8] sm:$0xff]
      %v1246 = vld [vmem:[%s170 + $0xc0] sm:$0xff]
      %v1247 = vld [vmem:[%s170 + $0xc8] sm:$0xff]
      %v1248 = vld [vmem:[%s170 + $0xd0] sm:$0xff]
      %v1249 = vld [vmem:[%s170 + $0xd8] sm:$0xff]
      %v1250 = vld [vmem:[%s170 + $0xe0] sm:$0xff]
      %v1251 = vld [vmem:[%s170 + $0xe8] sm:$0xff]
      %v1252 = vld [vmem:[%s170 + $0xf0] sm:$0xff]
      %v1253 = vld [vmem:[%s170 + $0xf8] sm:$0xff]
      %v1254 = vld [vmem:[%s170 + $0x100] sm:$0xff]
      %v1255 = vld [vmem:[%s170 + $0x108] sm:$0xff]
      %v1256 = vld [vmem:[%s170 + $0x110] sm:$0xff]
      %v1257 = vld [vmem:[%s170 + $0x118] sm:$0xff]
      %v1258 = vld [vmem:[%s170 + $0x120] sm:$0xff]
      %v1259 = vld [vmem:[%s170 + $0x128] sm:$0xff]
      %v1260 = vld [vmem:[%s170 + $0x130] sm:$0xff]
      %v1261 = vld [vmem:[%s170 + $0x138] sm:$0xff]
      %v1262 = vld [vmem:[%s170 + $0x140] sm:$0xff]
      %v1263 = vld [vmem:[%s170 + $0x148] sm:$0xff]
      %v1264 = vld [vmem:[%s170 + $0x150] sm:$0xff]
      %v1265 = vld [vmem:[%s170 + $0x158] sm:$0xff]
      %v1266 = vld [vmem:[%s170 + $0x160] sm:$0xff]
      %v1267 = vld [vmem:[%s170 + $0x168] sm:$0xff]
      %v1268 = vld [vmem:[%s170 + $0x170] sm:$0xff]
      %v1269 = vld [vmem:[%s170 + $0x178] sm:$0xff]
      %v1270 = vld [vmem:[%s170 + $0x180] sm:$0xff]
      %v1271 = vld [vmem:[%s170 + $0x188] sm:$0xff]
      %v1272 = vld [vmem:[%s170 + $0x190] sm:$0xff]
      %v1273 = vld [vmem:[%s170 + $0x198] sm:$0xff]
      %v1274 = vld [vmem:[%s170 + $0x1a0] sm:$0xff]
      %v1275 = vld [vmem:[%s170 + $0x1a8] sm:$0xff]
      %v1276 = vld [vmem:[%s170 + $0x1b0] sm:$0xff]
      %v1277 = vld [vmem:[%s170 + $0x1b8] sm:$0xff]
      %v1278 = vld [vmem:[%s170 + $0x1c0] sm:$0xff]
      %v1279 = vld [vmem:[%s170 + $0x1c8] sm:$0xff]
      %v1280 = vld [vmem:[%s170 + $0x1d0] sm:$0xff]
      %v1281 = vld [vmem:[%s170 + $0x1d8] sm:$0xff]
      %v1282 = vld [vmem:[%s170 + $0x1e0] sm:$0xff]
      %v1283 = vld [vmem:[%s170 + $0x1e8] sm:$0xff]
      %v1284 = vld [vmem:[%s170 + $0x1f0] sm:$0xff]
      %v1285 = vld [vmem:[%s170 + $0x1f8] sm:$0xff]
      %v1286 = vld [vmem:[%s170 + $0x200] sm:$0xff]
      %v1287 = vld [vmem:[%s170 + $0x208] sm:$0xff]
      %v1288 = vld [vmem:[%s170 + $0x210] sm:$0xff]
      %v1289 = vld [vmem:[%s170 + $0x218] sm:$0xff]
      %v1290 = vld [vmem:[%s170 + $0x220] sm:$0xff]
      %v1291 = vld [vmem:[%s170 + $0x228] sm:$0xff]
      %v1292 = vld [vmem:[%s170 + $0x230] sm:$0xff]
      %v1293 = vld [vmem:[%s170 + $0x238] sm:$0xff]
      %v1294 = vld [vmem:[%s170 + $0x240] sm:$0xff]
      %v1295 = vld [vmem:[%s170 + $0x248] sm:$0xff]
      %v1296 = vld [vmem:[%s170 + $0x250] sm:$0xff]
      %v1297 = vld [vmem:[%s170 + $0x258] sm:$0xff]
      %v1298 = vld [vmem:[%s170 + $0x260] sm:$0xff]
      %v1299 = vld [vmem:[%s170 + $0x268] sm:$0xff]
      %v1300 = vld [vmem:[%s170 + $0x270] sm:$0xff]
      %v1301 = vld [vmem:[%s170 + $0x278] sm:$0xff]
      %v1302 = vld [vmem:[%s170 + $0x280] sm:$0xff]
      %v1303 = vld [vmem:[%s170 + $0x288] sm:$0xff]
      %v1304 = vld [vmem:[%s170 + $0x290] sm:$0xff]
      %v1305 = vld [vmem:[%s170 + $0x298] sm:$0xff]
      %v1306 = vld [vmem:[%s170 + $0x2a0] sm:$0xff]
      %v1307 = vld [vmem:[%s170 + $0x2a8] sm:$0xff]
      %v1308 = vld [vmem:[%s170 + $0x2b0] sm:$0xff]
      %v1309 = vld [vmem:[%s170 + $0x2b8] sm:$0xff]
      %v1310 = vld [vmem:[%s170 + $0x2c0] sm:$0xff]
      %v1311 = vld [vmem:[%s170 + $0x2c8] sm:$0xff]
      %v1312 = vld [vmem:[%s170 + $0x2d0] sm:$0xff]
      %v1313 = vld [vmem:[%s170 + $0x2d8] sm:$0xff]
      %v1314 = vld [vmem:[%s170 + $0x2e0] sm:$0xff]
      %v1315 = vld [vmem:[%s170 + $0x2e8] sm:$0xff]
      %v1316 = vld [vmem:[%s170 + $0x2f0] sm:$0xff]
      %v1317 = vld [vmem:[%s170 + $0x2f8] sm:$0xff]
      %v1318 = vld [vmem:[%s170 + $0x300] sm:$0xff]
      %v1319 = vld [vmem:[%s170 + $0x308] sm:$0xff]
      %v1320 = vld [vmem:[%s170 + $0x310] sm:$0xff]
      %v1321 = vld [vmem:[%s170 + $0x318] sm:$0xff]
      %v1322 = vld [vmem:[%s170 + $0x320] sm:$0xff]
      %v1323 = vld [vmem:[%s170 + $0x328] sm:$0xff]
      %v1324 = vld [vmem:[%s170 + $0x330] sm:$0xff]
      %v1325 = vld [vmem:[%s170 + $0x338] sm:$0xff]
      %v1326 = vld [vmem:[%s170 + $0x340] sm:$0xff]
      %v1327 = vld [vmem:[%s170 + $0x348] sm:$0xff]
      %v1328 = vld [vmem:[%s170 + $0x350] sm:$0xff]
      %v1329 = vld [vmem:[%s170 + $0x358] sm:$0xff]
      %v1330 = vld [vmem:[%s170 + $0x360] sm:$0xff]
      %v1331 = vld [vmem:[%s170 + $0x368] sm:$0xff]
      %v1332 = vld [vmem:[%s170 + $0x370] sm:$0xff]
      %v1333 = vld [vmem:[%s170 + $0x378] sm:$0xff]
      %v1334 = vld [vmem:[%s170 + $0x380] sm:$0xff]
      %v1335 = vld [vmem:[%s165 + $0x1e] sm:$0xff]
      %v1336 = vld [vmem:[%s165 + $0x26] sm:$0xff]
      %v1337 = vld [vmem:[%s165 + $0x2e] sm:$0xff]
      %v1338 = vld [vmem:[%s165 + $0x36] sm:$0xff]
      %v1339 = vld [vmem:[%s165 + $0x3e] sm:$0xff]
      %v1340 = vld [vmem:[%s165 + $0x46] sm:$0xff]
      %v1341 = vld [vmem:[%s165 + $0x4e] sm:$0xff]
      %v1342 = vld [vmem:[%s165 + $0x56] sm:$0xff]
      %v1343 = vld [vmem:[%s165 + $0x5e] sm:$0xff]
      %v1344 = vld [vmem:[%s165 + $0x66] sm:$0xff]
      %v1345 = vld [vmem:[%s165 + $0x6e] sm:$0xff]
      %v1346 = vld [vmem:[%s165 + $0x76] sm:$0xff]
      %v1347 = vld [vmem:[%s165 + $0x7e] sm:$0xff]
      %v1348 = vld [vmem:[%s165 + $0x86] sm:$0xff]
      %v1349 = vld [vmem:[%s165 + $0x8e] sm:$0xff]
      %v1350 = vld [vmem:[%s165 + $0x96] sm:$0xff]
      %v1351 = vld [vmem:[%s165 + $0x9e] sm:$0xff]
      %v1352 = vld [vmem:[%s165 + $0xa6] sm:$0xff]
      %v1353 = vld [vmem:[%s165 + $0xae] sm:$0xff]
      %v1354 = vld [vmem:[%s165 + $0xb6] sm:$0xff]
      %v1355 = vld [vmem:[%s165 + $0xbe] sm:$0xff]
      %v1356 = vld [vmem:[%s165 + $0xc6] sm:$0xff]
      %v1357 = vld [vmem:[%s165 + $0xce] sm:$0xff]
      %v1358 = vld [vmem:[%s165 + $0xd6] sm:$0xff]
      %v1359 = vld [vmem:[%s165 + $0xde] sm:$0xff]
      %v1360 = vld [vmem:[%s165 + $0xe6] sm:$0xff]
      %v1361 = vld [vmem:[%s165 + $0xee] sm:$0xff]
      %v1362 = vld [vmem:[%s165 + $0xf6] sm:$0xff]
      %v1363 = vld [vmem:[%s165 + $0xfe] sm:$0xff]
      %v1364 = vld [vmem:[%s165 + $0x106] sm:$0xff]
      %v1365 = vld [vmem:[%s165 + $0x10e] sm:$0xff]
      %v1366 = vld [vmem:[%s165 + $0x116] sm:$0xff]
      %v1367 = vld [vmem:[%s165 + $0x11e] sm:$0xff]
      %v1368 = vld [vmem:[%s165 + $0x126] sm:$0xff]
      %v1369 = vld [vmem:[%s165 + $0x12e] sm:$0xff]
      %v1370 = vld [vmem:[%s165 + $0x136] sm:$0xff]
      %v1371 = vld [vmem:[%s165 + $0x13e] sm:$0xff]
      %v1372 = vld [vmem:[%s165 + $0x146] sm:$0xff]
      %v1373 = vld [vmem:[%s165 + $0x14e] sm:$0xff]
      %v1374 = vld [vmem:[%s165 + $0x156] sm:$0xff]
      %v1375 = vld [vmem:[%s165 + $0x15e] sm:$0xff]
      %v1376 = vld [vmem:[%s165 + $0x166] sm:$0xff]
      %v1377 = vld [vmem:[%s165 + $0x16e] sm:$0xff]
      %v1378 = vld [vmem:[%s165 + $0x176] sm:$0xff]
      %v1379 = vld [vmem:[%s165 + $0x17e] sm:$0xff]
      %v1380 = vld [vmem:[%s165 + $0x186] sm:$0xff]
      %v1381 = vld [vmem:[%s165 + $0x18e] sm:$0xff]
      %v1382 = vld [vmem:[%s165 + $0x196] sm:$0xff]
      %v1383 = vld [vmem:[%s165 + $0x19e] sm:$0xff]
      %v1384 = vld [vmem:[%s165 + $0x1a6] sm:$0xff]
      %v1385 = vld [vmem:[%s165 + $0x1ae] sm:$0xff]
      %v1386 = vld [vmem:[%s165 + $0x1b6] sm:$0xff]
      %v1387 = vld [vmem:[%s165 + $0x1be] sm:$0xff]
      %v1388 = vld [vmem:[%s165 + $0x1c6] sm:$0xff]
      %v1389 = vld [vmem:[%s165 + $0x1ce] sm:$0xff]
      %v1390 = vld [vmem:[%s165 + $0x1d6] sm:$0xff]
      %v1391 = vld [vmem:[%s165 + $0x1de] sm:$0xff]
      %v1392 = vld [vmem:[%s165 + $0x1e6] sm:$0xff]
      %v1393 = vld [vmem:[%s165 + $0x1ee] sm:$0xff]
      %v1394 = vld [vmem:[%s165 + $0x1f6] sm:$0xff]
      %v1395 = vld [vmem:[%s165 + $0x1fe] sm:$0xff]
      %v1396 = vld [vmem:[%s165 + $0x206] sm:$0xff]
      %v1397 = vld [vmem:[%s165 + $0x20e] sm:$0xff]
      %v1398 = vld [vmem:[%s165 + $0x216] sm:$0xff]
      %v1399 = vld [vmem:[%s165 + $0x21e] sm:$0xff]
      %v1400 = vld [vmem:[%s165 + $0x226] sm:$0xff]
      %v1401 = vld [vmem:[%s165 + $0x22e] sm:$0xff]
      %v1402 = vld [vmem:[%s165 + $0x236] sm:$0xff]
      %v1403 = vld [vmem:[%s165 + $0x23e] sm:$0xff]
      %v1404 = vld [vmem:[%s165 + $0x246] sm:$0xff]
      %v1405 = vld [vmem:[%s165 + $0x24e] sm:$0xff]
      %v1406 = vld [vmem:[%s165 + $0x256] sm:$0xff]
      %v1407 = vld [vmem:[%s165 + $0x25e] sm:$0xff]
      %v1408 = vld [vmem:[%s165 + $0x266] sm:$0xff]
      %v1409 = vld [vmem:[%s165 + $0x26e] sm:$0xff]
      %v1410 = vld [vmem:[%s165 + $0x276] sm:$0xff]
      %v1411 = vld [vmem:[%s165 + $0x27e] sm:$0xff]
      %v1412 = vld [vmem:[%s165 + $0x286] sm:$0xff]
      %v1413 = vld [vmem:[%s165 + $0x28e] sm:$0xff]
      %v1414 = vld [vmem:[%s165 + $0x296] sm:$0xff]
      %v1415 = vld [vmem:[%s165 + $0x29e] sm:$0xff]
      %v1416 = vld [vmem:[%s165 + $0x2a6] sm:$0xff]
      %v1417 = vld [vmem:[%s165 + $0x2ae] sm:$0xff]
      %v1418 = vld [vmem:[%s165 + $0x2b6] sm:$0xff]
      %v1419 = vld [vmem:[%s165 + $0x2be] sm:$0xff]
      %v1420 = vld [vmem:[%s165 + $0x2c6] sm:$0xff]
      %v1421 = vld [vmem:[%s165 + $0x2ce] sm:$0xff]
      %v1422 = vld [vmem:[%s165 + $0x2d6] sm:$0xff]
      %v1423 = vld [vmem:[%s165 + $0x2de] sm:$0xff]
      %v1424 = vld [vmem:[%s165 + $0x2e6] sm:$0xff]
      %v1425 = vld [vmem:[%s165 + $0x2ee] sm:$0xff]
      %v1426 = vld [vmem:[%s165 + $0x2f6] sm:$0xff]
      %v1427 = vld [vmem:[%s165 + $0x2fe] sm:$0xff]
      %v1428 = vld [vmem:[%s165 + $0x306] sm:$0xff]
      %v1429 = vld [vmem:[%s165 + $0x30e] sm:$0xff]
      %v1430 = vld [vmem:[%s165 + $0x316] sm:$0xff]
      %v1431 = vld [vmem:[%s165 + $0x31e] sm:$0xff]
      %v1432 = vld [vmem:[%s165 + $0x326] sm:$0xff]
      %v1433 = vld [vmem:[%s165 + $0x32e] sm:$0xff]
      %v1434 = vld [vmem:[%s165 + $0x336] sm:$0xff]
      %v1435 = vld [vmem:[%s165 + $0x33e] sm:$0xff]
      %v1436 = vld [vmem:[%s165 + $0x346] sm:$0xff]
      %v1437 = vld [vmem:[%s165 + $0x34e] sm:$0xff]
      %v1438 = vld [vmem:[%s165 + $0x356] sm:$0xff]
      %v1439 = vld [vmem:[%s165 + $0x35e] sm:$0xff]
      %v1440 = vld [vmem:[%s165 + $0x366] sm:$0xff]
      %v1441 = vld [vmem:[%s165 + $0x36e] sm:$0xff]
      %v1442 = vld [vmem:[%s165 + $0x376] sm:$0xff]
      %v1443 = vld [vmem:[%s165 + $0x37e] sm:$0xff]
      %v1444 = vld [vmem:[%s165 + $0x386] sm:$0xff]
      %v1445 = vld [vmem:[%s165 + $0x38e] sm:$0xff]
      %v1446 = vld [vmem:[%s165 + $0x396] sm:$0xff]
      %v1447 = vld [vmem:[%s165 + $0x39e] sm:$0xff]
      %s1448 = scalar_lea.vmem %s1, 96
      %v1449 = vld [vmem:[%s1448] sm:$0xff]
      %v1450 = vld [vmem:[%s1448 + $0x8] sm:$0xff]
      %v1451 = vld [vmem:[%s1448 + $0x10] sm:$0xff]
      %v1452 = vld [vmem:[%s1448 + $0x18] sm:$0xff]
      %v1453 = vld [vmem:[%s1448 + $0x20] sm:$0xff]
      %v1454 = vld [vmem:[%s1448 + $0x28] sm:$0xff]
      %v1455 = vld [vmem:[%s1448 + $0x30] sm:$0xff]
      %v1456 = vld [vmem:[%s1448 + $0x38] sm:$0xff]
      %v1457 = vld [vmem:[%s1448 + $0x40] sm:$0xff]
      %v1458 = vld [vmem:[%s1448 + $0x48] sm:$0xff]
      %v1459 = vld [vmem:[%s1448 + $0x50] sm:$0xff]
      %v1460 = vld [vmem:[%s1448 + $0x58] sm:$0xff]
      %v1462 = vsel %vm297, %v1335, 0
      %v1465 = vsel %vm297, %v1336, 0
      %v1468 = vsel %vm297, %v1337, 0
      %v1471 = vsel %vm297, %v1338, 0
      %v1474 = vsel %vm297, %v1339, 0
      %v1477 = vsel %vm297, %v1340, 0
      %v1480 = vsel %vm297, %v1341, 0
      %v1483 = vsel %vm297, %v1342, 0
      %v1486 = vsel %vm297, %v1343, 0
      %v1489 = vsel %vm297, %v1344, 0
      %v1492 = vsel %vm297, %v1345, 0
      %v1495 = vsel %vm297, %v1346, 0
      %v1498 = vsel %vm297, %v1347, 0
      %v1501 = vsel %vm297, %v1348, 0
      %v1504 = vsel %vm297, %v1349, 0
      %v1507 = vsel %vm297, %v1350, 0
      %v1510 = vsel %vm297, %v1351, 0
      %v1513 = vsel %vm297, %v1352, 0
      %v1516 = vsel %vm297, %v1353, 0
      %v1519 = vsel %vm297, %v1354, 0
      %v1522 = vsel %vm297, %v1355, 0
      %v1525 = vsel %vm297, %v1356, 0
      %v1528 = vsel %vm297, %v1357, 0
      %v1531 = vsel %vm297, %v1358, 0
      %v1534 = vsel %vm297, %v1359, 0
      %v1537 = vsel %vm297, %v1360, 0
      %v1540 = vsel %vm297, %v1361, 0
      %v1543 = vsel %vm297, %v1362, 0
      %v1546 = vsel %vm297, %v1363, 0
      %v1549 = vsel %vm297, %v1364, 0
      %v1552 = vsel %vm297, %v1365, 0
      %v1555 = vsel %vm297, %v1366, 0
      %v1558 = vsel %vm297, %v1367, 0
      %v1561 = vsel %vm297, %v1368, 0
      %v1564 = vsel %vm297, %v1369, 0
      %v1567 = vsel %vm297, %v1370, 0
      %v1570 = vsel %vm297, %v1371, 0
      %v1573 = vsel %vm297, %v1372, 0
      %v1576 = vsel %vm297, %v1373, 0
      %v1579 = vsel %vm297, %v1374, 0
      %v1582 = vsel %vm297, %v1375, 0
      %v1585 = vsel %vm297, %v1376, 0
      %v1588 = vsel %vm297, %v1377, 0
      %v1591 = vsel %vm297, %v1378, 0
      %v1594 = vsel %vm297, %v1379, 0
      %v1597 = vsel %vm297, %v1380, 0
      %v1600 = vsel %vm297, %v1381, 0
      %v1603 = vsel %vm297, %v1382, 0
      %v1606 = vsel %vm297, %v1383, 0
      %v1609 = vsel %vm297, %v1384, 0
      %v1612 = vsel %vm297, %v1385, 0
      %v1615 = vsel %vm297, %v1386, 0
      %v1618 = vsel %vm297, %v1387, 0
      %v1621 = vsel %vm297, %v1388, 0
      %v1624 = vsel %vm297, %v1389, 0
      %v1627 = vsel %vm297, %v1390, 0
      %v1630 = vsel %vm297, %v1391, 0
      %v1633 = vsel %vm297, %v1392, 0
      %v1636 = vsel %vm297, %v1393, 0
      %v1639 = vsel %vm297, %v1394, 0
      %v1642 = vsel %vm297, %v1395, 0
      %v1645 = vsel %vm297, %v1396, 0
      %v1648 = vsel %vm297, %v1397, 0
      %v1651 = vsel %vm297, %v1398, 0
      %v1654 = vsel %vm297, %v1399, 0
      %v1657 = vsel %vm297, %v1400, 0
      %v1660 = vsel %vm297, %v1401, 0
      %v1663 = vsel %vm297, %v1402, 0
      %v1666 = vsel %vm297, %v1403, 0
      %v1669 = vsel %vm297, %v1404, 0
      %v1672 = vsel %vm297, %v1405, 0
      %v1675 = vsel %vm297, %v1406, 0
      %v1678 = vsel %vm297, %v1407, 0
      %v1681 = vsel %vm297, %v1408, 0
      %v1684 = vsel %vm297, %v1409, 0
      %v1687 = vsel %vm297, %v1410, 0
      %v1690 = vsel %vm297, %v1411, 0
      %v1693 = vsel %vm297, %v1412, 0
      %v1696 = vsel %vm297, %v1413, 0
      %v1699 = vsel %vm297, %v1414, 0
      %v1702 = vsel %vm297, %v1415, 0
      %v1705 = vsel %vm297, %v1416, 0
      %v1708 = vsel %vm297, %v1417, 0
      %v1711 = vsel %vm297, %v1418, 0
      %v1714 = vsel %vm297, %v1419, 0
      %v1717 = vsel %vm297, %v1420, 0
      %v1720 = vsel %vm297, %v1421, 0
      %v1723 = vsel %vm297, %v1422, 0
      %v1726 = vsel %vm297, %v1423, 0
      %v1729 = vsel %vm297, %v1424, 0
      %v1732 = vsel %vm297, %v1425, 0
      %v1735 = vsel %vm297, %v1426, 0
      %v1738 = vsel %vm297, %v1427, 0
      %v1741 = vsel %vm297, %v1428, 0
      %v1744 = vsel %vm297, %v1429, 0
      %v1747 = vsel %vm297, %v1430, 0
      %v1750 = vsel %vm297, %v1431, 0
      %v1753 = vsel %vm297, %v1432, 0
      %v1756 = vsel %vm297, %v1433, 0
      %v1759 = vsel %vm297, %v1434, 0
      %v1762 = vsel %vm297, %v1435, 0
      %v1765 = vsel %vm297, %v1436, 0
      %v1768 = vsel %vm297, %v1437, 0
      %v1771 = vsel %vm297, %v1438, 0
      %v1774 = vsel %vm297, %v1439, 0
      %v1777 = vsel %vm297, %v1440, 0
      %v1780 = vsel %vm297, %v1441, 0
      %v1783 = vsel %vm297, %v1442, 0
      %v1786 = vsel %vm297, %v1443, 0
      %v1789 = vsel %vm297, %v1444, 0
      %v1792 = vsel %vm297, %v1445, 0
      %v1795 = vsel %vm297, %v1446, 0
      %v1798 = vsel %vm297, %v1447, 0
      %1800 = vmatpush.msra.mxu0 0.0
      %1801 = vmatpush.msra.mxu0 0.0
      %1802 = vmatpush.msra.mxu0 0.0
      %1803 = vmatpush.msra.mxu0 0.0
      %1804 = vmatpush.msra.mxu0 %v1460
      %1805 = vmatpush.msra.mxu0 %v1459
      %1806 = vmatpush.msra.mxu0 %v1458
      %1807 = vmatpush.msra.mxu0 %v1457
      %1808 = vmatpush.msra.mxu0 %v1456
      %1809 = vmatpush.msra.mxu0 %v1455
      %1810 = vmatpush.msra.mxu0 %v1454
      %1811 = vmatpush.msra.mxu0 %v1453
      %1812 = vmatpush.msra.mxu0 %v1452
      %1813 = vmatpush.msra.mxu0 %v1451
      %1814 = vmatpush.msra.mxu0 %v1450
      %1815 = vmatpush.msra.mxu0 %v1449
      %1816 = vmatmul.f32.gmra.mxu0 %v1462
      %v1817 = vpop.f32.mrf.mxu0
      %v1818 = vadd.f32 0.0, %v1817
      %1819 = vmatmul.f32.gmra.mxu0 %v1465
      %v1820 = vpop.f32.mrf.mxu0
      %v1821 = vadd.f32 0.0, %v1820
      %1822 = vmatmul.f32.gmra.mxu0 %v1468
      %v1823 = vpop.f32.mrf.mxu0
      %v1824 = vadd.f32 0.0, %v1823
      %1825 = vmatmul.f32.gmra.mxu0 %v1471
      %v1826 = vpop.f32.mrf.mxu0
      %v1827 = vadd.f32 0.0, %v1826
      %1828 = vmatmul.f32.gmra.mxu0 %v1474
      %v1829 = vpop.f32.mrf.mxu0
      %v1830 = vadd.f32 0.0, %v1829
      %1831 = vmatmul.f32.gmra.mxu0 %v1477
      %v1832 = vpop.f32.mrf.mxu0
      %v1833 = vadd.f32 0.0, %v1832
      %1834 = vmatmul.f32.gmra.mxu0 %v1480
      %v1835 = vpop.f32.mrf.mxu0
      %v1836 = vadd.f32 0.0, %v1835
      %1837 = vmatmul.f32.gmra.mxu0 %v1483
      %v1838 = vpop.f32.mrf.mxu0
      %v1839 = vadd.f32 0.0, %v1838
      %1840 = vmatmul.f32.gmra.mxu0 %v1486
      %v1841 = vpop.f32.mrf.mxu0
      %v1842 = vadd.f32 0.0, %v1841
      %1843 = vmatmul.f32.gmra.mxu0 %v1489
      %v1844 = vpop.f32.mrf.mxu0
      %v1845 = vadd.f32 0.0, %v1844
      %1846 = vmatmul.f32.gmra.mxu0 %v1492
      %v1847 = vpop.f32.mrf.mxu0
      %v1848 = vadd.f32 0.0, %v1847
      %1849 = vmatmul.f32.gmra.mxu0 %v1495
      %v1850 = vpop.f32.mrf.mxu0
      %v1851 = vadd.f32 0.0, %v1850
      %1852 = vmatmul.f32.gmra.mxu0 %v1498
      %v1853 = vpop.f32.mrf.mxu0
      %v1854 = vadd.f32 0.0, %v1853
      %1855 = vmatmul.f32.gmra.mxu0 %v1501
      %v1856 = vpop.f32.mrf.mxu0
      %v1857 = vadd.f32 0.0, %v1856
      %1858 = vmatmul.f32.gmra.mxu0 %v1504
      %v1859 = vpop.f32.mrf.mxu0
      %v1860 = vadd.f32 0.0, %v1859
      %1861 = vmatmul.f32.gmra.mxu0 %v1507
      %v1862 = vpop.f32.mrf.mxu0
      %v1863 = vadd.f32 0.0, %v1862
      %1864 = vmatmul.f32.gmra.mxu0 %v1510
      %v1865 = vpop.f32.mrf.mxu0
      %v1866 = vadd.f32 0.0, %v1865
      %1867 = vmatmul.f32.gmra.mxu0 %v1513
      %v1868 = vpop.f32.mrf.mxu0
      %v1869 = vadd.f32 0.0, %v1868
      %1870 = vmatmul.f32.gmra.mxu0 %v1516
      %v1871 = vpop.f32.mrf.mxu0
      %v1872 = vadd.f32 0.0, %v1871
      %1873 = vmatmul.f32.gmra.mxu0 %v1519
      %v1874 = vpop.f32.mrf.mxu0
      %v1875 = vadd.f32 0.0, %v1874
      %1876 = vmatmul.f32.gmra.mxu0 %v1522
      %v1877 = vpop.f32.mrf.mxu0
      %v1878 = vadd.f32 0.0, %v1877
      %1879 = vmatmul.f32.gmra.mxu0 %v1525
      %v1880 = vpop.f32.mrf.mxu0
      %v1881 = vadd.f32 0.0, %v1880
      %1882 = vmatmul.f32.gmra.mxu0 %v1528
      %v1883 = vpop.f32.mrf.mxu0
      %v1884 = vadd.f32 0.0, %v1883
      %1885 = vmatmul.f32.gmra.mxu0 %v1531
      %v1886 = vpop.f32.mrf.mxu0
      %v1887 = vadd.f32 0.0, %v1886
      %1888 = vmatmul.f32.gmra.mxu0 %v1534
      %v1889 = vpop.f32.mrf.mxu0
      %v1890 = vadd.f32 0.0, %v1889
      %1891 = vmatmul.f32.gmra.mxu0 %v1537
      %v1892 = vpop.f32.mrf.mxu0
      %v1893 = vadd.f32 0.0, %v1892
      %1894 = vmatmul.f32.gmra.mxu0 %v1540
      %v1895 = vpop.f32.mrf.mxu0
      %v1896 = vadd.f32 0.0, %v1895
      %1897 = vmatmul.f32.gmra.mxu0 %v1543
      %v1898 = vpop.f32.mrf.mxu0
      %v1899 = vadd.f32 0.0, %v1898
      %1900 = vmatmul.f32.gmra.mxu0 %v1546
      %v1901 = vpop.f32.mrf.mxu0
      %v1902 = vadd.f32 0.0, %v1901
      %1903 = vmatmul.f32.gmra.mxu0 %v1549
      %v1904 = vpop.f32.mrf.mxu0
      %v1905 = vadd.f32 0.0, %v1904
      %1906 = vmatmul.f32.gmra.mxu0 %v1552
      %v1907 = vpop.f32.mrf.mxu0
      %v1908 = vadd.f32 0.0, %v1907
      %1909 = vmatmul.f32.gmra.mxu0 %v1555
      %v1910 = vpop.f32.mrf.mxu0
      %v1911 = vadd.f32 0.0, %v1910
      %1912 = vmatmul.f32.gmra.mxu0 %v1558
      %v1913 = vpop.f32.mrf.mxu0
      %v1914 = vadd.f32 0.0, %v1913
      %1915 = vmatmul.f32.gmra.mxu0 %v1561
      %v1916 = vpop.f32.mrf.mxu0
      %v1917 = vadd.f32 0.0, %v1916
      %1918 = vmatmul.f32.gmra.mxu0 %v1564
      %v1919 = vpop.f32.mrf.mxu0
      %v1920 = vadd.f32 0.0, %v1919
      %1921 = vmatmul.f32.gmra.mxu0 %v1567
      %v1922 = vpop.f32.mrf.mxu0
      %v1923 = vadd.f32 0.0, %v1922
      %1924 = vmatmul.f32.gmra.mxu0 %v1570
      %v1925 = vpop.f32.mrf.mxu0
      %v1926 = vadd.f32 0.0, %v1925
      %1927 = vmatmul.f32.gmra.mxu0 %v1573
      %v1928 = vpop.f32.mrf.mxu0
      %v1929 = vadd.f32 0.0, %v1928
      %1930 = vmatmul.f32.gmra.mxu0 %v1576
      %v1931 = vpop.f32.mrf.mxu0
      %v1932 = vadd.f32 0.0, %v1931
      %1933 = vmatmul.f32.gmra.mxu0 %v1579
      %v1934 = vpop.f32.mrf.mxu0
      %v1935 = vadd.f32 0.0, %v1934
      %1936 = vmatmul.f32.gmra.mxu0 %v1582
      %v1937 = vpop.f32.mrf.mxu0
      %v1938 = vadd.f32 0.0, %v1937
      %1939 = vmatmul.f32.gmra.mxu0 %v1585
      %v1940 = vpop.f32.mrf.mxu0
      %v1941 = vadd.f32 0.0, %v1940
      %1942 = vmatmul.f32.gmra.mxu0 %v1588
      %v1943 = vpop.f32.mrf.mxu0
      %v1944 = vadd.f32 0.0, %v1943
      %1945 = vmatmul.f32.gmra.mxu0 %v1591
      %v1946 = vpop.f32.mrf.mxu0
      %v1947 = vadd.f32 0.0, %v1946
      %1948 = vmatmul.f32.gmra.mxu0 %v1594
      %v1949 = vpop.f32.mrf.mxu0
      %v1950 = vadd.f32 0.0, %v1949
      %1951 = vmatmul.f32.gmra.mxu0 %v1597
      %v1952 = vpop.f32.mrf.mxu0
      %v1953 = vadd.f32 0.0, %v1952
      %1954 = vmatmul.f32.gmra.mxu0 %v1600
      %v1955 = vpop.f32.mrf.mxu0
      %v1956 = vadd.f32 0.0, %v1955
      %1957 = vmatmul.f32.gmra.mxu0 %v1603
      %v1958 = vpop.f32.mrf.mxu0
      %v1959 = vadd.f32 0.0, %v1958
      %1960 = vmatmul.f32.gmra.mxu0 %v1606
      %v1961 = vpop.f32.mrf.mxu0
      %v1962 = vadd.f32 0.0, %v1961
      %1963 = vmatmul.f32.gmra.mxu0 %v1609
      %v1964 = vpop.f32.mrf.mxu0
      %v1965 = vadd.f32 0.0, %v1964
      %1966 = vmatmul.f32.gmra.mxu0 %v1612
      %v1967 = vpop.f32.mrf.mxu0
      %v1968 = vadd.f32 0.0, %v1967
      %1969 = vmatmul.f32.gmra.mxu0 %v1615
      %v1970 = vpop.f32.mrf.mxu0
      %v1971 = vadd.f32 0.0, %v1970
      %1972 = vmatmul.f32.gmra.mxu0 %v1618
      %v1973 = vpop.f32.mrf.mxu0
      %v1974 = vadd.f32 0.0, %v1973
      %1975 = vmatmul.f32.gmra.mxu0 %v1621
      %v1976 = vpop.f32.mrf.mxu0
      %v1977 = vadd.f32 0.0, %v1976
      %1978 = vmatmul.f32.gmra.mxu0 %v1624
      %v1979 = vpop.f32.mrf.mxu0
      %v1980 = vadd.f32 0.0, %v1979
      %1981 = vmatmul.f32.gmra.mxu0 %v1627
      %v1982 = vpop.f32.mrf.mxu0
      %v1983 = vadd.f32 0.0, %v1982
      %1984 = vmatmul.f32.gmra.mxu0 %v1630
      %v1985 = vpop.f32.mrf.mxu0
      %v1986 = vadd.f32 0.0, %v1985
      %1987 = vmatmul.f32.gmra.mxu0 %v1633
      %v1988 = vpop.f32.mrf.mxu0
      %v1989 = vadd.f32 0.0, %v1988
      %1990 = vmatmul.f32.gmra.mxu0 %v1636
      %v1991 = vpop.f32.mrf.mxu0
      %v1992 = vadd.f32 0.0, %v1991
      %1993 = vmatmul.f32.gmra.mxu0 %v1639
      %v1994 = vpop.f32.mrf.mxu0
      %v1995 = vadd.f32 0.0, %v1994
      %1996 = vmatmul.f32.gmra.mxu0 %v1642
      %v1997 = vpop.f32.mrf.mxu0
      %v1998 = vadd.f32 0.0, %v1997
      %1999 = vmatmul.f32.gmra.mxu0 %v1645
      %v2000 = vpop.f32.mrf.mxu0
      %v2001 = vadd.f32 0.0, %v2000
      %2002 = vmatmul.f32.gmra.mxu0 %v1648
      %v2003 = vpop.f32.mrf.mxu0
      %v2004 = vadd.f32 0.0, %v2003
      %2005 = vmatmul.f32.gmra.mxu0 %v1651
      %v2006 = vpop.f32.mrf.mxu0
      %v2007 = vadd.f32 0.0, %v2006
      %2008 = vmatmul.f32.gmra.mxu0 %v1654
      %v2009 = vpop.f32.mrf.mxu0
      %v2010 = vadd.f32 0.0, %v2009
      %2011 = vmatmul.f32.gmra.mxu0 %v1657
      %v2012 = vpop.f32.mrf.mxu0
      %v2013 = vadd.f32 0.0, %v2012
      %2014 = vmatmul.f32.gmra.mxu0 %v1660
      %v2015 = vpop.f32.mrf.mxu0
      %v2016 = vadd.f32 0.0, %v2015
      %2017 = vmatmul.f32.gmra.mxu0 %v1663
      %v2018 = vpop.f32.mrf.mxu0
      %v2019 = vadd.f32 0.0, %v2018
      %2020 = vmatmul.f32.gmra.mxu0 %v1666
      %v2021 = vpop.f32.mrf.mxu0
      %v2022 = vadd.f32 0.0, %v2021
      %2023 = vmatmul.f32.gmra.mxu0 %v1669
      %v2024 = vpop.f32.mrf.mxu0
      %v2025 = vadd.f32 0.0, %v2024
      %2026 = vmatmul.f32.gmra.mxu0 %v1672
      %v2027 = vpop.f32.mrf.mxu0
      %v2028 = vadd.f32 0.0, %v2027
      %2029 = vmatmul.f32.gmra.mxu0 %v1675
      %v2030 = vpop.f32.mrf.mxu0
      %v2031 = vadd.f32 0.0, %v2030
      %2032 = vmatmul.f32.gmra.mxu0 %v1678
      %v2033 = vpop.f32.mrf.mxu0
      %v2034 = vadd.f32 0.0, %v2033
      %2035 = vmatmul.f32.gmra.mxu0 %v1681
      %v2036 = vpop.f32.mrf.mxu0
      %v2037 = vadd.f32 0.0, %v2036
      %2038 = vmatmul.f32.gmra.mxu0 %v1684
      %v2039 = vpop.f32.mrf.mxu0
      %v2040 = vadd.f32 0.0, %v2039
      %2041 = vmatmul.f32.gmra.mxu0 %v1687
      %v2042 = vpop.f32.mrf.mxu0
      %v2043 = vadd.f32 0.0, %v2042
      %2044 = vmatmul.f32.gmra.mxu0 %v1690
      %v2045 = vpop.f32.mrf.mxu0
      %v2046 = vadd.f32 0.0, %v2045
      %2047 = vmatmul.f32.gmra.mxu0 %v1693
      %v2048 = vpop.f32.mrf.mxu0
      %v2049 = vadd.f32 0.0, %v2048
      %2050 = vmatmul.f32.gmra.mxu0 %v1696
      %v2051 = vpop.f32.mrf.mxu0
      %v2052 = vadd.f32 0.0, %v2051
      %2053 = vmatmul.f32.gmra.mxu0 %v1699
      %v2054 = vpop.f32.mrf.mxu0
      %v2055 = vadd.f32 0.0, %v2054
      %2056 = vmatmul.f32.gmra.mxu0 %v1702
      %v2057 = vpop.f32.mrf.mxu0
      %v2058 = vadd.f32 0.0, %v2057
      %2059 = vmatmul.f32.gmra.mxu0 %v1705
      %v2060 = vpop.f32.mrf.mxu0
      %v2061 = vadd.f32 0.0, %v2060
      %2062 = vmatmul.f32.gmra.mxu0 %v1708
      %v2063 = vpop.f32.mrf.mxu0
      %v2064 = vadd.f32 0.0, %v2063
      %2065 = vmatmul.f32.gmra.mxu0 %v1711
      %v2066 = vpop.f32.mrf.mxu0
      %v2067 = vadd.f32 0.0, %v2066
      %2068 = vmatmul.f32.gmra.mxu0 %v1714
      %v2069 = vpop.f32.mrf.mxu0
      %v2070 = vadd.f32 0.0, %v2069
      %2071 = vmatmul.f32.gmra.mxu0 %v1717
      %v2072 = vpop.f32.mrf.mxu0
      %v2073 = vadd.f32 0.0, %v2072
      %2074 = vmatmul.f32.gmra.mxu0 %v1720
      %v2075 = vpop.f32.mrf.mxu0
      %v2076 = vadd.f32 0.0, %v2075
      %2077 = vmatmul.f32.gmra.mxu0 %v1723
      %v2078 = vpop.f32.mrf.mxu0
      %v2079 = vadd.f32 0.0, %v2078
      %2080 = vmatmul.f32.gmra.mxu0 %v1726
      %v2081 = vpop.f32.mrf.mxu0
      %v2082 = vadd.f32 0.0, %v2081
      %2083 = vmatmul.f32.gmra.mxu0 %v1729
      %v2084 = vpop.f32.mrf.mxu0
      %v2085 = vadd.f32 0.0, %v2084
      %2086 = vmatmul.f32.gmra.mxu0 %v1732
      %v2087 = vpop.f32.mrf.mxu0
      %v2088 = vadd.f32 0.0, %v2087
      %2089 = vmatmul.f32.gmra.mxu0 %v1735
      %v2090 = vpop.f32.mrf.mxu0
      %v2091 = vadd.f32 0.0, %v2090
      %2092 = vmatmul.f32.gmra.mxu0 %v1738
      %v2093 = vpop.f32.mrf.mxu0
      %v2094 = vadd.f32 0.0, %v2093
      %2095 = vmatmul.f32.gmra.mxu0 %v1741
      %v2096 = vpop.f32.mrf.mxu0
      %v2097 = vadd.f32 0.0, %v2096
      %2098 = vmatmul.f32.gmra.mxu0 %v1744
      %v2099 = vpop.f32.mrf.mxu0
      %v2100 = vadd.f32 0.0, %v2099
      %2101 = vmatmul.f32.gmra.mxu0 %v1747
      %v2102 = vpop.f32.mrf.mxu0
      %v2103 = vadd.f32 0.0, %v2102
      %2104 = vmatmul.f32.gmra.mxu0 %v1750
      %v2105 = vpop.f32.mrf.mxu0
      %v2106 = vadd.f32 0.0, %v2105
      %2107 = vmatmul.f32.gmra.mxu0 %v1753
      %v2108 = vpop.f32.mrf.mxu0
      %v2109 = vadd.f32 0.0, %v2108
      %2110 = vmatmul.f32.gmra.mxu0 %v1756
      %v2111 = vpop.f32.mrf.mxu0
      %v2112 = vadd.f32 0.0, %v2111
      %2113 = vmatmul.f32.gmra.mxu0 %v1759
      %v2114 = vpop.f32.mrf.mxu0
      %v2115 = vadd.f32 0.0, %v2114
      %2116 = vmatmul.f32.gmra.mxu0 %v1762
      %v2117 = vpop.f32.mrf.mxu0
      %v2118 = vadd.f32 0.0, %v2117
      %2119 = vmatmul.f32.gmra.mxu0 %v1765
      %v2120 = vpop.f32.mrf.mxu0
      %v2121 = vadd.f32 0.0, %v2120
      %2122 = vmatmul.f32.gmra.mxu0 %v1768
      %v2123 = vpop.f32.mrf.mxu0
      %v2124 = vadd.f32 0.0, %v2123
      %2125 = vmatmul.f32.gmra.mxu0 %v1771
      %v2126 = vpop.f32.mrf.mxu0
      %v2127 = vadd.f32 0.0, %v2126
      %2128 = vmatmul.f32.gmra.mxu0 %v1774
      %v2129 = vpop.f32.mrf.mxu0
      %v2130 = vadd.f32 0.0, %v2129
      %2131 = vmatmul.f32.gmra.mxu0 %v1777
      %v2132 = vpop.f32.mrf.mxu0
      %v2133 = vadd.f32 0.0, %v2132
      %2134 = vmatmul.f32.gmra.mxu0 %v1780
      %v2135 = vpop.f32.mrf.mxu0
      %v2136 = vadd.f32 0.0, %v2135
      %2137 = vmatmul.f32.gmra.mxu0 %v1783
      %v2138 = vpop.f32.mrf.mxu0
      %v2139 = vadd.f32 0.0, %v2138
      %2140 = vmatmul.f32.gmra.mxu0 %v1786
      %v2141 = vpop.f32.mrf.mxu0
      %v2142 = vadd.f32 0.0, %v2141
      %2143 = vmatmul.f32.gmra.mxu0 %v1789
      %v2144 = vpop.f32.mrf.mxu0
      %v2145 = vadd.f32 0.0, %v2144
      %2146 = vmatmul.f32.gmra.mxu0 %v1792
      %v2147 = vpop.f32.mrf.mxu0
      %v2148 = vadd.f32 0.0, %v2147
      %2149 = vmatmul.f32.gmra.mxu0 %v1795
      %v2150 = vpop.f32.mrf.mxu0
      %v2151 = vadd.f32 0.0, %v2150
      %2152 = vmatmul.f32.gmra.mxu0 %v1798
      %v2153 = vpop.f32.mrf.mxu0
      %v2154 = vadd.f32 0.0, %v2153
      %2155 = vdwg.mxu0
      %v2156 = vadd.f32 %v1222, %v1818
      %v2157 = vadd.f32 %v1223, %v1821
      %v2158 = vadd.f32 %v1224, %v1824
      %v2159 = vadd.f32 %v1225, %v1827
      %v2160 = vadd.f32 %v1226, %v1830
      %v2161 = vadd.f32 %v1227, %v1833
      %v2162 = vadd.f32 %v1228, %v1836
      %v2163 = vadd.f32 %v1229, %v1839
      %v2164 = vadd.f32 %v1230, %v1842
      %v2165 = vadd.f32 %v1231, %v1845
      %v2166 = vadd.f32 %v1232, %v1848
      %v2167 = vadd.f32 %v1233, %v1851
      %v2168 = vadd.f32 %v1234, %v1854
      %v2169 = vadd.f32 %v1235, %v1857
      %v2170 = vadd.f32 %v1236, %v1860
      %v2171 = vadd.f32 %v1237, %v1863
      %v2172 = vadd.f32 %v1238, %v1866
      %v2173 = vadd.f32 %v1239, %v1869
      %v2174 = vadd.f32 %v1240, %v1872
      %v2175 = vadd.f32 %v1241, %v1875
      %v2176 = vadd.f32 %v1242, %v1878
      %v2177 = vadd.f32 %v1243, %v1881
      %v2178 = vadd.f32 %v1244, %v1884
      %v2179 = vadd.f32 %v1245, %v1887
      %v2180 = vadd.f32 %v1246, %v1890
      %v2181 = vadd.f32 %v1247, %v1893
      %v2182 = vadd.f32 %v1248, %v1896
      %v2183 = vadd.f32 %v1249, %v1899
      %v2184 = vadd.f32 %v1250, %v1902
      %v2185 = vadd.f32 %v1251, %v1905
      %v2186 = vadd.f32 %v1252, %v1908
      %v2187 = vadd.f32 %v1253, %v1911
      %v2188 = vadd.f32 %v1254, %v1914
      %v2189 = vadd.f32 %v1255, %v1917
      %v2190 = vadd.f32 %v1256, %v1920
      %v2191 = vadd.f32 %v1257, %v1923
      %v2192 = vadd.f32 %v1258, %v1926
      %v2193 = vadd.f32 %v1259, %v1929
      %v2194 = vadd.f32 %v1260, %v1932
      %v2195 = vadd.f32 %v1261, %v1935
      %v2196 = vadd.f32 %v1262, %v1938
      %v2197 = vadd.f32 %v1263, %v1941
      %v2198 = vadd.f32 %v1264, %v1944
      %v2199 = vadd.f32 %v1265, %v1947
      %v2200 = vadd.f32 %v1266, %v1950
      %v2201 = vadd.f32 %v1267, %v1953
      %v2202 = vadd.f32 %v1268, %v1956
      %v2203 = vadd.f32 %v1269, %v1959
      %v2204 = vadd.f32 %v1270, %v1962
      %v2205 = vadd.f32 %v1271, %v1965
      %v2206 = vadd.f32 %v1272, %v1968
      %v2207 = vadd.f32 %v1273, %v1971
      %v2208 = vadd.f32 %v1274, %v1974
      %v2209 = vadd.f32 %v1275, %v1977
      %v2210 = vadd.f32 %v1276, %v1980
      %v2211 = vadd.f32 %v1277, %v1983
      %v2212 = vadd.f32 %v1278, %v1986
      %v2213 = vadd.f32 %v1279, %v1989
      %v2214 = vadd.f32 %v1280, %v1992
      %v2215 = vadd.f32 %v1281, %v1995
      %v2216 = vadd.f32 %v1282, %v1998
      %v2217 = vadd.f32 %v1283, %v2001
      %v2218 = vadd.f32 %v1284, %v2004
      %v2219 = vadd.f32 %v1285, %v2007
      %v2220 = vadd.f32 %v1286, %v2010
      %v2221 = vadd.f32 %v1287, %v2013
      %v2222 = vadd.f32 %v1288, %v2016
      %v2223 = vadd.f32 %v1289, %v2019
      %v2224 = vadd.f32 %v1290, %v2022
      %v2225 = vadd.f32 %v1291, %v2025
      %v2226 = vadd.f32 %v1292, %v2028
      %v2227 = vadd.f32 %v1293, %v2031
      %v2228 = vadd.f32 %v1294, %v2034
      %v2229 = vadd.f32 %v1295, %v2037
      %v2230 = vadd.f32 %v1296, %v2040
      %v2231 = vadd.f32 %v1297, %v2043
      %v2232 = vadd.f32 %v1298, %v2046
      %v2233 = vadd.f32 %v1299, %v2049
      %v2234 = vadd.f32 %v1300, %v2052
      %v2235 = vadd.f32 %v1301, %v2055
      %v2236 = vadd.f32 %v1302, %v2058
      %v2237 = vadd.f32 %v1303, %v2061
      %v2238 = vadd.f32 %v1304, %v2064
      %v2239 = vadd.f32 %v1305, %v2067
      %v2240 = vadd.f32 %v1306, %v2070
      %v2241 = vadd.f32 %v1307, %v2073
      %v2242 = vadd.f32 %v1308, %v2076
      %v2243 = vadd.f32 %v1309, %v2079
      %v2244 = vadd.f32 %v1310, %v2082
      %v2245 = vadd.f32 %v1311, %v2085
      %v2246 = vadd.f32 %v1312, %v2088
      %v2247 = vadd.f32 %v1313, %v2091
      %v2248 = vadd.f32 %v1314, %v2094
      %v2249 = vadd.f32 %v1315, %v2097
      %v2250 = vadd.f32 %v1316, %v2100
      %v2251 = vadd.f32 %v1317, %v2103
      %v2252 = vadd.f32 %v1318, %v2106
      %v2253 = vadd.f32 %v1319, %v2109
      %v2254 = vadd.f32 %v1320, %v2112
      %v2255 = vadd.f32 %v1321, %v2115
      %v2256 = vadd.f32 %v1322, %v2118
      %v2257 = vadd.f32 %v1323, %v2121
      %v2258 = vadd.f32 %v1324, %v2124
      %v2259 = vadd.f32 %v1325, %v2127
      %v2260 = vadd.f32 %v1326, %v2130
      %v2261 = vadd.f32 %v1327, %v2133
      %v2262 = vadd.f32 %v1328, %v2136
      %v2263 = vadd.f32 %v1329, %v2139
      %v2264 = vadd.f32 %v1330, %v2142
      %v2265 = vadd.f32 %v1331, %v2145
      %v2266 = vadd.f32 %v1332, %v2148
      %v2267 = vadd.f32 %v1333, %v2151
      %v2268 = vadd.f32 %v1334, %v2154
      %2269 = vst [vmem:[%s170] sm:$0xff] %v2156
      %2270 = vst [vmem:[%s170 + $0x8] sm:$0xff] %v2157
      %2271 = vst [vmem:[%s170 + $0x10] sm:$0xff] %v2158
      %2272 = vst [vmem:[%s170 + $0x18] sm:$0xff] %v2159
      %2273 = vst [vmem:[%s170 + $0x20] sm:$0xff] %v2160
      %2274 = vst [vmem:[%s170 + $0x28] sm:$0xff] %v2161
      %2275 = vst [vmem:[%s170 + $0x30] sm:$0xff] %v2162
      %2276 = vst [vmem:[%s170 + $0x38] sm:$0xff] %v2163
      %2277 = vst [vmem:[%s170 + $0x40] sm:$0xff] %v2164
      %2278 = vst [vmem:[%s170 + $0x48] sm:$0xff] %v2165
      %2279 = vst [vmem:[%s170 + $0x50] sm:$0xff] %v2166
      %2280 = vst [vmem:[%s170 + $0x58] sm:$0xff] %v2167
      %2281 = vst [vmem:[%s170 + $0x60] sm:$0xff] %v2168
      %2282 = vst [vmem:[%s170 + $0x68] sm:$0xff] %v2169
      %2283 = vst [vmem:[%s170 + $0x70] sm:$0xff] %v2170
      %2284 = vst [vmem:[%s170 + $0x78] sm:$0xff] %v2171
      %2285 = vst [vmem:[%s170 + $0x80] sm:$0xff] %v2172
      %2286 = vst [vmem:[%s170 + $0x88] sm:$0xff] %v2173
      %2287 = vst [vmem:[%s170 + $0x90] sm:$0xff] %v2174
      %2288 = vst [vmem:[%s170 + $0x98] sm:$0xff] %v2175
      %2289 = vst [vmem:[%s170 + $0xa0] sm:$0xff] %v2176
      %2290 = vst [vmem:[%s170 + $0xa8] sm:$0xff] %v2177
      %2291 = vst [vmem:[%s170 + $0xb0] sm:$0xff] %v2178
      %2292 = vst [vmem:[%s170 + $0xb8] sm:$0xff] %v2179
      %2293 = vst [vmem:[%s170 + $0xc0] sm:$0xff] %v2180
      %2294 = vst [vmem:[%s170 + $0xc8] sm:$0xff] %v2181
      %2295 = vst [vmem:[%s170 + $0xd0] sm:$0xff] %v2182
      %2296 = vst [vmem:[%s170 + $0xd8] sm:$0xff] %v2183
      %2297 = vst [vmem:[%s170 + $0xe0] sm:$0xff] %v2184
      %2298 = vst [vmem:[%s170 + $0xe8] sm:$0xff] %v2185
      %2299 = vst [vmem:[%s170 + $0xf0] sm:$0xff] %v2186
      %2300 = vst [vmem:[%s170 + $0xf8] sm:$0xff] %v2187
      %2301 = vst [vmem:[%s170 + $0x100] sm:$0xff] %v2188
      %2302 = vst [vmem:[%s170 + $0x108] sm:$0xff] %v2189
      %2303 = vst [vmem:[%s170 + $0x110] sm:$0xff] %v2190
      %2304 = vst [vmem:[%s170 + $0x118] sm:$0xff] %v2191
      %2305 = vst [vmem:[%s170 + $0x120] sm:$0xff] %v2192
      %2306 = vst [vmem:[%s170 + $0x128] sm:$0xff] %v2193
      %2307 = vst [vmem:[%s170 + $0x130] sm:$0xff] %v2194
      %2308 = vst [vmem:[%s170 + $0x138] sm:$0xff] %v2195
      %2309 = vst [vmem:[%s170 + $0x140] sm:$0xff] %v2196
      %2310 = vst [vmem:[%s170 + $0x148] sm:$0xff] %v2197
      %2311 = vst [vmem:[%s170 + $0x150] sm:$0xff] %v2198
      %2312 = vst [vmem:[%s170 + $0x158] sm:$0xff] %v2199
      %2313 = vst [vmem:[%s170 + $0x160] sm:$0xff] %v2200
      %2314 = vst [vmem:[%s170 + $0x168] sm:$0xff] %v2201
      %2315 = vst [vmem:[%s170 + $0x170] sm:$0xff] %v2202
      %2316 = vst [vmem:[%s170 + $0x178] sm:$0xff] %v2203
      %2317 = vst [vmem:[%s170 + $0x180] sm:$0xff] %v2204
      %2318 = vst [vmem:[%s170 + $0x188] sm:$0xff] %v2205
      %2319 = vst [vmem:[%s170 + $0x190] sm:$0xff] %v2206
      %2320 = vst [vmem:[%s170 + $0x198] sm:$0xff] %v2207
      %2321 = vst [vmem:[%s170 + $0x1a0] sm:$0xff] %v2208
      %2322 = vst [vmem:[%s170 + $0x1a8] sm:$0xff] %v2209
      %2323 = vst [vmem:[%s170 + $0x1b0] sm:$0xff] %v2210
      %2324 = vst [vmem:[%s170 + $0x1b8] sm:$0xff] %v2211
      %2325 = vst [vmem:[%s170 + $0x1c0] sm:$0xff] %v2212
      %2326 = vst [vmem:[%s170 + $0x1c8] sm:$0xff] %v2213
      %2327 = vst [vmem:[%s170 + $0x1d0] sm:$0xff] %v2214
      %2328 = vst [vmem:[%s170 + $0x1d8] sm:$0xff] %v2215
      %2329 = vst [vmem:[%s170 + $0x1e0] sm:$0xff] %v2216
      %2330 = vst [vmem:[%s170 + $0x1e8] sm:$0xff] %v2217
      %2331 = vst [vmem:[%s170 + $0x1f0] sm:$0xff] %v2218
      %2332 = vst [vmem:[%s170 + $0x1f8] sm:$0xff] %v2219
      %2333 = vst [vmem:[%s170 + $0x200] sm:$0xff] %v2220
      %2334 = vst [vmem:[%s170 + $0x208] sm:$0xff] %v2221
      %2335 = vst [vmem:[%s170 + $0x210] sm:$0xff] %v2222
      %2336 = vst [vmem:[%s170 + $0x218] sm:$0xff] %v2223
      %2337 = vst [vmem:[%s170 + $0x220] sm:$0xff] %v2224
      %2338 = vst [vmem:[%s170 + $0x228] sm:$0xff] %v2225
      %2339 = vst [vmem:[%s170 + $0x230] sm:$0xff] %v2226
      %2340 = vst [vmem:[%s170 + $0x238] sm:$0xff] %v2227
      %2341 = vst [vmem:[%s170 + $0x240] sm:$0xff] %v2228
      %2342 = vst [vmem:[%s170 + $0x248] sm:$0xff] %v2229
      %2343 = vst [vmem:[%s170 + $0x250] sm:$0xff] %v2230
      %2344 = vst [vmem:[%s170 + $0x258] sm:$0xff] %v2231
      %2345 = vst [vmem:[%s170 + $0x260] sm:$0xff] %v2232
      %2346 = vst [vmem:[%s170 + $0x268] sm:$0xff] %v2233
      %2347 = vst [vmem:[%s170 + $0x270] sm:$0xff] %v2234
      %2348 = vst [vmem:[%s170 + $0x278] sm:$0xff] %v2235
      %2349 = vst [vmem:[%s170 + $0x280] sm:$0xff] %v2236
      %2350 = vst [vmem:[%s170 + $0x288] sm:$0xff] %v2237
      %2351 = vst [vmem:[%s170 + $0x290] sm:$0xff] %v2238
      %2352 = vst [vmem:[%s170 + $0x298] sm:$0xff] %v2239
      %2353 = vst [vmem:[%s170 + $0x2a0] sm:$0xff] %v2240
      %2354 = vst [vmem:[%s170 + $0x2a8] sm:$0xff] %v2241
      %2355 = vst [vmem:[%s170 + $0x2b0] sm:$0xff] %v2242
      %2356 = vst [vmem:[%s170 + $0x2b8] sm:$0xff] %v2243
      %2357 = vst [vmem:[%s170 + $0x2c0] sm:$0xff] %v2244
      %2358 = vst [vmem:[%s170 + $0x2c8] sm:$0xff] %v2245
      %2359 = vst [vmem:[%s170 + $0x2d0] sm:$0xff] %v2246
      %2360 = vst [vmem:[%s170 + $0x2d8] sm:$0xff] %v2247
      %2361 = vst [vmem:[%s170 + $0x2e0] sm:$0xff] %v2248
      %2362 = vst [vmem:[%s170 + $0x2e8] sm:$0xff] %v2249
      %2363 = vst [vmem:[%s170 + $0x2f0] sm:$0xff] %v2250
      %2364 = vst [vmem:[%s170 + $0x2f8] sm:$0xff] %v2251
      %2365 = vst [vmem:[%s170 + $0x300] sm:$0xff] %v2252
      %2366 = vst [vmem:[%s170 + $0x308] sm:$0xff] %v2253
      %2367 = vst [vmem:[%s170 + $0x310] sm:$0xff] %v2254
      %2368 = vst [vmem:[%s170 + $0x318] sm:$0xff] %v2255
      %2369 = vst [vmem:[%s170 + $0x320] sm:$0xff] %v2256
      %2370 = vst [vmem:[%s170 + $0x328] sm:$0xff] %v2257
      %2371 = vst [vmem:[%s170 + $0x330] sm:$0xff] %v2258
      %2372 = vst [vmem:[%s170 + $0x338] sm:$0xff] %v2259
      %2373 = vst [vmem:[%s170 + $0x340] sm:$0xff] %v2260
      %2374 = vst [vmem:[%s170 + $0x348] sm:$0xff] %v2261
      %2375 = vst [vmem:[%s170 + $0x350] sm:$0xff] %v2262
      %2376 = vst [vmem:[%s170 + $0x358] sm:$0xff] %v2263
      %2377 = vst [vmem:[%s170 + $0x360] sm:$0xff] %v2264
      %2378 = vst [vmem:[%s170 + $0x368] sm:$0xff] %v2265
      %2379 = vst [vmem:[%s170 + $0x370] sm:$0xff] %v2266
      %2380 = vst [vmem:[%s170 + $0x378] sm:$0xff] %v2267
      %2381 = vst [vmem:[%s170 + $0x380] sm:$0xff] %v2268
      %v2382 = vld [vmem:[%s170] sm:$0xff]
      %v2383 = vld [vmem:[%s170 + $0x8] sm:$0xff]
      %v2384 = vld [vmem:[%s170 + $0x10] sm:$0xff]
      %v2385 = vld [vmem:[%s170 + $0x18] sm:$0xff]
      %v2386 = vld [vmem:[%s170 + $0x20] sm:$0xff]
      %v2387 = vld [vmem:[%s170 + $0x28] sm:$0xff]
      %v2388 = vld [vmem:[%s170 + $0x30] sm:$0xff]
      %v2389 = vld [vmem:[%s170 + $0x38] sm:$0xff]
      %v2390 = vld [vmem:[%s170 + $0x40] sm:$0xff]
      %v2391 = vld [vmem:[%s170 + $0x48] sm:$0xff]
      %v2392 = vld [vmem:[%s170 + $0x50] sm:$0xff]
      %v2393 = vld [vmem:[%s170 + $0x58] sm:$0xff]
      %v2394 = vld [vmem:[%s170 + $0x60] sm:$0xff]
      %v2395 = vld [vmem:[%s170 + $0x68] sm:$0xff]
      %v2396 = vld [vmem:[%s170 + $0x70] sm:$0xff]
      %v2397 = vld [vmem:[%s170 + $0x78] sm:$0xff]
      %v2398 = vld [vmem:[%s170 + $0x80] sm:$0xff]
      %v2399 = vld [vmem:[%s170 + $0x88] sm:$0xff]
      %v2400 = vld [vmem:[%s170 + $0x90] sm:$0xff]
      %v2401 = vld [vmem:[%s170 + $0x98] sm:$0xff]
      %v2402 = vld [vmem:[%s170 + $0xa0] sm:$0xff]
      %v2403 = vld [vmem:[%s170 + $0xa8] sm:$0xff]
      %v2404 = vld [vmem:[%s170 + $0xb0] sm:$0xff]
      %v2405 = vld [vmem:[%s170 + $0xb8] sm:$0xff]
      %v2406 = vld [vmem:[%s170 + $0xc0] sm:$0xff]
      %v2407 = vld [vmem:[%s170 + $0xc8] sm:$0xff]
      %v2408 = vld [vmem:[%s170 + $0xd0] sm:$0xff]
      %v2409 = vld [vmem:[%s170 + $0xd8] sm:$0xff]
      %v2410 = vld [vmem:[%s170 + $0xe0] sm:$0xff]
      %v2411 = vld [vmem:[%s170 + $0xe8] sm:$0xff]
      %v2412 = vld [vmem:[%s170 + $0xf0] sm:$0xff]
      %v2413 = vld [vmem:[%s170 + $0xf8] sm:$0xff]
      %v2414 = vld [vmem:[%s170 + $0x100] sm:$0xff]
      %v2415 = vld [vmem:[%s170 + $0x108] sm:$0xff]
      %v2416 = vld [vmem:[%s170 + $0x110] sm:$0xff]
      %v2417 = vld [vmem:[%s170 + $0x118] sm:$0xff]
      %v2418 = vld [vmem:[%s170 + $0x120] sm:$0xff]
      %v2419 = vld [vmem:[%s170 + $0x128] sm:$0xff]
      %v2420 = vld [vmem:[%s170 + $0x130] sm:$0xff]
      %v2421 = vld [vmem:[%s170 + $0x138] sm:$0xff]
      %v2422 = vld [vmem:[%s170 + $0x140] sm:$0xff]
      %v2423 = vld [vmem:[%s170 + $0x148] sm:$0xff]
      %v2424 = vld [vmem:[%s170 + $0x150] sm:$0xff]
      %v2425 = vld [vmem:[%s170 + $0x158] sm:$0xff]
      %v2426 = vld [vmem:[%s170 + $0x160] sm:$0xff]
      %v2427 = vld [vmem:[%s170 + $0x168] sm:$0xff]
      %v2428 = vld [vmem:[%s170 + $0x170] sm:$0xff]
      %v2429 = vld [vmem:[%s170 + $0x178] sm:$0xff]
      %v2430 = vld [vmem:[%s170 + $0x180] sm:$0xff]
      %v2431 = vld [vmem:[%s170 + $0x188] sm:$0xff]
      %v2432 = vld [vmem:[%s170 + $0x190] sm:$0xff]
      %v2433 = vld [vmem:[%s170 + $0x198] sm:$0xff]
      %v2434 = vld [vmem:[%s170 + $0x1a0] sm:$0xff]
      %v2435 = vld [vmem:[%s170 + $0x1a8] sm:$0xff]
      %v2436 = vld [vmem:[%s170 + $0x1b0] sm:$0xff]
      %v2437 = vld [vmem:[%s170 + $0x1b8] sm:$0xff]
      %v2438 = vld [vmem:[%s170 + $0x1c0] sm:$0xff]
      %v2439 = vld [vmem:[%s170 + $0x1c8] sm:$0xff]
      %v2440 = vld [vmem:[%s170 + $0x1d0] sm:$0xff]
      %v2441 = vld [vmem:[%s170 + $0x1d8] sm:$0xff]
      %v2442 = vld [vmem:[%s170 + $0x1e0] sm:$0xff]
      %v2443 = vld [vmem:[%s170 + $0x1e8] sm:$0xff]
      %v2444 = vld [vmem:[%s170 + $0x1f0] sm:$0xff]
      %v2445 = vld [vmem:[%s170 + $0x1f8] sm:$0xff]
      %v2446 = vld [vmem:[%s170 + $0x200] sm:$0xff]
      %v2447 = vld [vmem:[%s170 + $0x208] sm:$0xff]
      %v2448 = vld [vmem:[%s170 + $0x210] sm:$0xff]
      %v2449 = vld [vmem:[%s170 + $0x218] sm:$0xff]
      %v2450 = vld [vmem:[%s170 + $0x220] sm:$0xff]
      %v2451 = vld [vmem:[%s170 + $0x228] sm:$0xff]
      %v2452 = vld [vmem:[%s170 + $0x230] sm:$0xff]
      %v2453 = vld [vmem:[%s170 + $0x238] sm:$0xff]
      %v2454 = vld [vmem:[%s170 + $0x240] sm:$0xff]
      %v2455 = vld [vmem:[%s170 + $0x248] sm:$0xff]
      %v2456 = vld [vmem:[%s170 + $0x250] sm:$0xff]
      %v2457 = vld [vmem:[%s170 + $0x258] sm:$0xff]
      %v2458 = vld [vmem:[%s170 + $0x260] sm:$0xff]
      %v2459 = vld [vmem:[%s170 + $0x268] sm:$0xff]
      %v2460 = vld [vmem:[%s170 + $0x270] sm:$0xff]
      %v2461 = vld [vmem:[%s170 + $0x278] sm:$0xff]
      %v2462 = vld [vmem:[%s170 + $0x280] sm:$0xff]
      %v2463 = vld [vmem:[%s170 + $0x288] sm:$0xff]
      %v2464 = vld [vmem:[%s170 + $0x290] sm:$0xff]
      %v2465 = vld [vmem:[%s170 + $0x298] sm:$0xff]
      %v2466 = vld [vmem:[%s170 + $0x2a0] sm:$0xff]
      %v2467 = vld [vmem:[%s170 + $0x2a8] sm:$0xff]
      %v2468 = vld [vmem:[%s170 + $0x2b0] sm:$0xff]
      %v2469 = vld [vmem:[%s170 + $0x2b8] sm:$0xff]
      %v2470 = vld [vmem:[%s170 + $0x2c0] sm:$0xff]
      %v2471 = vld [vmem:[%s170 + $0x2c8] sm:$0xff]
      %v2472 = vld [vmem:[%s170 + $0x2d0] sm:$0xff]
      %v2473 = vld [vmem:[%s170 + $0x2d8] sm:$0xff]
      %v2474 = vld [vmem:[%s170 + $0x2e0] sm:$0xff]
      %v2475 = vld [vmem:[%s170 + $0x2e8] sm:$0xff]
      %v2476 = vld [vmem:[%s170 + $0x2f0] sm:$0xff]
      %v2477 = vld [vmem:[%s170 + $0x2f8] sm:$0xff]
      %v2478 = vld [vmem:[%s170 + $0x300] sm:$0xff]
      %v2479 = vld [vmem:[%s170 + $0x308] sm:$0xff]
      %v2480 = vld [vmem:[%s170 + $0x310] sm:$0xff]
      %v2481 = vld [vmem:[%s170 + $0x318] sm:$0xff]
      %v2482 = vld [vmem:[%s170 + $0x320] sm:$0xff]
      %v2483 = vld [vmem:[%s170 + $0x328] sm:$0xff]
      %v2484 = vld [vmem:[%s170 + $0x330] sm:$0xff]
      %v2485 = vld [vmem:[%s170 + $0x338] sm:$0xff]
      %v2486 = vld [vmem:[%s170 + $0x340] sm:$0xff]
      %v2487 = vld [vmem:[%s170 + $0x348] sm:$0xff]
      %v2488 = vld [vmem:[%s170 + $0x350] sm:$0xff]
      %v2489 = vld [vmem:[%s170 + $0x358] sm:$0xff]
      %v2490 = vld [vmem:[%s170 + $0x360] sm:$0xff]
      %v2491 = vld [vmem:[%s170 + $0x368] sm:$0xff]
      %v2492 = vld [vmem:[%s170 + $0x370] sm:$0xff]
      %v2493 = vld [vmem:[%s170 + $0x378] sm:$0xff]
      %v2494 = vld [vmem:[%s170 + $0x380] sm:$0xff]
      %v2495 = vld [vmem:[%s165 + $0x3c] sm:$0xff]
      %v2496 = vld [vmem:[%s165 + $0x44] sm:$0xff]
      %v2497 = vld [vmem:[%s165 + $0x4c] sm:$0xff]
      %v2498 = vld [vmem:[%s165 + $0x54] sm:$0xff]
      %v2499 = vld [vmem:[%s165 + $0x5c] sm:$0xff]
      %v2500 = vld [vmem:[%s165 + $0x64] sm:$0xff]
      %v2501 = vld [vmem:[%s165 + $0x6c] sm:$0xff]
      %v2502 = vld [vmem:[%s165 + $0x74] sm:$0xff]
      %v2503 = vld [vmem:[%s165 + $0x7c] sm:$0xff]
      %v2504 = vld [vmem:[%s165 + $0x84] sm:$0xff]
      %v2505 = vld [vmem:[%s165 + $0x8c] sm:$0xff]
      %v2506 = vld [vmem:[%s165 + $0x94] sm:$0xff]
      %v2507 = vld [vmem:[%s165 + $0x9c] sm:$0xff]
      %v2508 = vld [vmem:[%s165 + $0xa4] sm:$0xff]
      %v2509 = vld [vmem:[%s165 + $0xac] sm:$0xff]
      %v2510 = vld [vmem:[%s165 + $0xb4] sm:$0xff]
      %v2511 = vld [vmem:[%s165 + $0xbc] sm:$0xff]
      %v2512 = vld [vmem:[%s165 + $0xc4] sm:$0xff]
      %v2513 = vld [vmem:[%s165 + $0xcc] sm:$0xff]
      %v2514 = vld [vmem:[%s165 + $0xd4] sm:$0xff]
      %v2515 = vld [vmem:[%s165 + $0xdc] sm:$0xff]
      %v2516 = vld [vmem:[%s165 + $0xe4] sm:$0xff]
      %v2517 = vld [vmem:[%s165 + $0xec] sm:$0xff]
      %v2518 = vld [vmem:[%s165 + $0xf4] sm:$0xff]
      %v2519 = vld [vmem:[%s165 + $0xfc] sm:$0xff]
      %v2520 = vld [vmem:[%s165 + $0x104] sm:$0xff]
      %v2521 = vld [vmem:[%s165 + $0x10c] sm:$0xff]
      %v2522 = vld [vmem:[%s165 + $0x114] sm:$0xff]
      %v2523 = vld [vmem:[%s165 + $0x11c] sm:$0xff]
      %v2524 = vld [vmem:[%s165 + $0x124] sm:$0xff]
      %v2525 = vld [vmem:[%s165 + $0x12c] sm:$0xff]
      %v2526 = vld [vmem:[%s165 + $0x134] sm:$0xff]
      %v2527 = vld [vmem:[%s165 + $0x13c] sm:$0xff]
      %v2528 = vld [vmem:[%s165 + $0x144] sm:$0xff]
      %v2529 = vld [vmem:[%s165 + $0x14c] sm:$0xff]
      %v2530 = vld [vmem:[%s165 + $0x154] sm:$0xff]
      %v2531 = vld [vmem:[%s165 + $0x15c] sm:$0xff]
      %v2532 = vld [vmem:[%s165 + $0x164] sm:$0xff]
      %v2533 = vld [vmem:[%s165 + $0x16c] sm:$0xff]
      %v2534 = vld [vmem:[%s165 + $0x174] sm:$0xff]
      %v2535 = vld [vmem:[%s165 + $0x17c] sm:$0xff]
      %v2536 = vld [vmem:[%s165 + $0x184] sm:$0xff]
      %v2537 = vld [vmem:[%s165 + $0x18c] sm:$0xff]
      %v2538 = vld [vmem:[%s165 + $0x194] sm:$0xff]
      %v2539 = vld [vmem:[%s165 + $0x19c] sm:$0xff]
      %v2540 = vld [vmem:[%s165 + $0x1a4] sm:$0xff]
      %v2541 = vld [vmem:[%s165 + $0x1ac] sm:$0xff]
      %v2542 = vld [vmem:[%s165 + $0x1b4] sm:$0xff]
      %v2543 = vld [vmem:[%s165 + $0x1bc] sm:$0xff]
      %v2544 = vld [vmem:[%s165 + $0x1c4] sm:$0xff]
      %v2545 = vld [vmem:[%s165 + $0x1cc] sm:$0xff]
      %v2546 = vld [vmem:[%s165 + $0x1d4] sm:$0xff]
      %v2547 = vld [vmem:[%s165 + $0x1dc] sm:$0xff]
      %v2548 = vld [vmem:[%s165 + $0x1e4] sm:$0xff]
      %v2549 = vld [vmem:[%s165 + $0x1ec] sm:$0xff]
      %v2550 = vld [vmem:[%s165 + $0x1f4] sm:$0xff]
      %v2551 = vld [vmem:[%s165 + $0x1fc] sm:$0xff]
      %v2552 = vld [vmem:[%s165 + $0x204] sm:$0xff]
      %v2553 = vld [vmem:[%s165 + $0x20c] sm:$0xff]
      %v2554 = vld [vmem:[%s165 + $0x214] sm:$0xff]
      %v2555 = vld [vmem:[%s165 + $0x21c] sm:$0xff]
      %v2556 = vld [vmem:[%s165 + $0x224] sm:$0xff]
      %v2557 = vld [vmem:[%s165 + $0x22c] sm:$0xff]
      %v2558 = vld [vmem:[%s165 + $0x234] sm:$0xff]
      %v2559 = vld [vmem:[%s165 + $0x23c] sm:$0xff]
      %v2560 = vld [vmem:[%s165 + $0x244] sm:$0xff]
      %v2561 = vld [vmem:[%s165 + $0x24c] sm:$0xff]
      %v2562 = vld [vmem:[%s165 + $0x254] sm:$0xff]
      %v2563 = vld [vmem:[%s165 + $0x25c] sm:$0xff]
      %v2564 = vld [vmem:[%s165 + $0x264] sm:$0xff]
      %v2565 = vld [vmem:[%s165 + $0x26c] sm:$0xff]
      %v2566 = vld [vmem:[%s165 + $0x274] sm:$0xff]
      %v2567 = vld [vmem:[%s165 + $0x27c] sm:$0xff]
      %v2568 = vld [vmem:[%s165 + $0x284] sm:$0xff]
      %v2569 = vld [vmem:[%s165 + $0x28c] sm:$0xff]
      %v2570 = vld [vmem:[%s165 + $0x294] sm:$0xff]
      %v2571 = vld [vmem:[%s165 + $0x29c] sm:$0xff]
      %v2572 = vld [vmem:[%s165 + $0x2a4] sm:$0xff]
      %v2573 = vld [vmem:[%s165 + $0x2ac] sm:$0xff]
      %v2574 = vld [vmem:[%s165 + $0x2b4] sm:$0xff]
      %v2575 = vld [vmem:[%s165 + $0x2bc] sm:$0xff]
      %v2576 = vld [vmem:[%s165 + $0x2c4] sm:$0xff]
      %v2577 = vld [vmem:[%s165 + $0x2cc] sm:$0xff]
      %v2578 = vld [vmem:[%s165 + $0x2d4] sm:$0xff]
      %v2579 = vld [vmem:[%s165 + $0x2dc] sm:$0xff]
      %v2580 = vld [vmem:[%s165 + $0x2e4] sm:$0xff]
      %v2581 = vld [vmem:[%s165 + $0x2ec] sm:$0xff]
      %v2582 = vld [vmem:[%s165 + $0x2f4] sm:$0xff]
      %v2583 = vld [vmem:[%s165 + $0x2fc] sm:$0xff]
      %v2584 = vld [vmem:[%s165 + $0x304] sm:$0xff]
      %v2585 = vld [vmem:[%s165 + $0x30c] sm:$0xff]
      %v2586 = vld [vmem:[%s165 + $0x314] sm:$0xff]
      %v2587 = vld [vmem:[%s165 + $0x31c] sm:$0xff]
      %v2588 = vld [vmem:[%s165 + $0x324] sm:$0xff]
      %v2589 = vld [vmem:[%s165 + $0x32c] sm:$0xff]
      %v2590 = vld [vmem:[%s165 + $0x334] sm:$0xff]
      %v2591 = vld [vmem:[%s165 + $0x33c] sm:$0xff]
      %v2592 = vld [vmem:[%s165 + $0x344] sm:$0xff]
      %v2593 = vld [vmem:[%s165 + $0x34c] sm:$0xff]
      %v2594 = vld [vmem:[%s165 + $0x354] sm:$0xff]
      %v2595 = vld [vmem:[%s165 + $0x35c] sm:$0xff]
      %v2596 = vld [vmem:[%s165 + $0x364] sm:$0xff]
      %v2597 = vld [vmem:[%s165 + $0x36c] sm:$0xff]
      %v2598 = vld [vmem:[%s165 + $0x374] sm:$0xff]
      %v2599 = vld [vmem:[%s165 + $0x37c] sm:$0xff]
      %v2600 = vld [vmem:[%s165 + $0x384] sm:$0xff]
      %v2601 = vld [vmem:[%s165 + $0x38c] sm:$0xff]
      %v2602 = vld [vmem:[%s165 + $0x394] sm:$0xff]
      %v2603 = vld [vmem:[%s165 + $0x39c] sm:$0xff]
      %v2604 = vld [vmem:[%s165 + $0x3a4] sm:$0xff]
      %v2605 = vld [vmem:[%s165 + $0x3ac] sm:$0xff]
      %v2606 = vld [vmem:[%s165 + $0x3b4] sm:$0xff]
      %v2607 = vld [vmem:[%s165 + $0x3bc] sm:$0xff]
      %s2608 = scalar_lea.vmem %s1, 192
      %v2609 = vld [vmem:[%s2608] sm:$0xff]
      %v2610 = vld [vmem:[%s2608 + $0x8] sm:$0xff]
      %v2611 = vld [vmem:[%s2608 + $0x10] sm:$0xff]
      %v2612 = vld [vmem:[%s2608 + $0x18] sm:$0xff]
      %v2613 = vld [vmem:[%s2608 + $0x20] sm:$0xff]
      %v2614 = vld [vmem:[%s2608 + $0x28] sm:$0xff]
      %v2615 = vld [vmem:[%s2608 + $0x30] sm:$0xff]
      %v2616 = vld [vmem:[%s2608 + $0x38] sm:$0xff]
      %v2617 = vld [vmem:[%s2608 + $0x40] sm:$0xff]
      %v2618 = vld [vmem:[%s2608 + $0x48] sm:$0xff]
      %v2619 = vld [vmem:[%s2608 + $0x50] sm:$0xff]
      %v2620 = vld [vmem:[%s2608 + $0x58] sm:$0xff]
      %v2622 = vsel %vm297, %v2495, 0
      %v2625 = vsel %vm297, %v2496, 0
      %v2628 = vsel %vm297, %v2497, 0
      %v2631 = vsel %vm297, %v2498, 0
      %v2634 = vsel %vm297, %v2499, 0
      %v2637 = vsel %vm297, %v2500, 0
      %v2640 = vsel %vm297, %v2501, 0
      %v2643 = vsel %vm297, %v2502, 0
      %v2646 = vsel %vm297, %v2503, 0
      %v2649 = vsel %vm297, %v2504, 0
      %v2652 = vsel %vm297, %v2505, 0
      %v2655 = vsel %vm297, %v2506, 0
      %v2658 = vsel %vm297, %v2507, 0
      %v2661 = vsel %vm297, %v2508, 0
      %v2664 = vsel %vm297, %v2509, 0
      %v2667 = vsel %vm297, %v2510, 0
      %v2670 = vsel %vm297, %v2511, 0
      %v2673 = vsel %vm297, %v2512, 0
      %v2676 = vsel %vm297, %v2513, 0
      %v2679 = vsel %vm297, %v2514, 0
      %v2682 = vsel %vm297, %v2515, 0
      %v2685 = vsel %vm297, %v2516, 0
      %v2688 = vsel %vm297, %v2517, 0
      %v2691 = vsel %vm297, %v2518, 0
      %v2694 = vsel %vm297, %v2519, 0
      %v2697 = vsel %vm297, %v2520, 0
      %v2700 = vsel %vm297, %v2521, 0
      %v2703 = vsel %vm297, %v2522, 0
      %v2706 = vsel %vm297, %v2523, 0
      %v2709 = vsel %vm297, %v2524, 0
      %v2712 = vsel %vm297, %v2525, 0
      %v2715 = vsel %vm297, %v2526, 0
      %v2718 = vsel %vm297, %v2527, 0
      %v2721 = vsel %vm297, %v2528, 0
      %v2724 = vsel %vm297, %v2529, 0
      %v2727 = vsel %vm297, %v2530, 0
      %v2730 = vsel %vm297, %v2531, 0
      %v2733 = vsel %vm297, %v2532, 0
      %v2736 = vsel %vm297, %v2533, 0
      %v2739 = vsel %vm297, %v2534, 0
      %v2742 = vsel %vm297, %v2535, 0
      %v2745 = vsel %vm297, %v2536, 0
      %v2748 = vsel %vm297, %v2537, 0
      %v2751 = vsel %vm297, %v2538, 0
      %v2754 = vsel %vm297, %v2539, 0
      %v2757 = vsel %vm297, %v2540, 0
      %v2760 = vsel %vm297, %v2541, 0
      %v2763 = vsel %vm297, %v2542, 0
      %v2766 = vsel %vm297, %v2543, 0
      %v2769 = vsel %vm297, %v2544, 0
      %v2772 = vsel %vm297, %v2545, 0
      %v2775 = vsel %vm297, %v2546, 0
      %v2778 = vsel %vm297, %v2547, 0
      %v2781 = vsel %vm297, %v2548, 0
      %v2784 = vsel %vm297, %v2549, 0
      %v2787 = vsel %vm297, %v2550, 0
      %v2790 = vsel %vm297, %v2551, 0
      %v2793 = vsel %vm297, %v2552, 0
      %v2796 = vsel %vm297, %v2553, 0
      %v2799 = vsel %vm297, %v2554, 0
      %v2802 = vsel %vm297, %v2555, 0
      %v2805 = vsel %vm297, %v2556, 0
      %v2808 = vsel %vm297, %v2557, 0
      %v2811 = vsel %vm297, %v2558, 0
      %v2814 = vsel %vm297, %v2559, 0
      %v2817 = vsel %vm297, %v2560, 0
      %v2820 = vsel %vm297, %v2561, 0
      %v2823 = vsel %vm297, %v2562, 0
      %v2826 = vsel %vm297, %v2563, 0
      %v2829 = vsel %vm297, %v2564, 0
      %v2832 = vsel %vm297, %v2565, 0
      %v2835 = vsel %vm297, %v2566, 0
      %v2838 = vsel %vm297, %v2567, 0
      %v2841 = vsel %vm297, %v2568, 0
      %v2844 = vsel %vm297, %v2569, 0
      %v2847 = vsel %vm297, %v2570, 0
      %v2850 = vsel %vm297, %v2571, 0
      %v2853 = vsel %vm297, %v2572, 0
      %v2856 = vsel %vm297, %v2573, 0
      %v2859 = vsel %vm297, %v2574, 0
      %v2862 = vsel %vm297, %v2575, 0
      %v2865 = vsel %vm297, %v2576, 0
      %v2868 = vsel %vm297, %v2577, 0
      %v2871 = vsel %vm297, %v2578, 0
      %v2874 = vsel %vm297, %v2579, 0
      %v2877 = vsel %vm297, %v2580, 0
      %v2880 = vsel %vm297, %v2581, 0
      %v2883 = vsel %vm297, %v2582, 0
      %v2886 = vsel %vm297, %v2583, 0
      %v2889 = vsel %vm297, %v2584, 0
      %v2892 = vsel %vm297, %v2585, 0
      %v2895 = vsel %vm297, %v2586, 0
      %v2898 = vsel %vm297, %v2587, 0
      %v2901 = vsel %vm297, %v2588, 0
      %v2904 = vsel %vm297, %v2589, 0
      %v2907 = vsel %vm297, %v2590, 0
      %v2910 = vsel %vm297, %v2591, 0
      %v2913 = vsel %vm297, %v2592, 0
      %v2916 = vsel %vm297, %v2593, 0
      %v2919 = vsel %vm297, %v2594, 0
      %v2922 = vsel %vm297, %v2595, 0
      %v2925 = vsel %vm297, %v2596, 0
      %v2928 = vsel %vm297, %v2597, 0
      %v2931 = vsel %vm297, %v2598, 0
      %v2934 = vsel %vm297, %v2599, 0
      %v2937 = vsel %vm297, %v2600, 0
      %v2940 = vsel %vm297, %v2601, 0
      %v2943 = vsel %vm297, %v2602, 0
      %v2946 = vsel %vm297, %v2603, 0
      %v2949 = vsel %vm297, %v2604, 0
      %v2952 = vsel %vm297, %v2605, 0
      %v2955 = vsel %vm297, %v2606, 0
      %v2958 = vsel %vm297, %v2607, 0
      %2960 = vmatpush.msra.mxu0 0.0
      %2961 = vmatpush.msra.mxu0 0.0
      %2962 = vmatpush.msra.mxu0 0.0
      %2963 = vmatpush.msra.mxu0 0.0
      %2964 = vmatpush.msra.mxu0 %v2620
      %2965 = vmatpush.msra.mxu0 %v2619
      %2966 = vmatpush.msra.mxu0 %v2618
      %2967 = vmatpush.msra.mxu0 %v2617
      %2968 = vmatpush.msra.mxu0 %v2616
      %2969 = vmatpush.msra.mxu0 %v2615
      %2970 = vmatpush.msra.mxu0 %v2614
      %2971 = vmatpush.msra.mxu0 %v2613
      %2972 = vmatpush.msra.mxu0 %v2612
      %2973 = vmatpush.msra.mxu0 %v2611
      %2974 = vmatpush.msra.mxu0 %v2610
      %2975 = vmatpush.msra.mxu0 %v2609
      %2976 = vmatmul.f32.gmra.mxu0 %v2622
      %v2977 = vpop.f32.mrf.mxu0
      %v2978 = vadd.f32 0.0, %v2977
      %2979 = vmatmul.f32.gmra.mxu0 %v2625
      %v2980 = vpop.f32.mrf.mxu0
      %v2981 = vadd.f32 0.0, %v2980
      %2982 = vmatmul.f32.gmra.mxu0 %v2628
      %v2983 = vpop.f32.mrf.mxu0
      %v2984 = vadd.f32 0.0, %v2983
      %2985 = vmatmul.f32.gmra.mxu0 %v2631
      %v2986 = vpop.f32.mrf.mxu0
      %v2987 = vadd.f32 0.0, %v2986
      %2988 = vmatmul.f32.gmra.mxu0 %v2634
      %v2989 = vpop.f32.mrf.mxu0
      %v2990 = vadd.f32 0.0, %v2989
      %2991 = vmatmul.f32.gmra.mxu0 %v2637
      %v2992 = vpop.f32.mrf.mxu0
      %v2993 = vadd.f32 0.0, %v2992
      %2994 = vmatmul.f32.gmra.mxu0 %v2640
      %v2995 = vpop.f32.mrf.mxu0
      %v2996 = vadd.f32 0.0, %v2995
      %2997 = vmatmul.f32.gmra.mxu0 %v2643
      %v2998 = vpop.f32.mrf.mxu0
      %v2999 = vadd.f32 0.0, %v2998
      %3000 = vmatmul.f32.gmra.mxu0 %v2646
      %v3001 = vpop.f32.mrf.mxu0
      %v3002 = vadd.f32 0.0, %v3001
      %3003 = vmatmul.f32.gmra.mxu0 %v2649
      %v3004 = vpop.f32.mrf.mxu0
      %v3005 = vadd.f32 0.0, %v3004
      %3006 = vmatmul.f32.gmra.mxu0 %v2652
      %v3007 = vpop.f32.mrf.mxu0
      %v3008 = vadd.f32 0.0, %v3007
      %3009 = vmatmul.f32.gmra.mxu0 %v2655
      %v3010 = vpop.f32.mrf.mxu0
      %v3011 = vadd.f32 0.0, %v3010
      %3012 = vmatmul.f32.gmra.mxu0 %v2658
      %v3013 = vpop.f32.mrf.mxu0
      %v3014 = vadd.f32 0.0, %v3013
      %3015 = vmatmul.f32.gmra.mxu0 %v2661
      %v3016 = vpop.f32.mrf.mxu0
      %v3017 = vadd.f32 0.0, %v3016
      %3018 = vmatmul.f32.gmra.mxu0 %v2664
      %v3019 = vpop.f32.mrf.mxu0
      %v3020 = vadd.f32 0.0, %v3019
      %3021 = vmatmul.f32.gmra.mxu0 %v2667
      %v3022 = vpop.f32.mrf.mxu0
      %v3023 = vadd.f32 0.0, %v3022
      %3024 = vmatmul.f32.gmra.mxu0 %v2670
      %v3025 = vpop.f32.mrf.mxu0
      %v3026 = vadd.f32 0.0, %v3025
      %3027 = vmatmul.f32.gmra.mxu0 %v2673
      %v3028 = vpop.f32.mrf.mxu0
      %v3029 = vadd.f32 0.0, %v3028
      %3030 = vmatmul.f32.gmra.mxu0 %v2676
      %v3031 = vpop.f32.mrf.mxu0
      %v3032 = vadd.f32 0.0, %v3031
      %3033 = vmatmul.f32.gmra.mxu0 %v2679
      %v3034 = vpop.f32.mrf.mxu0
      %v3035 = vadd.f32 0.0, %v3034
      %3036 = vmatmul.f32.gmra.mxu0 %v2682
      %v3037 = vpop.f32.mrf.mxu0
      %v3038 = vadd.f32 0.0, %v3037
      %3039 = vmatmul.f32.gmra.mxu0 %v2685
      %v3040 = vpop.f32.mrf.mxu0
      %v3041 = vadd.f32 0.0, %v3040
      %3042 = vmatmul.f32.gmra.mxu0 %v2688
      %v3043 = vpop.f32.mrf.mxu0
      %v3044 = vadd.f32 0.0, %v3043
      %3045 = vmatmul.f32.gmra.mxu0 %v2691
      %v3046 = vpop.f32.mrf.mxu0
      %v3047 = vadd.f32 0.0, %v3046
      %3048 = vmatmul.f32.gmra.mxu0 %v2694
      %v3049 = vpop.f32.mrf.mxu0
      %v3050 = vadd.f32 0.0, %v3049
      %3051 = vmatmul.f32.gmra.mxu0 %v2697
      %v3052 = vpop.f32.mrf.mxu0
      %v3053 = vadd.f32 0.0, %v3052
      %3054 = vmatmul.f32.gmra.mxu0 %v2700
      %v3055 = vpop.f32.mrf.mxu0
      %v3056 = vadd.f32 0.0, %v3055
      %3057 = vmatmul.f32.gmra.mxu0 %v2703
      %v3058 = vpop.f32.mrf.mxu0
      %v3059 = vadd.f32 0.0, %v3058
      %3060 = vmatmul.f32.gmra.mxu0 %v2706
      %v3061 = vpop.f32.mrf.mxu0
      %v3062 = vadd.f32 0.0, %v3061
      %3063 = vmatmul.f32.gmra.mxu0 %v2709
      %v3064 = vpop.f32.mrf.mxu0
      %v3065 = vadd.f32 0.0, %v3064
      %3066 = vmatmul.f32.gmra.mxu0 %v2712
      %v3067 = vpop.f32.mrf.mxu0
      %v3068 = vadd.f32 0.0, %v3067
      %3069 = vmatmul.f32.gmra.mxu0 %v2715
      %v3070 = vpop.f32.mrf.mxu0
      %v3071 = vadd.f32 0.0, %v3070
      %3072 = vmatmul.f32.gmra.mxu0 %v2718
      %v3073 = vpop.f32.mrf.mxu0
      %v3074 = vadd.f32 0.0, %v3073
      %3075 = vmatmul.f32.gmra.mxu0 %v2721
      %v3076 = vpop.f32.mrf.mxu0
      %v3077 = vadd.f32 0.0, %v3076
      %3078 = vmatmul.f32.gmra.mxu0 %v2724
      %v3079 = vpop.f32.mrf.mxu0
      %v3080 = vadd.f32 0.0, %v3079
      %3081 = vmatmul.f32.gmra.mxu0 %v2727
      %v3082 = vpop.f32.mrf.mxu0
      %v3083 = vadd.f32 0.0, %v3082
      %3084 = vmatmul.f32.gmra.mxu0 %v2730
      %v3085 = vpop.f32.mrf.mxu0
      %v3086 = vadd.f32 0.0, %v3085
      %3087 = vmatmul.f32.gmra.mxu0 %v2733
      %v3088 = vpop.f32.mrf.mxu0
      %v3089 = vadd.f32 0.0, %v3088
      %3090 = vmatmul.f32.gmra.mxu0 %v2736
      %v3091 = vpop.f32.mrf.mxu0
      %v3092 = vadd.f32 0.0, %v3091
      %3093 = vmatmul.f32.gmra.mxu0 %v2739
      %v3094 = vpop.f32.mrf.mxu0
      %v3095 = vadd.f32 0.0, %v3094
      %3096 = vmatmul.f32.gmra.mxu0 %v2742
      %v3097 = vpop.f32.mrf.mxu0
      %v3098 = vadd.f32 0.0, %v3097
      %3099 = vmatmul.f32.gmra.mxu0 %v2745
      %v3100 = vpop.f32.mrf.mxu0
      %v3101 = vadd.f32 0.0, %v3100
      %3102 = vmatmul.f32.gmra.mxu0 %v2748
      %v3103 = vpop.f32.mrf.mxu0
      %v3104 = vadd.f32 0.0, %v3103
      %3105 = vmatmul.f32.gmra.mxu0 %v2751
      %v3106 = vpop.f32.mrf.mxu0
      %v3107 = vadd.f32 0.0, %v3106
      %3108 = vmatmul.f32.gmra.mxu0 %v2754
      %v3109 = vpop.f32.mrf.mxu0
      %v3110 = vadd.f32 0.0, %v3109
      %3111 = vmatmul.f32.gmra.mxu0 %v2757
      %v3112 = vpop.f32.mrf.mxu0
      %v3113 = vadd.f32 0.0, %v3112
      %3114 = vmatmul.f32.gmra.mxu0 %v2760
      %v3115 = vpop.f32.mrf.mxu0
      %v3116 = vadd.f32 0.0, %v3115
      %3117 = vmatmul.f32.gmra.mxu0 %v2763
      %v3118 = vpop.f32.mrf.mxu0
      %v3119 = vadd.f32 0.0, %v3118
      %3120 = vmatmul.f32.gmra.mxu0 %v2766
      %v3121 = vpop.f32.mrf.mxu0
      %v3122 = vadd.f32 0.0, %v3121
      %3123 = vmatmul.f32.gmra.mxu0 %v2769
      %v3124 = vpop.f32.mrf.mxu0
      %v3125 = vadd.f32 0.0, %v3124
      %3126 = vmatmul.f32.gmra.mxu0 %v2772
      %v3127 = vpop.f32.mrf.mxu0
      %v3128 = vadd.f32 0.0, %v3127
      %3129 = vmatmul.f32.gmra.mxu0 %v2775
      %v3130 = vpop.f32.mrf.mxu0
      %v3131 = vadd.f32 0.0, %v3130
      %3132 = vmatmul.f32.gmra.mxu0 %v2778
      %v3133 = vpop.f32.mrf.mxu0
      %v3134 = vadd.f32 0.0, %v3133
      %3135 = vmatmul.f32.gmra.mxu0 %v2781
      %v3136 = vpop.f32.mrf.mxu0
      %v3137 = vadd.f32 0.0, %v3136
      %3138 = vmatmul.f32.gmra.mxu0 %v2784
      %v3139 = vpop.f32.mrf.mxu0
      %v3140 = vadd.f32 0.0, %v3139
      %3141 = vmatmul.f32.gmra.mxu0 %v2787
      %v3142 = vpop.f32.mrf.mxu0
      %v3143 = vadd.f32 0.0, %v3142
      %3144 = vmatmul.f32.gmra.mxu0 %v2790
      %v3145 = vpop.f32.mrf.mxu0
      %v3146 = vadd.f32 0.0, %v3145
      %3147 = vmatmul.f32.gmra.mxu0 %v2793
      %v3148 = vpop.f32.mrf.mxu0
      %v3149 = vadd.f32 0.0, %v3148
      %3150 = vmatmul.f32.gmra.mxu0 %v2796
      %v3151 = vpop.f32.mrf.mxu0
      %v3152 = vadd.f32 0.0, %v3151
      %3153 = vmatmul.f32.gmra.mxu0 %v2799
      %v3154 = vpop.f32.mrf.mxu0
      %v3155 = vadd.f32 0.0, %v3154
      %3156 = vmatmul.f32.gmra.mxu0 %v2802
      %v3157 = vpop.f32.mrf.mxu0
      %v3158 = vadd.f32 0.0, %v3157
      %3159 = vmatmul.f32.gmra.mxu0 %v2805
      %v3160 = vpop.f32.mrf.mxu0
      %v3161 = vadd.f32 0.0, %v3160
      %3162 = vmatmul.f32.gmra.mxu0 %v2808
      %v3163 = vpop.f32.mrf.mxu0
      %v3164 = vadd.f32 0.0, %v3163
      %3165 = vmatmul.f32.gmra.mxu0 %v2811
      %v3166 = vpop.f32.mrf.mxu0
      %v3167 = vadd.f32 0.0, %v3166
      %3168 = vmatmul.f32.gmra.mxu0 %v2814
      %v3169 = vpop.f32.mrf.mxu0
      %v3170 = vadd.f32 0.0, %v3169
      %3171 = vmatmul.f32.gmra.mxu0 %v2817
      %v3172 = vpop.f32.mrf.mxu0
      %v3173 = vadd.f32 0.0, %v3172
      %3174 = vmatmul.f32.gmra.mxu0 %v2820
      %v3175 = vpop.f32.mrf.mxu0
      %v3176 = vadd.f32 0.0, %v3175
      %3177 = vmatmul.f32.gmra.mxu0 %v2823
      %v3178 = vpop.f32.mrf.mxu0
      %v3179 = vadd.f32 0.0, %v3178
      %3180 = vmatmul.f32.gmra.mxu0 %v2826
      %v3181 = vpop.f32.mrf.mxu0
      %v3182 = vadd.f32 0.0, %v3181
      %3183 = vmatmul.f32.gmra.mxu0 %v2829
      %v3184 = vpop.f32.mrf.mxu0
      %v3185 = vadd.f32 0.0, %v3184
      %3186 = vmatmul.f32.gmra.mxu0 %v2832
      %v3187 = vpop.f32.mrf.mxu0
      %v3188 = vadd.f32 0.0, %v3187
      %3189 = vmatmul.f32.gmra.mxu0 %v2835
      %v3190 = vpop.f32.mrf.mxu0
      %v3191 = vadd.f32 0.0, %v3190
      %3192 = vmatmul.f32.gmra.mxu0 %v2838
      %v3193 = vpop.f32.mrf.mxu0
      %v3194 = vadd.f32 0.0, %v3193
      %3195 = vmatmul.f32.gmra.mxu0 %v2841
      %v3196 = vpop.f32.mrf.mxu0
      %v3197 = vadd.f32 0.0, %v3196
      %3198 = vmatmul.f32.gmra.mxu0 %v2844
      %v3199 = vpop.f32.mrf.mxu0
      %v3200 = vadd.f32 0.0, %v3199
      %3201 = vmatmul.f32.gmra.mxu0 %v2847
      %v3202 = vpop.f32.mrf.mxu0
      %v3203 = vadd.f32 0.0, %v3202
      %3204 = vmatmul.f32.gmra.mxu0 %v2850
      %v3205 = vpop.f32.mrf.mxu0
      %v3206 = vadd.f32 0.0, %v3205
      %3207 = vmatmul.f32.gmra.mxu0 %v2853
      %v3208 = vpop.f32.mrf.mxu0
      %v3209 = vadd.f32 0.0, %v3208
      %3210 = vmatmul.f32.gmra.mxu0 %v2856
      %v3211 = vpop.f32.mrf.mxu0
      %v3212 = vadd.f32 0.0, %v3211
      %3213 = vmatmul.f32.gmra.mxu0 %v2859
      %v3214 = vpop.f32.mrf.mxu0
      %v3215 = vadd.f32 0.0, %v3214
      %3216 = vmatmul.f32.gmra.mxu0 %v2862
      %v3217 = vpop.f32.mrf.mxu0
      %v3218 = vadd.f32 0.0, %v3217
      %3219 = vmatmul.f32.gmra.mxu0 %v2865
      %v3220 = vpop.f32.mrf.mxu0
      %v3221 = vadd.f32 0.0, %v3220
      %3222 = vmatmul.f32.gmra.mxu0 %v2868
      %v3223 = vpop.f32.mrf.mxu0
      %v3224 = vadd.f32 0.0, %v3223
      %3225 = vmatmul.f32.gmra.mxu0 %v2871
      %v3226 = vpop.f32.mrf.mxu0
      %v3227 = vadd.f32 0.0, %v3226
      %3228 = vmatmul.f32.gmra.mxu0 %v2874
      %v3229 = vpop.f32.mrf.mxu0
      %v3230 = vadd.f32 0.0, %v3229
      %3231 = vmatmul.f32.gmra.mxu0 %v2877
      %v3232 = vpop.f32.mrf.mxu0
      %v3233 = vadd.f32 0.0, %v3232
      %3234 = vmatmul.f32.gmra.mxu0 %v2880
      %v3235 = vpop.f32.mrf.mxu0
      %v3236 = vadd.f32 0.0, %v3235
      %3237 = vmatmul.f32.gmra.mxu0 %v2883
      %v3238 = vpop.f32.mrf.mxu0
      %v3239 = vadd.f32 0.0, %v3238
      %3240 = vmatmul.f32.gmra.mxu0 %v2886
      %v3241 = vpop.f32.mrf.mxu0
      %v3242 = vadd.f32 0.0, %v3241
      %3243 = vmatmul.f32.gmra.mxu0 %v2889
      %v3244 = vpop.f32.mrf.mxu0
      %v3245 = vadd.f32 0.0, %v3244
      %3246 = vmatmul.f32.gmra.mxu0 %v2892
      %v3247 = vpop.f32.mrf.mxu0
      %v3248 = vadd.f32 0.0, %v3247
      %3249 = vmatmul.f32.gmra.mxu0 %v2895
      %v3250 = vpop.f32.mrf.mxu0
      %v3251 = vadd.f32 0.0, %v3250
      %3252 = vmatmul.f32.gmra.mxu0 %v2898
      %v3253 = vpop.f32.mrf.mxu0
      %v3254 = vadd.f32 0.0, %v3253
      %3255 = vmatmul.f32.gmra.mxu0 %v2901
      %v3256 = vpop.f32.mrf.mxu0
      %v3257 = vadd.f32 0.0, %v3256
      %3258 = vmatmul.f32.gmra.mxu0 %v2904
      %v3259 = vpop.f32.mrf.mxu0
      %v3260 = vadd.f32 0.0, %v3259
      %3261 = vmatmul.f32.gmra.mxu0 %v2907
      %v3262 = vpop.f32.mrf.mxu0
      %v3263 = vadd.f32 0.0, %v3262
      %3264 = vmatmul.f32.gmra.mxu0 %v2910
      %v3265 = vpop.f32.mrf.mxu0
      %v3266 = vadd.f32 0.0, %v3265
      %3267 = vmatmul.f32.gmra.mxu0 %v2913
      %v3268 = vpop.f32.mrf.mxu0
      %v3269 = vadd.f32 0.0, %v3268
      %3270 = vmatmul.f32.gmra.mxu0 %v2916
      %v3271 = vpop.f32.mrf.mxu0
      %v3272 = vadd.f32 0.0, %v3271
      %3273 = vmatmul.f32.gmra.mxu0 %v2919
      %v3274 = vpop.f32.mrf.mxu0
      %v3275 = vadd.f32 0.0, %v3274
      %3276 = vmatmul.f32.gmra.mxu0 %v2922
      %v3277 = vpop.f32.mrf.mxu0
      %v3278 = vadd.f32 0.0, %v3277
      %3279 = vmatmul.f32.gmra.mxu0 %v2925
      %v3280 = vpop.f32.mrf.mxu0
      %v3281 = vadd.f32 0.0, %v3280
      %3282 = vmatmul.f32.gmra.mxu0 %v2928
      %v3283 = vpop.f32.mrf.mxu0
      %v3284 = vadd.f32 0.0, %v3283
      %3285 = vmatmul.f32.gmra.mxu0 %v2931
      %v3286 = vpop.f32.mrf.mxu0
      %v3287 = vadd.f32 0.0, %v3286
      %3288 = vmatmul.f32.gmra.mxu0 %v2934
      %v3289 = vpop.f32.mrf.mxu0
      %v3290 = vadd.f32 0.0, %v3289
      %3291 = vmatmul.f32.gmra.mxu0 %v2937
      %v3292 = vpop.f32.mrf.mxu0
      %v3293 = vadd.f32 0.0, %v3292
      %3294 = vmatmul.f32.gmra.mxu0 %v2940
      %v3295 = vpop.f32.mrf.mxu0
      %v3296 = vadd.f32 0.0, %v3295
      %3297 = vmatmul.f32.gmra.mxu0 %v2943
      %v3298 = vpop.f32.mrf.mxu0
      %v3299 = vadd.f32 0.0, %v3298
      %3300 = vmatmul.f32.gmra.mxu0 %v2946
      %v3301 = vpop.f32.mrf.mxu0
      %v3302 = vadd.f32 0.0, %v3301
      %3303 = vmatmul.f32.gmra.mxu0 %v2949
      %v3304 = vpop.f32.mrf.mxu0
      %v3305 = vadd.f32 0.0, %v3304
      %3306 = vmatmul.f32.gmra.mxu0 %v2952
      %v3307 = vpop.f32.mrf.mxu0
      %v3308 = vadd.f32 0.0, %v3307
      %3309 = vmatmul.f32.gmra.mxu0 %v2955
      %v3310 = vpop.f32.mrf.mxu0
      %v3311 = vadd.f32 0.0, %v3310
      %3312 = vmatmul.f32.gmra.mxu0 %v2958
      %v3313 = vpop.f32.mrf.mxu0
      %v3314 = vadd.f32 0.0, %v3313
      %3315 = vdwg.mxu0
      %v3316 = vadd.f32 %v2382, %v2978
      %v3317 = vadd.f32 %v2383, %v2981
      %v3318 = vadd.f32 %v2384, %v2984
      %v3319 = vadd.f32 %v2385, %v2987
      %v3320 = vadd.f32 %v2386, %v2990
      %v3321 = vadd.f32 %v2387, %v2993
      %v3322 = vadd.f32 %v2388, %v2996
      %v3323 = vadd.f32 %v2389, %v2999
      %v3324 = vadd.f32 %v2390, %v3002
      %v3325 = vadd.f32 %v2391, %v3005
      %v3326 = vadd.f32 %v2392, %v3008
      %v3327 = vadd.f32 %v2393, %v3011
      %v3328 = vadd.f32 %v2394, %v3014
      %v3329 = vadd.f32 %v2395, %v3017
      %v3330 = vadd.f32 %v2396, %v3020
      %v3331 = vadd.f32 %v2397, %v3023
      %v3332 = vadd.f32 %v2398, %v3026
      %v3333 = vadd.f32 %v2399, %v3029
      %v3334 = vadd.f32 %v2400, %v3032
      %v3335 = vadd.f32 %v2401, %v3035
      %v3336 = vadd.f32 %v2402, %v3038
      %v3337 = vadd.f32 %v2403, %v3041
      %v3338 = vadd.f32 %v2404, %v3044
      %v3339 = vadd.f32 %v2405, %v3047
      %v3340 = vadd.f32 %v2406, %v3050
      %v3341 = vadd.f32 %v2407, %v3053
      %v3342 = vadd.f32 %v2408, %v3056
      %v3343 = vadd.f32 %v2409, %v3059
      %v3344 = vadd.f32 %v2410, %v3062
      %v3345 = vadd.f32 %v2411, %v3065
      %v3346 = vadd.f32 %v2412, %v3068
      %v3347 = vadd.f32 %v2413, %v3071
      %v3348 = vadd.f32 %v2414, %v3074
      %v3349 = vadd.f32 %v2415, %v3077
      %v3350 = vadd.f32 %v2416, %v3080
      %v3351 = vadd.f32 %v2417, %v3083
      %v3352 = vadd.f32 %v2418, %v3086
      %v3353 = vadd.f32 %v2419, %v3089
      %v3354 = vadd.f32 %v2420, %v3092
      %v3355 = vadd.f32 %v2421, %v3095
      %v3356 = vadd.f32 %v2422, %v3098
      %v3357 = vadd.f32 %v2423, %v3101
      %v3358 = vadd.f32 %v2424, %v3104
      %v3359 = vadd.f32 %v2425, %v3107
      %v3360 = vadd.f32 %v2426, %v3110
      %v3361 = vadd.f32 %v2427, %v3113
      %v3362 = vadd.f32 %v2428, %v3116
      %v3363 = vadd.f32 %v2429, %v3119
      %v3364 = vadd.f32 %v2430, %v3122
      %v3365 = vadd.f32 %v2431, %v3125
      %v3366 = vadd.f32 %v2432, %v3128
      %v3367 = vadd.f32 %v2433, %v3131
      %v3368 = vadd.f32 %v2434, %v3134
      %v3369 = vadd.f32 %v2435, %v3137
      %v3370 = vadd.f32 %v2436, %v3140
      %v3371 = vadd.f32 %v2437, %v3143
      %v3372 = vadd.f32 %v2438, %v3146
      %v3373 = vadd.f32 %v2439, %v3149
      %v3374 = vadd.f32 %v2440, %v3152
      %v3375 = vadd.f32 %v2441, %v3155
      %v3376 = vadd.f32 %v2442, %v3158
      %v3377 = vadd.f32 %v2443, %v3161
      %v3378 = vadd.f32 %v2444, %v3164
      %v3379 = vadd.f32 %v2445, %v3167
      %v3380 = vadd.f32 %v2446, %v3170
      %v3381 = vadd.f32 %v2447, %v3173
      %v3382 = vadd.f32 %v2448, %v3176
      %v3383 = vadd.f32 %v2449, %v3179
      %v3384 = vadd.f32 %v2450, %v3182
      %v3385 = vadd.f32 %v2451, %v3185
      %v3386 = vadd.f32 %v2452, %v3188
      %v3387 = vadd.f32 %v2453, %v3191
      %v3388 = vadd.f32 %v2454, %v3194
      %v3389 = vadd.f32 %v2455, %v3197
      %v3390 = vadd.f32 %v2456, %v3200
      %v3391 = vadd.f32 %v2457, %v3203
      %v3392 = vadd.f32 %v2458, %v3206
      %v3393 = vadd.f32 %v2459, %v3209
      %v3394 = vadd.f32 %v2460, %v3212
      %v3395 = vadd.f32 %v2461, %v3215
      %v3396 = vadd.f32 %v2462, %v3218
      %v3397 = vadd.f32 %v2463, %v3221
      %v3398 = vadd.f32 %v2464, %v3224
      %v3399 = vadd.f32 %v2465, %v3227
      %v3400 = vadd.f32 %v2466, %v3230
      %v3401 = vadd.f32 %v2467, %v3233
      %v3402 = vadd.f32 %v2468, %v3236
      %v3403 = vadd.f32 %v2469, %v3239
      %v3404 = vadd.f32 %v2470, %v3242
      %v3405 = vadd.f32 %v2471, %v3245
      %v3406 = vadd.f32 %v2472, %v3248
      %v3407 = vadd.f32 %v2473, %v3251
      %v3408 = vadd.f32 %v2474, %v3254
      %v3409 = vadd.f32 %v2475, %v3257
      %v3410 = vadd.f32 %v2476, %v3260
      %v3411 = vadd.f32 %v2477, %v3263
      %v3412 = vadd.f32 %v2478, %v3266
      %v3413 = vadd.f32 %v2479, %v3269
      %v3414 = vadd.f32 %v2480, %v3272
      %v3415 = vadd.f32 %v2481, %v3275
      %v3416 = vadd.f32 %v2482, %v3278
      %v3417 = vadd.f32 %v2483, %v3281
      %v3418 = vadd.f32 %v2484, %v3284
      %v3419 = vadd.f32 %v2485, %v3287
      %v3420 = vadd.f32 %v2486, %v3290
      %v3421 = vadd.f32 %v2487, %v3293
      %v3422 = vadd.f32 %v2488, %v3296
      %v3423 = vadd.f32 %v2489, %v3299
      %v3424 = vadd.f32 %v2490, %v3302
      %v3425 = vadd.f32 %v2491, %v3305
      %v3426 = vadd.f32 %v2492, %v3308
      %v3427 = vadd.f32 %v2493, %v3311
      %v3428 = vadd.f32 %v2494, %v3314
      %3429 = vst [vmem:[%s170] sm:$0xff] %v3316
      %3430 = vst [vmem:[%s170 + $0x8] sm:$0xff] %v3317
      %3431 = vst [vmem:[%s170 + $0x10] sm:$0xff] %v3318
      %3432 = vst [vmem:[%s170 + $0x18] sm:$0xff] %v3319
      %3433 = vst [vmem:[%s170 + $0x20] sm:$0xff] %v3320
      %3434 = vst [vmem:[%s170 + $0x28] sm:$0xff] %v3321
      %3435 = vst [vmem:[%s170 + $0x30] sm:$0xff] %v3322
      %3436 = vst [vmem:[%s170 + $0x38] sm:$0xff] %v3323
      %3437 = vst [vmem:[%s170 + $0x40] sm:$0xff] %v3324
      %3438 = vst [vmem:[%s170 + $0x48] sm:$0xff] %v3325
      %3439 = vst [vmem:[%s170 + $0x50] sm:$0xff] %v3326
      %3440 = vst [vmem:[%s170 + $0x58] sm:$0xff] %v3327
      %3441 = vst [vmem:[%s170 + $0x60] sm:$0xff] %v3328
      %3442 = vst [vmem:[%s170 + $0x68] sm:$0xff] %v3329
      %3443 = vst [vmem:[%s170 + $0x70] sm:$0xff] %v3330
      %3444 = vst [vmem:[%s170 + $0x78] sm:$0xff] %v3331
      %3445 = vst [vmem:[%s170 + $0x80] sm:$0xff] %v3332
      %3446 = vst [vmem:[%s170 + $0x88] sm:$0xff] %v3333
      %3447 = vst [vmem:[%s170 + $0x90] sm:$0xff] %v3334
      %3448 = vst [vmem:[%s170 + $0x98] sm:$0xff] %v3335
      %3449 = vst [vmem:[%s170 + $0xa0] sm:$0xff] %v3336
      %3450 = vst [vmem:[%s170 + $0xa8] sm:$0xff] %v3337
      %3451 = vst [vmem:[%s170 + $0xb0] sm:$0xff] %v3338
      %3452 = vst [vmem:[%s170 + $0xb8] sm:$0xff] %v3339
      %3453 = vst [vmem:[%s170 + $0xc0] sm:$0xff] %v3340
      %3454 = vst [vmem:[%s170 + $0xc8] sm:$0xff] %v3341
      %3455 = vst [vmem:[%s170 + $0xd0] sm:$0xff] %v3342
      %3456 = vst [vmem:[%s170 + $0xd8] sm:$0xff] %v3343
      %3457 = vst [vmem:[%s170 + $0xe0] sm:$0xff] %v3344
      %3458 = vst [vmem:[%s170 + $0xe8] sm:$0xff] %v3345
      %3459 = vst [vmem:[%s170 + $0xf0] sm:$0xff] %v3346
      %3460 = vst [vmem:[%s170 + $0xf8] sm:$0xff] %v3347
      %3461 = vst [vmem:[%s170 + $0x100] sm:$0xff] %v3348
      %3462 = vst [vmem:[%s170 + $0x108] sm:$0xff] %v3349
      %3463 = vst [vmem:[%s170 + $0x110] sm:$0xff] %v3350
      %3464 = vst [vmem:[%s170 + $0x118] sm:$0xff] %v3351
      %3465 = vst [vmem:[%s170 + $0x120] sm:$0xff] %v3352
      %3466 = vst [vmem:[%s170 + $0x128] sm:$0xff] %v3353
      %3467 = vst [vmem:[%s170 + $0x130] sm:$0xff] %v3354
      %3468 = vst [vmem:[%s170 + $0x138] sm:$0xff] %v3355
      %3469 = vst [vmem:[%s170 + $0x140] sm:$0xff] %v3356
      %3470 = vst [vmem:[%s170 + $0x148] sm:$0xff] %v3357
      %3471 = vst [vmem:[%s170 + $0x150] sm:$0xff] %v3358
      %3472 = vst [vmem:[%s170 + $0x158] sm:$0xff] %v3359
      %3473 = vst [vmem:[%s170 + $0x160] sm:$0xff] %v3360
      %3474 = vst [vmem:[%s170 + $0x168] sm:$0xff] %v3361
      %3475 = vst [vmem:[%s170 + $0x170] sm:$0xff] %v3362
      %3476 = vst [vmem:[%s170 + $0x178] sm:$0xff] %v3363
      %3477 = vst [vmem:[%s170 + $0x180] sm:$0xff] %v3364
      %3478 = vst [vmem:[%s170 + $0x188] sm:$0xff] %v3365
      %3479 = vst [vmem:[%s170 + $0x190] sm:$0xff] %v3366
      %3480 = vst [vmem:[%s170 + $0x198] sm:$0xff] %v3367
      %3481 = vst [vmem:[%s170 + $0x1a0] sm:$0xff] %v3368
      %3482 = vst [vmem:[%s170 + $0x1a8] sm:$0xff] %v3369
      %3483 = vst [vmem:[%s170 + $0x1b0] sm:$0xff] %v3370
      %3484 = vst [vmem:[%s170 + $0x1b8] sm:$0xff] %v3371
      %3485 = vst [vmem:[%s170 + $0x1c0] sm:$0xff] %v3372
      %3486 = vst [vmem:[%s170 + $0x1c8] sm:$0xff] %v3373
      %3487 = vst [vmem:[%s170 + $0x1d0] sm:$0xff] %v3374
      %3488 = vst [vmem:[%s170 + $0x1d8] sm:$0xff] %v3375
      %3489 = vst [vmem:[%s170 + $0x1e0] sm:$0xff] %v3376
      %3490 = vst [vmem:[%s170 + $0x1e8] sm:$0xff] %v3377
      %3491 = vst [vmem:[%s170 + $0x1f0] sm:$0xff] %v3378
      %3492 = vst [vmem:[%s170 + $0x1f8] sm:$0xff] %v3379
      %3493 = vst [vmem:[%s170 + $0x200] sm:$0xff] %v3380
      %3494 = vst [vmem:[%s170 + $0x208] sm:$0xff] %v3381
      %3495 = vst [vmem:[%s170 + $0x210] sm:$0xff] %v3382
      %3496 = vst [vmem:[%s170 + $0x218] sm:$0xff] %v3383
      %3497 = vst [vmem:[%s170 + $0x220] sm:$0xff] %v3384
      %3498 = vst [vmem:[%s170 + $0x228] sm:$0xff] %v3385
      %3499 = vst [vmem:[%s170 + $0x230] sm:$0xff] %v3386
      %3500 = vst [vmem:[%s170 + $0x238] sm:$0xff] %v3387
      %3501 = vst [vmem:[%s170 + $0x240] sm:$0xff] %v3388
      %3502 = vst [vmem:[%s170 + $0x248] sm:$0xff] %v3389
      %3503 = vst [vmem:[%s170 + $0x250] sm:$0xff] %v3390
      %3504 = vst [vmem:[%s170 + $0x258] sm:$0xff] %v3391
      %3505 = vst [vmem:[%s170 + $0x260] sm:$0xff] %v3392
      %3506 = vst [vmem:[%s170 + $0x268] sm:$0xff] %v3393
      %3507 = vst [vmem:[%s170 + $0x270] sm:$0xff] %v3394
      %3508 = vst [vmem:[%s170 + $0x278] sm:$0xff] %v3395
      %3509 = vst [vmem:[%s170 + $0x280] sm:$0xff] %v3396
      %3510 = vst [vmem:[%s170 + $0x288] sm:$0xff] %v3397
      %3511 = vst [vmem:[%s170 + $0x290] sm:$0xff] %v3398
      %3512 = vst [vmem:[%s170 + $0x298] sm:$0xff] %v3399
      %3513 = vst [vmem:[%s170 + $0x2a0] sm:$0xff] %v3400
      %3514 = vst [vmem:[%s170 + $0x2a8] sm:$0xff] %v3401
      %3515 = vst [vmem:[%s170 + $0x2b0] sm:$0xff] %v3402
      %3516 = vst [vmem:[%s170 + $0x2b8] sm:$0xff] %v3403
      %3517 = vst [vmem:[%s170 + $0x2c0] sm:$0xff] %v3404
      %3518 = vst [vmem:[%s170 + $0x2c8] sm:$0xff] %v3405
      %3519 = vst [vmem:[%s170 + $0x2d0] sm:$0xff] %v3406
      %3520 = vst [vmem:[%s170 + $0x2d8] sm:$0xff] %v3407
      %3521 = vst [vmem:[%s170 + $0x2e0] sm:$0xff] %v3408
      %3522 = vst [vmem:[%s170 + $0x2e8] sm:$0xff] %v3409
      %3523 = vst [vmem:[%s170 + $0x2f0] sm:$0xff] %v3410
      %3524 = vst [vmem:[%s170 + $0x2f8] sm:$0xff] %v3411
      %3525 = vst [vmem:[%s170 + $0x300] sm:$0xff] %v3412
      %3526 = vst [vmem:[%s170 + $0x308] sm:$0xff] %v3413
      %3527 = vst [vmem:[%s170 + $0x310] sm:$0xff] %v3414
      %3528 = vst [vmem:[%s170 + $0x318] sm:$0xff] %v3415
      %3529 = vst [vmem:[%s170 + $0x320] sm:$0xff] %v3416
      %3530 = vst [vmem:[%s170 + $0x328] sm:$0xff] %v3417
      %3531 = vst [vmem:[%s170 + $0x330] sm:$0xff] %v3418
      %3532 = vst [vmem:[%s170 + $0x338] sm:$0xff] %v3419
      %3533 = vst [vmem:[%s170 + $0x340] sm:$0xff] %v3420
      %3534 = vst [vmem:[%s170 + $0x348] sm:$0xff] %v3421
      %3535 = vst [vmem:[%s170 + $0x350] sm:$0xff] %v3422
      %3536 = vst [vmem:[%s170 + $0x358] sm:$0xff] %v3423
      %3537 = vst [vmem:[%s170 + $0x360] sm:$0xff] %v3424
      %3538 = vst [vmem:[%s170 + $0x368] sm:$0xff] %v3425
      %3539 = vst [vmem:[%s170 + $0x370] sm:$0xff] %v3426
      %3540 = vst [vmem:[%s170 + $0x378] sm:$0xff] %v3427
      %3541 = vst [vmem:[%s170 + $0x380] sm:$0xff] %v3428
      %p3542 = scmp.lt.s32.totalorder %s14, 1
      %s3543 = scalar_select %p3542, %s14, 1
      %s3544 = smul.addr %s3543, 113
      %s3545 = smul.addr %s3544, 8
      %s3546 = scalar_lea.vmem %s3, %s3545
      // Predicated region
      $region33: #{decoder_forward.7} parent=31 // pred_check
        %p3547 = pneg %p100
      $region34: #{decoder_forward.7} parent=31 // pred_check_branch
        %3549 = sbr.rel (%p3547) target = $region36
      $region35: #{decoder_forward.7} parent=31 // pred_region
        _
      $region36: #{decoder_forward.7} parent=31 // pred_fallthru
        _
    $region32: #{decoder_forward.7} parent=5 // pred_fallthru
      _
    %p3550 = scmp.le.s32.totalorder 2, %s9
    // Predicated region
    $region37: #{decoder_forward.7} parent=5 // pred_check
      %p3551 = pneg %p3550
    $region38: #{decoder_forward.7} parent=5 // pred_check_branch
      %3553 = sbr.rel (%p3551) target = $region40
    $region39: #{decoder_forward.7} parent=5 // pred_region
      %s3554 = ssub.s32 %s9, 2
      // Predicated region
      $region41: #{decoder_forward.7} parent=39 // pred_check
        %p3555 = pneg %p106
      $region42: #{decoder_forward.7} parent=39 // pred_check_branch
        %3557 = sbr.rel (%p3555) target = $region44
      $region43: #{decoder_forward.7} parent=39 // pred_region
        %p3558 = scmp.lt.s32.totalorder %s15, 1
        %s3559 = scalar_select %p3558, %s15, 1
        %s3560 = smul.addr %s3559, 113
        %s3561 = smul.addr %s3560, 8
        %s3562 = scalar_lea.vmem %s3, %s3561
      $region44: #{decoder_forward.7} parent=39 // pred_fallthru
        _
    $region40: #{decoder_forward.7} parent=5 // pred_fallthru
      _
  $region6: #{decoder_forward.7} parent=0 // loop_footer
    %s13 = sadd.s32 1, %s9
  $region7: #{decoder_forward.7} parent=0 // loop_footer_branch
    %8 = sbr.rel target = $region3
  $region8: #{decoder_forward.7} parent=0 // loop_exit
    _

</llo_original>
